<compile_context>
chip_gen: v7x
topology: tpu7x:2x2x1
jax: 0.10.0
libtpu: 0.0.40
codegen_flags: <defaults>
</compile_context>

<pallas_src>
import jax
import jax.numpy as jnp
from jax import lax
from jax.experimental import pallas as pl
from jax.experimental.pallas import tpu as pltpu

# Module hyper-params (PyTorch defaults: heads=4, dim_head=32, num_mem_kv=4)
DIM = 32
HEADS = 4
DIM_HEAD = 32
NUM_MEM_KV = 4
HIDDEN = HEADS * DIM_HEAD          # 128
B, H, W = 2, 16, 16
N = H * W                          # 256

# lax.dot_general dimension numbers: contract dim 0 of both operands
# ("transposed-lhs" form) -> output (lhs_dim1, rhs_dim1), lane-dense result.
TN_DIMS = (((0,), (0,)), ((), ()))


def attention_kernel(x_ref, wqkv_ref, memk_ref, memv_ref, wout_ref, bout_ref,
                     o_ref):
    """One grid step == one batch element. Whole working set (<1.5 MiB) in VMEM."""
    x = x_ref[0]                                          # (C, N) f32
    c, n = x.shape

    # --- RMSNorm over channels == sublane reduce. g * sqrt(dim) is folded into
    #     wqkv; rsqrt goes to the EUP. Matches 1 / max(||x||, 1e-12). ---
    ss = jnp.sum(x * x, axis=0, keepdims=True)            # (1, N)
    inv_norm = jnp.minimum(lax.rsqrt(ss), 1e12)
    xn = (x * inv_norm).astype(jnp.bfloat16)              # (C, N) bf16

    # --- 1x1 conv to qkv == matmul: (3*HIDDEN, C) @ (C, N) ---
    qkv = jnp.dot(wqkv_ref[...], xn,
                  preferred_element_type=jnp.float32)     # (3*HIDDEN, N) f32
    qkv = qkv.astype(jnp.bfloat16)                        # MXU operands in bf16

    acc = jnp.zeros((c, n), jnp.float32)                  # output-proj accumulator
    for hd in range(HEADS):                               # static unrolled loop
        lo = hd * DIM_HEAD
        q = qkv[lo:lo + DIM_HEAD]                                   # (DH, N)
        k = qkv[HIDDEN + lo:HIDDEN + lo + DIM_HEAD]                 # (DH, N)
        v = qkv[2 * HIDDEN + lo:2 * HIDDEN + lo + DIM_HEAD]         # (DH, N)
        mk = memk_ref[hd]                                           # (DH, M) bf16
        mv = memv_ref[hd]                                           # (DH, M) bf16

        # scores: keys along sublanes, queries along lanes.
        # The softmax scale is already folded into the q rows of wqkv.
        sim_x = lax.dot_general(k, q, TN_DIMS,
                                preferred_element_type=jnp.float32)  # (N, N)
        sim_m = lax.dot_general(mk, q, TN_DIMS,
                                preferred_element_type=jnp.float32)  # (M, N)

        # joint softmax over concat([mem_kv, kv]) done as two pieces (f32).
        m = jnp.maximum(jnp.max(sim_x, axis=0, keepdims=True),
                        jnp.max(sim_m, axis=0, keepdims=True))       # (1, N)
        p_x = jnp.exp(sim_x - m)
        p_m = jnp.exp(sim_m - m)
        den = (jnp.sum(p_x, axis=0, keepdims=True)
               + jnp.sum(p_m, axis=0, keepdims=True))                # (1, N)

        num = (jnp.dot(v, p_x.astype(jnp.bfloat16),
                       preferred_element_type=jnp.float32)
               + jnp.dot(mv, p_m.astype(jnp.bfloat16),
                         preferred_element_type=jnp.float32))        # (DH, N)
        # den >= 1 (row max contributes exp(0)=1) -> approx EUP reciprocal is safe.
        head_out = num * pl.reciprocal(den, approx=True)             # (DH, N) f32

        # accumulate the 1x1 output conv per head: (C, DH) @ (DH, N), f32.
        acc = acc + jnp.dot(wout_ref[hd], head_out,
                            preferred_element_type=jnp.float32)

    o_ref[0] = acc + bout_ref[...]                        # per-channel bias
    # TODO(synk): attn_dropout(p=0.0) is the identity in eval mode; not emitted.


def attention_forward(x_nchw, params):
    b, c, h, w = x_nchw.shape
    n = h * w
    x_flat = x_nchw.reshape(b, c, n)        # free reshape: C->sublanes, N->lanes

    # Fold RMSNorm gain * sqrt(dim) (all rows) and the attention scale (q rows
    # only) into the qkv weights; cast MXU-side weights to bf16.
    gain = (params["g"] * (c ** 0.5))[None, :]                        # (1, C)
    row_scale = jnp.concatenate(
        [jnp.full((HIDDEN,), DIM_HEAD ** -0.5, jnp.float32),
         jnp.ones((2 * HIDDEN,), jnp.float32)])[:, None]              # (3H, 1)
    w_qkv = (params["w_qkv"] * gain * row_scale).astype(jnp.bfloat16)  # (3H, C)

    mem_k = jnp.transpose(params["mem_k"], (0, 2, 1)).astype(jnp.bfloat16)  # (H, DH, M)
    mem_v = jnp.transpose(params["mem_v"], (0, 2, 1)).astype(jnp.bfloat16)  # (H, DH, M)
    w_out = jnp.transpose(params["w_out"].reshape(c, HEADS, DIM_HEAD),
                          (1, 0, 2))                                   # (H, C, DH) f32
    b_out = params["b_out"].reshape(c, 1)

    out_flat = pl.pallas_call(
        attention_kernel,
        out_shape=jax.ShapeDtypeStruct((b, c, n), jnp.float32),
        grid_spec=pltpu.PrefetchScalarGridSpec(
            num_scalar_prefetch=0,
            grid=(b,),
            in_specs=[
                pl.BlockSpec((1, c, n), lambda i: (i, 0, 0)),                      # x
                pl.BlockSpec((3 * HIDDEN, c), lambda i: (0, 0)),                   # w_qkv
                pl.BlockSpec((HEADS, DIM_HEAD, NUM_MEM_KV), lambda i: (0, 0, 0)),  # mem_k
                pl.BlockSpec((HEADS, DIM_HEAD, NUM_MEM_KV), lambda i: (0, 0, 0)),  # mem_v
                pl.BlockSpec((HEADS, c, DIM_HEAD), lambda i: (0, 0, 0)),           # w_out
                pl.BlockSpec((c, 1), lambda i: (0, 0)),                            # b_out
            ],
            out_specs=pl.BlockSpec((1, c, n), lambda i: (i, 0, 0)),
        ),
        # grid=(B,) kept "parallel": on v7x the two batch elements land on the
        # two TensorCores; on v5e/v6e it is a cheap 2-step serial loop.
        compiler_params=pltpu.CompilerParams(dimension_semantics=("parallel",)),
    )(x_flat, w_qkv, mem_k, mem_v, w_out, b_out)

    return out_flat.reshape(b, c, h, w)


def ref_forward(x_nchw, params):
    """Pure-JAX (f32) reference matching the PyTorch forward semantics."""
    b, c, h, w = x_nchw.shape
    n = h * w
    nrm = jnp.sqrt(jnp.sum(x_nchw * x_nchw, axis=1, keepdims=True))
    xn = (x_nchw / jnp.maximum(nrm, 1e-12)
          * params["g"].reshape(1, c, 1, 1) * (c ** 0.5))
    xf = xn.reshape(b, c, n)                                    # (b, C, n)
    qkv = jnp.einsum("oc,bcn->bon", params["w_qkv"], xf)        # (b, 3H, n)
    q, k, v = jnp.split(qkv, 3, axis=1)

    def to_heads(t):                                            # -> (b, H, n, DH)
        return jnp.transpose(t.reshape(b, HEADS, DIM_HEAD, n), (0, 1, 3, 2))

    q, k, v = map(to_heads, (q, k, v))
    mk = jnp.broadcast_to(params["mem_k"][None], (b, HEADS, NUM_MEM_KV, DIM_HEAD))
    mv = jnp.broadcast_to(params["mem_v"][None], (b, HEADS, NUM_MEM_KV, DIM_HEAD))
    k = jnp.concatenate([mk, k], axis=2)
    v = jnp.concatenate([mv, v], axis=2)
    sim = jnp.einsum("bhid,bhjd->bhij", q, k) * (DIM_HEAD ** -0.5)
    attn = jax.nn.softmax(sim, axis=-1)
    out = jnp.einsum("bhij,bhjd->bhid", attn, v)                # (b, H, n, DH)
    out = jnp.transpose(out, (0, 1, 3, 2)).reshape(b, HIDDEN, n)
    y = (jnp.einsum("ok,bkn->bon", params["w_out"], out)
         + params["b_out"].reshape(1, c, 1))
    return y.reshape(b, c, h, w)


if __name__ == "__main__":
    key = jax.random.PRNGKey(0)
    kx, k1, k2, k3, k4, k5, k6 = jax.random.split(key, 7)

    # Deterministic synthetic parameters (shapes from the module __init__).
    # Conv weights are stored (out_channels, in_channels), matching PyTorch.
    params = {
        "g": 1.0 + 0.1 * jax.random.normal(k6, (DIM,), jnp.float32),          # RMSNorm.g
        "w_qkv": 0.05 * jax.random.normal(k1, (3 * HIDDEN, DIM), jnp.float32),
        "mem_k": jax.random.normal(k2, (HEADS, NUM_MEM_KV, DIM_HEAD), jnp.float32),
        "mem_v": jax.random.normal(k3, (HEADS, NUM_MEM_KV, DIM_HEAD), jnp.float32),
        "w_out": 0.05 * jax.random.normal(k4, (DIM, HIDDEN), jnp.float32),
        "b_out": 0.05 * jax.random.normal(k5, (DIM,), jnp.float32),
    }

    x = jax.random.normal(kx, (B, DIM, H, W), jnp.float32)

    out = jax.block_until_ready(attention_forward(x, params))
    ref = ref_forward(x, params)

    assert out.shape == (B, DIM, H, W)
    err = jnp.max(jnp.abs(out - ref))
    # bf16 MXU operands + approx EUP reciprocal -> relaxed from 1e-4 to 5e-3.
    assert jnp.allclose(out, ref, atol=5e-3, rtol=5e-3), f"max abs err {err}"

    print("KERNEL_OK")
</pallas_src>

<mosaic_0001>
module attributes {stable_mosaic.version = 11 : i64} {
  func.func @attention_kernel(%arg0: i32, %arg1: memref<1x32x256xf32, #tpu.memory_space<vmem>>, %arg2: memref<384x32xbf16, #tpu.memory_space<vmem>>, %arg3: memref<4x32x4xbf16, #tpu.memory_space<vmem>>, %arg4: memref<4x32x4xbf16, #tpu.memory_space<vmem>>, %arg5: memref<4x32x32xf32, #tpu.memory_space<vmem>>, %arg6: memref<32x1xf32, #tpu.memory_space<vmem>>, %arg7: memref<1x32x256xf32, #tpu.memory_space<vmem>>) attributes {dimension_semantics = [#tpu.dimension_semantics<parallel>], iteration_bounds = array<i64: 2>, scalar_prefetch = 0 : i64, scratch_operands = 0 : i64, tpu.core_type = #tpu.core_type<tc>, window_params = [{transform_indices = @transform_0, window_bounds = array<i64: 1, 32, 256>}, {pipeline_mode = #tpu.pipeline_mode<synchronous>, transform_indices = @transform_1, window_bounds = array<i64: 384, 32>}, {pipeline_mode = #tpu.pipeline_mode<synchronous>, transform_indices = @transform_2, window_bounds = array<i64: 4, 32, 4>}, {pipeline_mode = #tpu.pipeline_mode<synchronous>, transform_indices = @transform_3, window_bounds = array<i64: 4, 32, 4>}, {pipeline_mode = #tpu.pipeline_mode<synchronous>, transform_indices = @transform_4, window_bounds = array<i64: 4, 32, 32>}, {pipeline_mode = #tpu.pipeline_mode<synchronous>, transform_indices = @transform_5, window_bounds = array<i64: 32, 1>}, {transform_indices = @transform_6, window_bounds = array<i64: 1, 32, 256>}]} {
    %c0 = arith.constant 0 : index
    %c0_0 = arith.constant 0 : index
    %c0_1 = arith.constant 0 : index
    %0 = vector.load %arg1[%c0, %c0_0, %c0_1] : memref<1x32x256xf32, #tpu.memory_space<vmem>>, vector<1x32x256xf32>
    %1 = vector.shape_cast %0 : vector<1x32x256xf32> to vector<32x256xf32>
    %2 = arith.mulf %1, %1 : vector<32x256xf32>
    %cst = arith.constant dense<0.000000e+00> : vector<256xf32>
    %3 = vector.multi_reduction <add>, %2, %cst [0] : vector<32x256xf32> to vector<256xf32>
    %4 = vector.shape_cast %3 : vector<256xf32> to vector<1x256xf32>
    %5 = math.rsqrt %4 : vector<1x256xf32>
    %cst_2 = arith.constant 9.99999995E+11 : f32
    %6 = vector.broadcast %cst_2 : f32 to vector<1x256xf32>
    %7 = arith.minimumf %5, %6 : vector<1x256xf32>
    %8 = vector.broadcast %7 : vector<1x256xf32> to vector<32x256xf32>
    %9 = arith.mulf %1, %8 : vector<32x256xf32>
    %10 = arith.truncf %9 : vector<32x256xf32> to vector<32x256xbf16>
    %c0_3 = arith.constant 0 : index
    %c0_4 = arith.constant 0 : index
    %11 = vector.load %arg2[%c0_3, %c0_4] : memref<384x32xbf16, #tpu.memory_space<vmem>>, vector<384x32xbf16>
    %cst_5 = arith.constant dense<0.000000e+00> : vector<384x256xf32>
    %12 = tpu.matmul %11, %10, %cst_5 {dimension_numbers = #tpu.dot_dimension_numbers<[1], [0], [0], [1], [0, 0, 1, 1], [], []>} : vector<384x32xbf16>, vector<32x256xbf16>, vector<384x256xf32> -> vector<384x256xf32>
    %13 = arith.truncf %12 : vector<384x256xf32> to vector<384x256xbf16>
    %cst_6 = arith.constant 0.000000e+00 : f32
    %14 = vector.broadcast %cst_6 : f32 to vector<32x256xf32>
    %15 = vector.extract_strided_slice %13 {offsets = [0, 0], sizes = [32, 256], strides = [1, 1]} : vector<384x256xbf16> to vector<32x256xbf16>
    %16 = vector.extract_strided_slice %13 {offsets = [128, 0], sizes = [32, 256], strides = [1, 1]} : vector<384x256xbf16> to vector<32x256xbf16>
    %17 = vector.extract_strided_slice %13 {offsets = [256, 0], sizes = [32, 256], strides = [1, 1]} : vector<384x256xbf16> to vector<32x256xbf16>
    %c0_7 = arith.constant 0 : index
    %c0_8 = arith.constant 0 : index
    %c0_9 = arith.constant 0 : index
    %18 = vector.load %arg3[%c0_7, %c0_8, %c0_9] : memref<4x32x4xbf16, #tpu.memory_space<vmem>>, vector<1x32x4xbf16>
    %19 = vector.shape_cast %18 : vector<1x32x4xbf16> to vector<32x4xbf16>
    %c0_10 = arith.constant 0 : index
    %c0_11 = arith.constant 0 : index
    %c0_12 = arith.constant 0 : index
    %20 = vector.load %arg4[%c0_10, %c0_11, %c0_12] : memref<4x32x4xbf16, #tpu.memory_space<vmem>>, vector<1x32x4xbf16>
    %21 = vector.shape_cast %20 : vector<1x32x4xbf16> to vector<32x4xbf16>
    %cst_13 = arith.constant dense<0.000000e+00> : vector<256x256xf32>
    %22 = tpu.matmul %16, %15, %cst_13 {dimension_numbers = #tpu.dot_dimension_numbers<[0], [0], [1], [1], [0, 1, 1, 1], [], []>} : vector<32x256xbf16>, vector<32x256xbf16>, vector<256x256xf32> -> vector<256x256xf32>
    %cst_14 = arith.constant dense<0.000000e+00> : vector<4x256xf32>
    %23 = tpu.matmul %19, %15, %cst_14 {dimension_numbers = #tpu.dot_dimension_numbers<[0], [0], [1], [1], [0, 1, 1, 1], [], []>} : vector<32x4xbf16>, vector<32x256xbf16>, vector<4x256xf32> -> vector<4x256xf32>
    %cst_15 = arith.constant dense<0xFF800000> : vector<256xf32>
    %24 = vector.multi_reduction <maximumf>, %22, %cst_15 [0] : vector<256x256xf32> to vector<256xf32>
    %25 = vector.shape_cast %24 : vector<256xf32> to vector<1x256xf32>
    %cst_16 = arith.constant dense<0xFF800000> : vector<256xf32>
    %26 = vector.multi_reduction <maximumf>, %23, %cst_16 [0] : vector<4x256xf32> to vector<256xf32>
    %27 = vector.shape_cast %26 : vector<256xf32> to vector<1x256xf32>
    %28 = arith.maximumf %25, %27 : vector<1x256xf32>
    %29 = vector.broadcast %28 : vector<1x256xf32> to vector<256x256xf32>
    %30 = arith.subf %22, %29 : vector<256x256xf32>
    %31 = math.exp %30 : vector<256x256xf32>
    %32 = vector.broadcast %28 : vector<1x256xf32> to vector<4x256xf32>
    %33 = arith.subf %23, %32 : vector<4x256xf32>
    %34 = math.exp %33 : vector<4x256xf32>
    %cst_17 = arith.constant dense<0.000000e+00> : vector<256xf32>
    %35 = vector.multi_reduction <add>, %31, %cst_17 [0] : vector<256x256xf32> to vector<256xf32>
    %36 = vector.shape_cast %35 : vector<256xf32> to vector<1x256xf32>
    %cst_18 = arith.constant dense<0.000000e+00> : vector<256xf32>
    %37 = vector.multi_reduction <add>, %34, %cst_18 [0] : vector<4x256xf32> to vector<256xf32>
    %38 = vector.shape_cast %37 : vector<256xf32> to vector<1x256xf32>
    %39 = arith.addf %36, %38 : vector<1x256xf32>
    %40 = arith.truncf %31 : vector<256x256xf32> to vector<256x256xbf16>
    %cst_19 = arith.constant dense<0.000000e+00> : vector<32x256xf32>
    %41 = tpu.matmul %17, %40, %cst_19 {dimension_numbers = #tpu.dot_dimension_numbers<[1], [0], [0], [1], [0, 0, 1, 1], [], []>} : vector<32x256xbf16>, vector<256x256xbf16>, vector<32x256xf32> -> vector<32x256xf32>
    %42 = arith.truncf %34 : vector<4x256xf32> to vector<4x256xbf16>
    %cst_20 = arith.constant dense<0.000000e+00> : vector<32x256xf32>
    %43 = tpu.matmul %21, %42, %cst_20 {dimension_numbers = #tpu.dot_dimension_numbers<[1], [0], [0], [1], [0, 0, 1, 1], [], []>} : vector<32x4xbf16>, vector<4x256xbf16>, vector<32x256xf32> -> vector<32x256xf32>
    %44 = arith.addf %41, %43 : vector<32x256xf32>
    %45 = tpu.reciprocal %39 {approx = true} : vector<1x256xf32> -> vector<1x256xf32>
    %46 = vector.broadcast %45 : vector<1x256xf32> to vector<32x256xf32>
    %47 = arith.mulf %44, %46 : vector<32x256xf32>
    %c0_21 = arith.constant 0 : index
    %c0_22 = arith.constant 0 : index
    %c0_23 = arith.constant 0 : index
    %48 = vector.load %arg5[%c0_21, %c0_22, %c0_23] : memref<4x32x32xf32, #tpu.memory_space<vmem>>, vector<1x32x32xf32>
    %49 = vector.shape_cast %48 : vector<1x32x32xf32> to vector<32x32xf32>
    %cst_24 = arith.constant dense<0.000000e+00> : vector<32x256xf32>
    %50 = tpu.matmul %49, %47, %cst_24 {dimension_numbers = #tpu.dot_dimension_numbers<[1], [0], [0], [1], [0, 0, 1, 1], [], []>} : vector<32x32xf32>, vector<32x256xf32>, vector<32x256xf32> -> vector<32x256xf32>
    %51 = arith.addf %14, %50 : vector<32x256xf32>
    %52 = vector.extract_strided_slice %13 {offsets = [32, 0], sizes = [32, 256], strides = [1, 1]} : vector<384x256xbf16> to vector<32x256xbf16>
    %53 = vector.extract_strided_slice %13 {offsets = [160, 0], sizes = [32, 256], strides = [1, 1]} : vector<384x256xbf16> to vector<32x256xbf16>
    %54 = vector.extract_strided_slice %13 {offsets = [288, 0], sizes = [32, 256], strides = [1, 1]} : vector<384x256xbf16> to vector<32x256xbf16>
    %c1 = arith.constant 1 : index
    %c0_25 = arith.constant 0 : index
    %c0_26 = arith.constant 0 : index
    %55 = vector.load %arg3[%c1, %c0_25, %c0_26] : memref<4x32x4xbf16, #tpu.memory_space<vmem>>, vector<1x32x4xbf16>
    %56 = vector.shape_cast %55 : vector<1x32x4xbf16> to vector<32x4xbf16>
    %c1_27 = arith.constant 1 : index
    %c0_28 = arith.constant 0 : index
    %c0_29 = arith.constant 0 : index
    %57 = vector.load %arg4[%c1_27, %c0_28, %c0_29] : memref<4x32x4xbf16, #tpu.memory_space<vmem>>, vector<1x32x4xbf16>
    %58 = vector.shape_cast %57 : vector<1x32x4xbf16> to vector<32x4xbf16>
    %cst_30 = arith.constant dense<0.000000e+00> : vector<256x256xf32>
    %59 = tpu.matmul %53, %52, %cst_30 {dimension_numbers = #tpu.dot_dimension_numbers<[0], [0], [1], [1], [0, 1, 1, 1], [], []>} : vector<32x256xbf16>, vector<32x256xbf16>, vector<256x256xf32> -> vector<256x256xf32>
    %cst_31 = arith.constant dense<0.000000e+00> : vector<4x256xf32>
    %60 = tpu.matmul %56, %52, %cst_31 {dimension_numbers = #tpu.dot_dimension_numbers<[0], [0], [1], [1], [0, 1, 1, 1], [], []>} : vector<32x4xbf16>, vector<32x256xbf16>, vector<4x256xf32> -> vector<4x256xf32>
    %cst_32 = arith.constant dense<0xFF800000> : vector<256xf32>
    %61 = vector.multi_reduction <maximumf>, %59, %cst_32 [0] : vector<256x256xf32> to vector<256xf32>
    %62 = vector.shape_cast %61 : vector<256xf32> to vector<1x256xf32>
    %cst_33 = arith.constant dense<0xFF800000> : vector<256xf32>
    %63 = vector.multi_reduction <maximumf>, %60, %cst_33 [0] : vector<4x256xf32> to vector<256xf32>
    %64 = vector.shape_cast %63 : vector<256xf32> to vector<1x256xf32>
    %65 = arith.maximumf %62, %64 : vector<1x256xf32>
    %66 = vector.broadcast %65 : vector<1x256xf32> to vector<256x256xf32>
    %67 = arith.subf %59, %66 : vector<256x256xf32>
    %68 = math.exp %67 : vector<256x256xf32>
    %69 = vector.broadcast %65 : vector<1x256xf32> to vector<4x256xf32>
    %70 = arith.subf %60, %69 : vector<4x256xf32>
    %71 = math.exp %70 : vector<4x256xf32>
    %cst_34 = arith.constant dense<0.000000e+00> : vector<256xf32>
    %72 = vector.multi_reduction <add>, %68, %cst_34 [0] : vector<256x256xf32> to vector<256xf32>
    %73 = vector.shape_cast %72 : vector<256xf32> to vector<1x256xf32>
    %cst_35 = arith.constant dense<0.000000e+00> : vector<256xf32>
    %74 = vector.multi_reduction <add>, %71, %cst_35 [0] : vector<4x256xf32> to vector<256xf32>
    %75 = vector.shape_cast %74 : vector<256xf32> to vector<1x256xf32>
    %76 = arith.addf %73, %75 : vector<1x256xf32>
    %77 = arith.truncf %68 : vector<256x256xf32> to vector<256x256xbf16>
    %cst_36 = arith.constant dense<0.000000e+00> : vector<32x256xf32>
    %78 = tpu.matmul %54, %77, %cst_36 {dimension_numbers = #tpu.dot_dimension_numbers<[1], [0], [0], [1], [0, 0, 1, 1], [], []>} : vector<32x256xbf16>, vector<256x256xbf16>, vector<32x256xf32> -> vector<32x256xf32>
    %79 = arith.truncf %71 : vector<4x256xf32> to vector<4x256xbf16>
    %cst_37 = arith.constant dense<0.000000e+00> : vector<32x256xf32>
    %80 = tpu.matmul %58, %79, %cst_37 {dimension_numbers = #tpu.dot_dimension_numbers<[1], [0], [0], [1], [0, 0, 1, 1], [], []>} : vector<32x4xbf16>, vector<4x256xbf16>, vector<32x256xf32> -> vector<32x256xf32>
    %81 = arith.addf %78, %80 : vector<32x256xf32>
    %82 = tpu.reciprocal %76 {approx = true} : vector<1x256xf32> -> vector<1x256xf32>
    %83 = vector.broadcast %82 : vector<1x256xf32> to vector<32x256xf32>
    %84 = arith.mulf %81, %83 : vector<32x256xf32>
    %c1_38 = arith.constant 1 : index
    %c0_39 = arith.constant 0 : index
    %c0_40 = arith.constant 0 : index
    %85 = vector.load %arg5[%c1_38, %c0_39, %c0_40] : memref<4x32x32xf32, #tpu.memory_space<vmem>>, vector<1x32x32xf32>
    %86 = vector.shape_cast %85 : vector<1x32x32xf32> to vector<32x32xf32>
    %cst_41 = arith.constant dense<0.000000e+00> : vector<32x256xf32>
    %87 = tpu.matmul %86, %84, %cst_41 {dimension_numbers = #tpu.dot_dimension_numbers<[1], [0], [0], [1], [0, 0, 1, 1], [], []>} : vector<32x32xf32>, vector<32x256xf32>, vector<32x256xf32> -> vector<32x256xf32>
    %88 = arith.addf %51, %87 : vector<32x256xf32>
    %89 = vector.extract_strided_slice %13 {offsets = [64, 0], sizes = [32, 256], strides = [1, 1]} : vector<384x256xbf16> to vector<32x256xbf16>
    %90 = vector.extract_strided_slice %13 {offsets = [192, 0], sizes = [32, 256], strides = [1, 1]} : vector<384x256xbf16> to vector<32x256xbf16>
    %91 = vector.extract_strided_slice %13 {offsets = [320, 0], sizes = [32, 256], strides = [1, 1]} : vector<384x256xbf16> to vector<32x256xbf16>
    %c2 = arith.constant 2 : index
    %c0_42 = arith.constant 0 : index
    %c0_43 = arith.constant 0 : index
    %92 = vector.load %arg3[%c2, %c0_42, %c0_43] : memref<4x32x4xbf16, #tpu.memory_space<vmem>>, vector<1x32x4xbf16>
    %93 = vector.shape_cast %92 : vector<1x32x4xbf16> to vector<32x4xbf16>
    %c2_44 = arith.constant 2 : index
    %c0_45 = arith.constant 0 : index
    %c0_46 = arith.constant 0 : index
    %94 = vector.load %arg4[%c2_44, %c0_45, %c0_46] : memref<4x32x4xbf16, #tpu.memory_space<vmem>>, vector<1x32x4xbf16>
    %95 = vector.shape_cast %94 : vector<1x32x4xbf16> to vector<32x4xbf16>
    %cst_47 = arith.constant dense<0.000000e+00> : vector<256x256xf32>
    %96 = tpu.matmul %90, %89, %cst_47 {dimension_numbers = #tpu.dot_dimension_numbers<[0], [0], [1], [1], [0, 1, 1, 1], [], []>} : vector<32x256xbf16>, vector<32x256xbf16>, vector<256x256xf32> -> vector<256x256xf32>
    %cst_48 = arith.constant dense<0.000000e+00> : vector<4x256xf32>
    %97 = tpu.matmul %93, %89, %cst_48 {dimension_numbers = #tpu.dot_dimension_numbers<[0], [0], [1], [1], [0, 1, 1, 1], [], []>} : vector<32x4xbf16>, vector<32x256xbf16>, vector<4x256xf32> -> vector<4x256xf32>
    %cst_49 = arith.constant dense<0xFF800000> : vector<256xf32>
    %98 = vector.multi_reduction <maximumf>, %96, %cst_49 [0] : vector<256x256xf32> to vector<256xf32>
    %99 = vector.shape_cast %98 : vector<256xf32> to vector<1x256xf32>
    %cst_50 = arith.constant dense<0xFF800000> : vector<256xf32>
    %100 = vector.multi_reduction <maximumf>, %97, %cst_50 [0] : vector<4x256xf32> to vector<256xf32>
    %101 = vector.shape_cast %100 : vector<256xf32> to vector<1x256xf32>
    %102 = arith.maximumf %99, %101 : vector<1x256xf32>
    %103 = vector.broadcast %102 : vector<1x256xf32> to vector<256x256xf32>
    %104 = arith.subf %96, %103 : vector<256x256xf32>
    %105 = math.exp %104 : vector<256x256xf32>
    %106 = vector.broadcast %102 : vector<1x256xf32> to vector<4x256xf32>
    %107 = arith.subf %97, %106 : vector<4x256xf32>
    %108 = math.exp %107 : vector<4x256xf32>
    %cst_51 = arith.constant dense<0.000000e+00> : vector<256xf32>
    %109 = vector.multi_reduction <add>, %105, %cst_51 [0] : vector<256x256xf32> to vector<256xf32>
    %110 = vector.shape_cast %109 : vector<256xf32> to vector<1x256xf32>
    %cst_52 = arith.constant dense<0.000000e+00> : vector<256xf32>
    %111 = vector.multi_reduction <add>, %108, %cst_52 [0] : vector<4x256xf32> to vector<256xf32>
    %112 = vector.shape_cast %111 : vector<256xf32> to vector<1x256xf32>
    %113 = arith.addf %110, %112 : vector<1x256xf32>
    %114 = arith.truncf %105 : vector<256x256xf32> to vector<256x256xbf16>
    %cst_53 = arith.constant dense<0.000000e+00> : vector<32x256xf32>
    %115 = tpu.matmul %91, %114, %cst_53 {dimension_numbers = #tpu.dot_dimension_numbers<[1], [0], [0], [1], [0, 0, 1, 1], [], []>} : vector<32x256xbf16>, vector<256x256xbf16>, vector<32x256xf32> -> vector<32x256xf32>
    %116 = arith.truncf %108 : vector<4x256xf32> to vector<4x256xbf16>
    %cst_54 = arith.constant dense<0.000000e+00> : vector<32x256xf32>
    %117 = tpu.matmul %95, %116, %cst_54 {dimension_numbers = #tpu.dot_dimension_numbers<[1], [0], [0], [1], [0, 0, 1, 1], [], []>} : vector<32x4xbf16>, vector<4x256xbf16>, vector<32x256xf32> -> vector<32x256xf32>
    %118 = arith.addf %115, %117 : vector<32x256xf32>
    %119 = tpu.reciprocal %113 {approx = true} : vector<1x256xf32> -> vector<1x256xf32>
    %120 = vector.broadcast %119 : vector<1x256xf32> to vector<32x256xf32>
    %121 = arith.mulf %118, %120 : vector<32x256xf32>
    %c2_55 = arith.constant 2 : index
    %c0_56 = arith.constant 0 : index
    %c0_57 = arith.constant 0 : index
    %122 = vector.load %arg5[%c2_55, %c0_56, %c0_57] : memref<4x32x32xf32, #tpu.memory_space<vmem>>, vector<1x32x32xf32>
    %123 = vector.shape_cast %122 : vector<1x32x32xf32> to vector<32x32xf32>
    %cst_58 = arith.constant dense<0.000000e+00> : vector<32x256xf32>
    %124 = tpu.matmul %123, %121, %cst_58 {dimension_numbers = #tpu.dot_dimension_numbers<[1], [0], [0], [1], [0, 0, 1, 1], [], []>} : vector<32x32xf32>, vector<32x256xf32>, vector<32x256xf32> -> vector<32x256xf32>
    %125 = arith.addf %88, %124 : vector<32x256xf32>
    %126 = vector.extract_strided_slice %13 {offsets = [96, 0], sizes = [32, 256], strides = [1, 1]} : vector<384x256xbf16> to vector<32x256xbf16>
    %127 = vector.extract_strided_slice %13 {offsets = [224, 0], sizes = [32, 256], strides = [1, 1]} : vector<384x256xbf16> to vector<32x256xbf16>
    %128 = vector.extract_strided_slice %13 {offsets = [352, 0], sizes = [32, 256], strides = [1, 1]} : vector<384x256xbf16> to vector<32x256xbf16>
    %c3 = arith.constant 3 : index
    %c0_59 = arith.constant 0 : index
    %c0_60 = arith.constant 0 : index
    %129 = vector.load %arg3[%c3, %c0_59, %c0_60] : memref<4x32x4xbf16, #tpu.memory_space<vmem>>, vector<1x32x4xbf16>
    %130 = vector.shape_cast %129 : vector<1x32x4xbf16> to vector<32x4xbf16>
    %c3_61 = arith.constant 3 : index
    %c0_62 = arith.constant 0 : index
    %c0_63 = arith.constant 0 : index
    %131 = vector.load %arg4[%c3_61, %c0_62, %c0_63] : memref<4x32x4xbf16, #tpu.memory_space<vmem>>, vector<1x32x4xbf16>
    %132 = vector.shape_cast %131 : vector<1x32x4xbf16> to vector<32x4xbf16>
    %cst_64 = arith.constant dense<0.000000e+00> : vector<256x256xf32>
    %133 = tpu.matmul %127, %126, %cst_64 {dimension_numbers = #tpu.dot_dimension_numbers<[0], [0], [1], [1], [0, 1, 1, 1], [], []>} : vector<32x256xbf16>, vector<32x256xbf16>, vector<256x256xf32> -> vector<256x256xf32>
    %cst_65 = arith.constant dense<0.000000e+00> : vector<4x256xf32>
    %134 = tpu.matmul %130, %126, %cst_65 {dimension_numbers = #tpu.dot_dimension_numbers<[0], [0], [1], [1], [0, 1, 1, 1], [], []>} : vector<32x4xbf16>, vector<32x256xbf16>, vector<4x256xf32> -> vector<4x256xf32>
    %cst_66 = arith.constant dense<0xFF800000> : vector<256xf32>
    %135 = vector.multi_reduction <maximumf>, %133, %cst_66 [0] : vector<256x256xf32> to vector<256xf32>
    %136 = vector.shape_cast %135 : vector<256xf32> to vector<1x256xf32>
    %cst_67 = arith.constant dense<0xFF800000> : vector<256xf32>
    %137 = vector.multi_reduction <maximumf>, %134, %cst_67 [0] : vector<4x256xf32> to vector<256xf32>
    %138 = vector.shape_cast %137 : vector<256xf32> to vector<1x256xf32>
    %139 = arith.maximumf %136, %138 : vector<1x256xf32>
    %140 = vector.broadcast %139 : vector<1x256xf32> to vector<256x256xf32>
    %141 = arith.subf %133, %140 : vector<256x256xf32>
    %142 = math.exp %141 : vector<256x256xf32>
    %143 = vector.broadcast %139 : vector<1x256xf32> to vector<4x256xf32>
    %144 = arith.subf %134, %143 : vector<4x256xf32>
    %145 = math.exp %144 : vector<4x256xf32>
    %cst_68 = arith.constant dense<0.000000e+00> : vector<256xf32>
    %146 = vector.multi_reduction <add>, %142, %cst_68 [0] : vector<256x256xf32> to vector<256xf32>
    %147 = vector.shape_cast %146 : vector<256xf32> to vector<1x256xf32>
    %cst_69 = arith.constant dense<0.000000e+00> : vector<256xf32>
    %148 = vector.multi_reduction <add>, %145, %cst_69 [0] : vector<4x256xf32> to vector<256xf32>
    %149 = vector.shape_cast %148 : vector<256xf32> to vector<1x256xf32>
    %150 = arith.addf %147, %149 : vector<1x256xf32>
    %151 = arith.truncf %142 : vector<256x256xf32> to vector<256x256xbf16>
    %cst_70 = arith.constant dense<0.000000e+00> : vector<32x256xf32>
    %152 = tpu.matmul %128, %151, %cst_70 {dimension_numbers = #tpu.dot_dimension_numbers<[1], [0], [0], [1], [0, 0, 1, 1], [], []>} : vector<32x256xbf16>, vector<256x256xbf16>, vector<32x256xf32> -> vector<32x256xf32>
    %153 = arith.truncf %145 : vector<4x256xf32> to vector<4x256xbf16>
    %cst_71 = arith.constant dense<0.000000e+00> : vector<32x256xf32>
    %154 = tpu.matmul %132, %153, %cst_71 {dimension_numbers = #tpu.dot_dimension_numbers<[1], [0], [0], [1], [0, 0, 1, 1], [], []>} : vector<32x4xbf16>, vector<4x256xbf16>, vector<32x256xf32> -> vector<32x256xf32>
    %155 = arith.addf %152, %154 : vector<32x256xf32>
    %156 = tpu.reciprocal %150 {approx = true} : vector<1x256xf32> -> vector<1x256xf32>
    %157 = vector.broadcast %156 : vector<1x256xf32> to vector<32x256xf32>
    %158 = arith.mulf %155, %157 : vector<32x256xf32>
    %c3_72 = arith.constant 3 : index
    %c0_73 = arith.constant 0 : index
    %c0_74 = arith.constant 0 : index
    %159 = vector.load %arg5[%c3_72, %c0_73, %c0_74] : memref<4x32x32xf32, #tpu.memory_space<vmem>>, vector<1x32x32xf32>
    %160 = vector.shape_cast %159 : vector<1x32x32xf32> to vector<32x32xf32>
    %cst_75 = arith.constant dense<0.000000e+00> : vector<32x256xf32>
    %161 = tpu.matmul %160, %158, %cst_75 {dimension_numbers = #tpu.dot_dimension_numbers<[1], [0], [0], [1], [0, 0, 1, 1], [], []>} : vector<32x32xf32>, vector<32x256xf32>, vector<32x256xf32> -> vector<32x256xf32>
    %162 = arith.addf %125, %161 : vector<32x256xf32>
    %c0_76 = arith.constant 0 : index
    %c0_77 = arith.constant 0 : index
    %163 = vector.load %arg6[%c0_76, %c0_77] : memref<32x1xf32, #tpu.memory_space<vmem>>, vector<32x1xf32>
    %164 = vector.broadcast %163 : vector<32x1xf32> to vector<32x256xf32>
    %165 = arith.addf %162, %164 : vector<32x256xf32>
    %c0_78 = arith.constant 0 : index
    %c0_79 = arith.constant 0 : index
    %c0_80 = arith.constant 0 : index
    %166 = vector.load %arg7[%c0_78, %c0_79, %c0_80] : memref<1x32x256xf32, #tpu.memory_space<vmem>>, vector<1x32x256xf32>
    %167 = vector.shape_cast %166 : vector<1x32x256xf32> to vector<32x256xf32>
    %168 = vector.shape_cast %165 : vector<32x256xf32> to vector<1x32x256xf32>
    tpu.vector_store %arg7[%c0_78, %c0_79, %c0_80], %168 {strides = array<i32>} : memref<1x32x256xf32, #tpu.memory_space<vmem>>, vector<1x32x256xf32>,
    return
  }
  func.func @transform_0(%arg0: i32) -> (i32, i32, i32) {
    %c0_i32 = arith.constant 0 : i32
    %c0_i32_0 = arith.constant 0 : i32
    %c0_i32_1 = arith.constant 0 : i32
    return %arg0, %c0_i32, %c0_i32_0 : i32, i32, i32
  }
  func.func @transform_1(%arg0: i32) -> (i32, i32) {
    %c0_i32 = arith.constant 0 : i32
    %c0_i32_0 = arith.constant 0 : i32
    %c0_i32_1 = arith.constant 0 : i32
    return %c0_i32, %c0_i32_0 : i32, i32
  }
  func.func @transform_2(%arg0: i32) -> (i32, i32, i32) {
    %c0_i32 = arith.constant 0 : i32
    %c0_i32_0 = arith.constant 0 : i32
    %c0_i32_1 = arith.constant 0 : i32
    %c0_i32_2 = arith.constant 0 : i32
    return %c0_i32, %c0_i32_0, %c0_i32_1 : i32, i32, i32
  }
  func.func @transform_3(%arg0: i32) -> (i32, i32, i32) {
    %c0_i32 = arith.constant 0 : i32
    %c0_i32_0 = arith.constant 0 : i32
    %c0_i32_1 = arith.constant 0 : i32
    %c0_i32_2 = arith.constant 0 : i32
    return %c0_i32, %c0_i32_0, %c0_i32_1 : i32, i32, i32
  }
  func.func @transform_4(%arg0: i32) -> (i32, i32, i32) {
    %c0_i32 = arith.constant 0 : i32
    %c0_i32_0 = arith.constant 0 : i32
    %c0_i32_1 = arith.constant 0 : i32
    %c0_i32_2 = arith.constant 0 : i32
    return %c0_i32, %c0_i32_0, %c0_i32_1 : i32, i32, i32
  }
  func.func @transform_5(%arg0: i32) -> (i32, i32) {
    %c0_i32 = arith.constant 0 : i32
    %c0_i32_0 = arith.constant 0 : i32
    %c0_i32_1 = arith.constant 0 : i32
    return %c0_i32, %c0_i32_0 : i32, i32
  }
  func.func @transform_6(%arg0: i32) -> (i32, i32, i32) {
    %c0_i32 = arith.constant 0 : i32
    %c0_i32_0 = arith.constant 0 : i32
    %c0_i32_1 = arith.constant 0 : i32
    return %arg0, %c0_i32, %c0_i32_0 : i32, i32, i32
  }
}

</mosaic_0001>

<llo_original>
// kernel: tpu_custom_call.1
$region0: #{tpu_custom_call.1}
  #allocation0 [shape = 'u32[]', space=smem, size = 0x4, offset = 0x4, fixed_abs, tag = 'smem constant byte address 0x4 - core index']
  #allocation1 [shape = 'u32[144,128]{1,0:T(1,128)}', space=vmem, size = 0x12000, scoped, tag = 'internal scratch']
  %s0 = inlined_call_operand.vmem [shape: f32[2,32,256], index: 0, kind: input, shape index: {}]
  %s1 = inlined_call_operand.vmem [shape: bf16[384,32], index: 1, kind: input, shape index: {}]
  %s2 = inlined_call_operand.vmem [shape: bf16[4,32,4], index: 2, kind: input, shape index: {}]
  %s3 = inlined_call_operand.vmem [shape: bf16[4,32,4], index: 3, kind: input, shape index: {}]
  %s4 = inlined_call_operand.vmem [shape: f32[4,32,32], index: 4, kind: input, shape index: {}]
  %s5 = inlined_call_operand.vmem [shape: f32[32,1], index: 5, kind: input, shape index: {}]
  %s6 = inlined_call_operand.hbm [shape: f32[2,32,256], index: 6, kind: output, shape index: {}]
  %s7 = sld [smem:[#allocation0]]
  $region57: #{tpu_custom_call.1} parent=0
    _
  %s9 = ssub.s32 1, %s7
  %s10 = scalar_select 0, %s9, %s7
  $region1: #{tpu_custom_call.1} parent=0
    #allocation2 [shape = 'u8[65536]{0}', space=vmem, size = 0x10000, scoped, tag = 'output window, operand 0']
    #allocation3 [shape = 's32[2]{0}', space=sflag, size = 0x8, scoped, tag = 'scoped memory for tpu_custom_call.1']
    %11 = vsyncpa [#allocation3], 0
    %s12 = scalar_lea.sflag [#allocation3], 1
    %13 = vsyncpa %s12, 0
    loop: start=0, step=1, limit=4
    $region2: #{tpu_custom_call.1} parent=1 // loop_pre_header
      _
    $region3: #{tpu_custom_call.1} parent=1 // loop_header
      %s15 = sphi 0, %s19
      %p16 = scmp.ge.s32.totalorder %s15, 4
      %s25 = sphi 0, %s27
      %s28 = sphi 0, %s25
      %s29 = sphi 0, %s28
      %s45 = sphi 0, %s29
      %s49 = sphi 0, %s49
      %s51 = sphi 0, %s49
      %s52 = sphi 0, %s51
      %s66 = sphi 0, %s52
      %s70 = sphi 0, %s70
      %s72 = sphi 0, %s70
      %s73 = sphi 0, %s72
      %s87 = sphi 0, %s73
      %s91 = sphi 0, %s91
      %s93 = sphi 0, %s91
      %s94 = sphi 0, %s93
      %s108 = sphi 0, %s94
      %s112 = sphi 0, %s112
      %s114 = sphi 0, %s112
      %s115 = sphi 0, %s114
      %s129 = sphi 0, %s115
      %s133 = sphi 0, %s133
      %s135 = sphi 0, %s133
      %s136 = sphi 0, %s135
      %s150 = sphi 0, %s136
      %s156 = sphi 0, %s158
      %s159 = sphi 0, %s156
      %s160 = sphi 0, %s159
      %s176 = sphi 0, %s160
    $region4: #{tpu_custom_call.1} parent=1 // loop_header_branch
      %18 = sbr.rel (%p16) target = $region8
    $region5: #{tpu_custom_call.1} parent=1 // loop_body
      %s20 = ssub.s32 %s15, 1
      %s21 = ssub.s32 %s15, 2
      %s22 = sadd.s32 %s15, 1
      %s23 = ssub.s32 %s15, %s22
      %p24 = scmp.eq.s32.totalorder %s23, 0
      %s26 = sadd.s32 %s25, 1
      %s27 = scalar_select %p24, %s25, %s26
      %p30 = pneg %p24
      %p31 = scmp.eq.s32.totalorder %s15, 1
      %p32 = por %p30, %p31
      %p33 = scmp.ne.s32.totalorder %s25, %s28
      %p34 = scmp.eq.s32.totalorder %s15, 0
      %p35 = por %p33, %p34
      %p36 = scmp.ne.s32.totalorder %s25, %s28
      %p37 = scmp.eq.s32.totalorder %s20, 1
      %p38 = por %p36, %p37
      %p39 = scmp.ne.s32.totalorder %s28, %s29
      %p40 = scmp.eq.s32.totalorder %s20, 0
      %p41 = por %p39, %p40
      %p42 = scmp.ne.s32.totalorder %s28, %s29
      %p43 = scmp.eq.s32.totalorder %s21, 1
      %p44 = por %p42, %p43
      %p46 = scmp.ne.s32.totalorder %s29, %s45
      %p47 = scmp.eq.s32.totalorder %s21, 0
      %p48 = por %p46, %p47
      %s50 = sadd.s32 %s49, 1
      %p53 = scmp.eq.s32.totalorder %s15, 1
      %p54 = scmp.ne.s32.totalorder %s49, %s51
      %p55 = scmp.eq.s32.totalorder %s15, 0
      %p56 = por %p54, %p55
      %p57 = scmp.ne.s32.totalorder %s49, %s51
      %p58 = scmp.eq.s32.totalorder %s20, 1
      %p59 = por %p57, %p58
      %p60 = scmp.ne.s32.totalorder %s51, %s52
      %p61 = scmp.eq.s32.totalorder %s20, 0
      %p62 = por %p60, %p61
      %p63 = scmp.ne.s32.totalorder %s51, %s52
      %p64 = scmp.eq.s32.totalorder %s21, 1
      %p65 = por %p63, %p64
      %p67 = scmp.ne.s32.totalorder %s52, %s66
      %p68 = scmp.eq.s32.totalorder %s21, 0
      %p69 = por %p67, %p68
      %s71 = sadd.s32 %s70, 1
      %p74 = scmp.eq.s32.totalorder %s15, 1
      %p75 = scmp.ne.s32.totalorder %s70, %s72
      %p76 = scmp.eq.s32.totalorder %s15, 0
      %p77 = por %p75, %p76
      %p78 = scmp.ne.s32.totalorder %s70, %s72
      %p79 = scmp.eq.s32.totalorder %s20, 1
      %p80 = por %p78, %p79
      %p81 = scmp.ne.s32.totalorder %s72, %s73
      %p82 = scmp.eq.s32.totalorder %s20, 0
      %p83 = por %p81, %p82
      %p84 = scmp.ne.s32.totalorder %s72, %s73
      %p85 = scmp.eq.s32.totalorder %s21, 1
      %p86 = por %p84, %p85
      %p88 = scmp.ne.s32.totalorder %s73, %s87
      %p89 = scmp.eq.s32.totalorder %s21, 0
      %p90 = por %p88, %p89
      %s92 = sadd.s32 %s91, 1
      %p95 = scmp.eq.s32.totalorder %s15, 1
      %p96 = scmp.ne.s32.totalorder %s91, %s93
      %p97 = scmp.eq.s32.totalorder %s15, 0
      %p98 = por %p96, %p97
      %p99 = scmp.ne.s32.totalorder %s91, %s93
      %p100 = scmp.eq.s32.totalorder %s20, 1
      %p101 = por %p99, %p100
      %p102 = scmp.ne.s32.totalorder %s93, %s94
      %p103 = scmp.eq.s32.totalorder %s20, 0
      %p104 = por %p102, %p103
      %p105 = scmp.ne.s32.totalorder %s93, %s94
      %p106 = scmp.eq.s32.totalorder %s21, 1
      %p107 = por %p105, %p106
      %p109 = scmp.ne.s32.totalorder %s94, %s108
      %p110 = scmp.eq.s32.totalorder %s21, 0
      %p111 = por %p109, %p110
      %s113 = sadd.s32 %s112, 1
      %p116 = scmp.eq.s32.totalorder %s15, 1
      %p117 = scmp.ne.s32.totalorder %s112, %s114
      %p118 = scmp.eq.s32.totalorder %s15, 0
      %p119 = por %p117, %p118
      %p120 = scmp.ne.s32.totalorder %s112, %s114
      %p121 = scmp.eq.s32.totalorder %s20, 1
      %p122 = por %p120, %p121
      %p123 = scmp.ne.s32.totalorder %s114, %s115
      %p124 = scmp.eq.s32.totalorder %s20, 0
      %p125 = por %p123, %p124
      %p126 = scmp.ne.s32.totalorder %s114, %s115
      %p127 = scmp.eq.s32.totalorder %s21, 1
      %p128 = por %p126, %p127
      %p130 = scmp.ne.s32.totalorder %s115, %s129
      %p131 = scmp.eq.s32.totalorder %s21, 0
      %p132 = por %p130, %p131
      %s134 = sadd.s32 %s133, 1
      %p137 = scmp.eq.s32.totalorder %s15, 1
      %p138 = scmp.ne.s32.totalorder %s133, %s135
      %p139 = scmp.eq.s32.totalorder %s15, 0
      %p140 = por %p138, %p139
      %p141 = scmp.ne.s32.totalorder %s133, %s135
      %p142 = scmp.eq.s32.totalorder %s20, 1
      %p143 = por %p141, %p142
      %p144 = scmp.ne.s32.totalorder %s135, %s136
      %p145 = scmp.eq.s32.totalorder %s20, 0
      %p146 = por %p144, %p145
      %p147 = scmp.ne.s32.totalorder %s135, %s136
      %p148 = scmp.eq.s32.totalorder %s21, 1
      %p149 = por %p147, %p148
      %p151 = scmp.ne.s32.totalorder %s136, %s150
      %p152 = scmp.eq.s32.totalorder %s21, 0
      %p153 = por %p151, %p152
      %s154 = ssub.s32 %s15, %s22
      %p155 = scmp.eq.s32.totalorder %s154, 0
      %s157 = sadd.s32 %s156, 1
      %s158 = scalar_select %p155, %s156, %s157
      %p161 = pneg %p155
      %p162 = scmp.eq.s32.totalorder %s15, 1
      %p163 = por %p161, %p162
      %p164 = scmp.ne.s32.totalorder %s156, %s159
      %p165 = scmp.eq.s32.totalorder %s15, 0
      %p166 = por %p164, %p165
      %p167 = scmp.ne.s32.totalorder %s156, %s159
      %p168 = scmp.eq.s32.totalorder %s20, 1
      %p169 = por %p167, %p168
      %p170 = scmp.ne.s32.totalorder %s159, %s160
      %p171 = scmp.eq.s32.totalorder %s20, 0
      %p172 = por %p170, %p171
      %p173 = scmp.ne.s32.totalorder %s159, %s160
      %p174 = scmp.eq.s32.totalorder %s21, 1
      %p175 = por %p173, %p174
      %p177 = scmp.ne.s32.totalorder %s160, %s176
      %p178 = scmp.eq.s32.totalorder %s21, 0
      %p179 = por %p177, %p178
      %p180 = scmp.le.s32.totalorder 1, %s15
      %p181 = scmp.lt.s32.totalorder %s15, 3
      %p182 = pnand %p180, %p181
      %p183 = pneg %p182
      // Predicated region
      $region9: #{tpu_custom_call.1} parent=5 // pred_check
        _
      $region10: #{tpu_custom_call.1} parent=5 // pred_check_branch
        %185 = sbr.rel (%p182) target = $region12
      $region11: #{tpu_custom_call.1} parent=5 // pred_region
        %s186 = ssub.s32 %s15, 1
        // Predicated region
        $region13: #{tpu_custom_call.1} parent=11 // pred_check
          %p187 = pneg %p62
        $region14: #{tpu_custom_call.1} parent=11 // pred_check_branch
          %189 = sbr.rel (%p187) target = $region16
        $region15: #{tpu_custom_call.1} parent=11 // pred_region
          _
        $region16: #{tpu_custom_call.1} parent=11 // pred_fallthru
          _
        // Predicated region
        $region17: #{tpu_custom_call.1} parent=11 // pred_check
          %p190 = pneg %p83
        $region18: #{tpu_custom_call.1} parent=11 // pred_check_branch
          %192 = sbr.rel (%p190) target = $region20
        $region19: #{tpu_custom_call.1} parent=11 // pred_region
          _
        $region20: #{tpu_custom_call.1} parent=11 // pred_fallthru
          _
        // Predicated region
        $region21: #{tpu_custom_call.1} parent=11 // pred_check
          %p193 = pneg %p104
        $region22: #{tpu_custom_call.1} parent=11 // pred_check_branch
          %195 = sbr.rel (%p193) target = $region24
        $region23: #{tpu_custom_call.1} parent=11 // pred_region
          _
        $region24: #{tpu_custom_call.1} parent=11 // pred_fallthru
          _
        // Predicated region
        $region25: #{tpu_custom_call.1} parent=11 // pred_check
          %p196 = pneg %p125
        $region26: #{tpu_custom_call.1} parent=11 // pred_check_branch
          %198 = sbr.rel (%p196) target = $region28
        $region27: #{tpu_custom_call.1} parent=11 // pred_region
          _
        $region28: #{tpu_custom_call.1} parent=11 // pred_fallthru
          _
        // Predicated region
        $region29: #{tpu_custom_call.1} parent=11 // pred_check
          %p199 = pneg %p146
        $region30: #{tpu_custom_call.1} parent=11 // pred_check_branch
          %201 = sbr.rel (%p199) target = $region32
        $region31: #{tpu_custom_call.1} parent=11 // pred_region
          _
        $region32: #{tpu_custom_call.1} parent=11 // pred_fallthru
          _
      $region12: #{tpu_custom_call.1} parent=5 // pred_fallthru
        _
      %p202 = scmp.lt.s32.totalorder %s15, 2
      // Predicated region
      $region33: #{tpu_custom_call.1} parent=5 // pred_check
        %p203 = pneg %p202
      $region34: #{tpu_custom_call.1} parent=5 // pred_check_branch
        %205 = sbr.rel (%p203) target = $region36
      $region35: #{tpu_custom_call.1} parent=5 // pred_region
        // Predicated region
        $region37: #{tpu_custom_call.1} parent=35 // pred_check
          %p206 = pneg %p35
        $region38: #{tpu_custom_call.1} parent=35 // pred_check_branch
          %208 = sbr.rel (%p206) target = $region40
        $region39: #{tpu_custom_call.1} parent=35 // pred_region
          %p209 = scmp.lt.s32.totalorder %s15, 1
          %s210 = scalar_select %p209, %s15, 1
          %s211 = smul.addr %s210, 8
          %s212 = smul.addr %s211, 8
          %s213 = scalar_lea.vmem %s0, %s212
        $region40: #{tpu_custom_call.1} parent=35 // pred_fallthru
          _
      $region36: #{tpu_custom_call.1} parent=5 // pred_fallthru
        _
      %p214 = scmp.le.s32.totalorder 1, %s15
      %p215 = scmp.lt.s32.totalorder %s15, 3
      %p216 = pnand %p214, %p215
      %p217 = pneg %p216
      // Predicated region
      $region41: #{tpu_custom_call.1} parent=5 // pred_check
        _
      $region42: #{tpu_custom_call.1} parent=5 // pred_check_branch
        %219 = sbr.rel (%p216) target = $region44
      $region43: #{tpu_custom_call.1} parent=5 // pred_region
        %s220 = ssub.s32 %s15, 1
        %p221 = scmp.lt.s32.totalorder %s20, 1
        %s222 = scalar_select %p221, %s20, 1
        %s223 = smul.addr %s222, 8
        %s224 = smul.addr %s223, 8
        %s225 = scalar_lea.vmem %s0, %s224
        %p226 = pneg %p41
        %p227 = pneg %p38
        %p228 = pneg %p62
        %p229 = pneg %p59
        %p230 = pneg %p83
        %p231 = pneg %p80
        %p232 = pneg %p104
        %p233 = pneg %p101
        %p234 = pneg %p125
        %p235 = pneg %p122
        %p236 = pneg %p146
        %p237 = pneg %p143
        %p238 = pneg %p172
        %p239 = pneg %p169
        %s240 = sand.u32 %s159, 1
        %s241 = scalar_lea.sflag [#allocation3], %s240
        %s242 = sand.u32 %s159, 1
        %s243 = smul.addr %s242, 64
        %s244 = scalar_lea.vmem [#allocation2], %s243
        %p245 = scmp.lt.s32.totalorder %s20, 1
        %s246 = scalar_select %p245, %s20, 1
        %s247 = smul.addr %s246, 8
        %s248 = smul.addr %s247, 8
        %s249 = scalar_lea.vmem %s0, %s248
        %v251 = vld [vmem:[%s249] sm:$0xff]
        %v252 = vld [vmem:[%s249 + $0x8] sm:$0xff]
        %v253 = vld [vmem:[%s249 + $0x10] sm:$0xff]
        %v254 = vld [vmem:[%s249 + $0x18] sm:$0xff]
        %v255 = vld [vmem:[%s249 + $0x20] sm:$0xff]
        %v256 = vld [vmem:[%s249 + $0x28] sm:$0xff]
        %v257 = vld [vmem:[%s249 + $0x30] sm:$0xff]
        %v258 = vld [vmem:[%s249 + $0x38] sm:$0xff]
        %v259 = vmul.f32 %v251, %v251
        %v260 = vmul.f32 %v252, %v252
        %v261 = vmul.f32 %v253, %v253
        %v262 = vmul.f32 %v254, %v254
        %v263 = vmul.f32 %v255, %v255
        %v264 = vmul.f32 %v256, %v256
        %v265 = vmul.f32 %v257, %v257
        %v266 = vmul.f32 %v258, %v258
        %v267 = vadd.f32 %v259, %v261
        %v268 = vadd.f32 %v267, %v263
        %v269 = vadd.f32 %v268, %v265
        %v270 = vrot.slane %v269, 4
        %v271 = vadd.f32 %v269, %v270
        %v272 = vrot.slane %v271, 2
        %v273 = vadd.f32 %v271, %v272
        %v274 = vrot.slane %v273, 1
        %v275 = vadd.f32 %v273, %v274
        %v276 = vadd.f32 %v260, %v262
        %v277 = vadd.f32 %v276, %v264
        %v278 = vadd.f32 %v277, %v266
        %v279 = vrot.slane %v278, 4
        %v280 = vadd.f32 %v278, %v279
        %v281 = vrot.slane %v280, 2
        %v282 = vadd.f32 %v280, %v281
        %v283 = vrot.slane %v282, 1
        %v284 = vadd.f32 %v282, %v283
        %v285 = vrsqrt.pop %v275
        %v286 = vrsqrt.pop %v284
        %v287 = vmin.f32 %v285, 1e+12
        %v288 = vmin.f32 %v286, 1e+12
        %v289 = vmul.f32 %v251, %v287
        %v290 = vmul.f32 %v252, %v288
        %v291 = vmul.f32 %v253, %v287
        %v292 = vmul.f32 %v254, %v288
        %v293 = vmul.f32 %v255, %v287
        %v294 = vmul.f32 %v256, %v288
        %v295 = vmul.f32 %v257, %v287
        %v296 = vmul.f32 %v258, %v288
        %v297 = vpack.c.bf16 %v291, %v289
        %v298 = vpack.c.bf16 %v292, %v290
        %v299 = vpack.c.bf16 %v295, %v293
        %v300 = vpack.c.bf16 %v296, %v294
        %v301 = vld [vmem:[%s1] sm:$0xf]
        %v302 = vld [vmem:[%s1 + $0x4] sm:$0xf]
        %v303 = vld [vmem:[%s1 + $0x8] sm:$0xf]
        %v304 = vld [vmem:[%s1 + $0xc] sm:$0xf]
        %v305 = vld [vmem:[%s1 + $0x10] sm:$0xf]
        %v306 = vld [vmem:[%s1 + $0x14] sm:$0xf]
        %v307 = vld [vmem:[%s1 + $0x18] sm:$0xf]
        %v308 = vld [vmem:[%s1 + $0x1c] sm:$0xf]
        %v309 = vld [vmem:[%s1 + $0x20] sm:$0xf]
        %v310 = vld [vmem:[%s1 + $0x24] sm:$0xf]
        %v311 = vld [vmem:[%s1 + $0x28] sm:$0xf]
        %v312 = vld [vmem:[%s1 + $0x2c] sm:$0xf]
        %v313 = vld [vmem:[%s1 + $0x30] sm:$0xf]
        %v314 = vld [vmem:[%s1 + $0x34] sm:$0xf]
        %v315 = vld [vmem:[%s1 + $0x38] sm:$0xf]
        %v316 = vld [vmem:[%s1 + $0x3c] sm:$0xf]
        %v317 = vld [vmem:[%s1 + $0x40] sm:$0xf]
        %v318 = vld [vmem:[%s1 + $0x44] sm:$0xf]
        %v319 = vld [vmem:[%s1 + $0x48] sm:$0xf]
        %v320 = vld [vmem:[%s1 + $0x4c] sm:$0xf]
        %v321 = vld [vmem:[%s1 + $0x50] sm:$0xf]
        %v322 = vld [vmem:[%s1 + $0x54] sm:$0xf]
        %v323 = vld [vmem:[%s1 + $0x58] sm:$0xf]
        %v324 = vld [vmem:[%s1 + $0x5c] sm:$0xf]
        %v325 = vld [vmem:[%s1 + $0x60] sm:$0xf]
        %v326 = vld [vmem:[%s1 + $0x64] sm:$0xf]
        %v327 = vld [vmem:[%s1 + $0x68] sm:$0xf]
        %v328 = vld [vmem:[%s1 + $0x6c] sm:$0xf]
        %v329 = vld [vmem:[%s1 + $0x70] sm:$0xf]
        %v330 = vld [vmem:[%s1 + $0x74] sm:$0xf]
        %v331 = vld [vmem:[%s1 + $0x78] sm:$0xf]
        %v332 = vld [vmem:[%s1 + $0x7c] sm:$0xf]
        %v333 = vld [vmem:[%s1 + $0x80] sm:$0xf]
        %v334 = vld [vmem:[%s1 + $0x84] sm:$0xf]
        %v335 = vld [vmem:[%s1 + $0x88] sm:$0xf]
        %v336 = vld [vmem:[%s1 + $0x8c] sm:$0xf]
        %v337 = vld [vmem:[%s1 + $0x90] sm:$0xf]
        %v338 = vld [vmem:[%s1 + $0x94] sm:$0xf]
        %v339 = vld [vmem:[%s1 + $0x98] sm:$0xf]
        %v340 = vld [vmem:[%s1 + $0x9c] sm:$0xf]
        %v341 = vld [vmem:[%s1 + $0xa0] sm:$0xf]
        %v342 = vld [vmem:[%s1 + $0xa4] sm:$0xf]
        %v343 = vld [vmem:[%s1 + $0xa8] sm:$0xf]
        %v344 = vld [vmem:[%s1 + $0xac] sm:$0xf]
        %v345 = vld [vmem:[%s1 + $0xb0] sm:$0xf]
        %v346 = vld [vmem:[%s1 + $0xb4] sm:$0xf]
        %v347 = vld [vmem:[%s1 + $0xb8] sm:$0xf]
        %v348 = vld [vmem:[%s1 + $0xbc] sm:$0xf]
        %v397 = vunpack.c.l.b16 %v301
        %v398 = vunpack.c.l.b16 %v302
        %v399 = vunpack.c.l.b16 %v303
        %v400 = vunpack.c.l.b16 %v304
        %v401 = vunpack.c.l.b16 %v305
        %v402 = vunpack.c.l.b16 %v306
        %v403 = vunpack.c.l.b16 %v307
        %v404 = vunpack.c.l.b16 %v308
        %v405 = vunpack.c.l.b16 %v309
        %v406 = vunpack.c.l.b16 %v310
        %v407 = vunpack.c.l.b16 %v311
        %v408 = vunpack.c.l.b16 %v312
        %v409 = vunpack.c.l.b16 %v313
        %v410 = vunpack.c.l.b16 %v314
        %v411 = vunpack.c.l.b16 %v315
        %v412 = vunpack.c.l.b16 %v316
        %v413 = vunpack.c.l.b16 %v317
        %v414 = vunpack.c.l.b16 %v318
        %v415 = vunpack.c.l.b16 %v319
        %v416 = vunpack.c.l.b16 %v320
        %v417 = vunpack.c.l.b16 %v321
        %v418 = vunpack.c.l.b16 %v322
        %v419 = vunpack.c.l.b16 %v323
        %v420 = vunpack.c.l.b16 %v324
        %v421 = vunpack.c.l.b16 %v325
        %v422 = vunpack.c.l.b16 %v326
        %v423 = vunpack.c.l.b16 %v327
        %v424 = vunpack.c.l.b16 %v328
        %v425 = vunpack.c.l.b16 %v329
        %v426 = vunpack.c.l.b16 %v330
        %v427 = vunpack.c.l.b16 %v331
        %v428 = vunpack.c.l.b16 %v332
        %v429 = vunpack.c.l.b16 %v333
        %v430 = vunpack.c.l.b16 %v334
        %v431 = vunpack.c.l.b16 %v335
        %v432 = vunpack.c.l.b16 %v336
        %v433 = vunpack.c.l.b16 %v337
        %v434 = vunpack.c.l.b16 %v338
        %v435 = vunpack.c.l.b16 %v339
        %v436 = vunpack.c.l.b16 %v340
        %v437 = vunpack.c.l.b16 %v341
        %v438 = vunpack.c.l.b16 %v342
        %v439 = vunpack.c.l.b16 %v343
        %v440 = vunpack.c.l.b16 %v344
        %v441 = vunpack.c.l.b16 %v345
        %v442 = vunpack.c.l.b16 %v346
        %v443 = vunpack.c.l.b16 %v347
        %v444 = vunpack.c.l.b16 %v348
        %v445 = vpack.c.b16 %v398, %v397
        %v446 = vpack.c.b16 %v400, %v399
        %v447 = vpack.c.b16 %v402, %v401
        %v448 = vpack.c.b16 %v404, %v403
        %v449 = vpack.c.b16 %v406, %v405
        %v450 = vpack.c.b16 %v408, %v407
        %v451 = vpack.c.b16 %v410, %v409
        %v452 = vpack.c.b16 %v412, %v411
        %v453 = vpack.c.b16 %v414, %v413
        %v454 = vpack.c.b16 %v416, %v415
        %v455 = vpack.c.b16 %v418, %v417
        %v456 = vpack.c.b16 %v420, %v419
        %v457 = vpack.c.b16 %v422, %v421
        %v458 = vpack.c.b16 %v424, %v423
        %v459 = vpack.c.b16 %v426, %v425
        %v460 = vpack.c.b16 %v428, %v427
        %v461 = vpack.c.b16 %v430, %v429
        %v462 = vpack.c.b16 %v432, %v431
        %v463 = vpack.c.b16 %v434, %v433
        %v464 = vpack.c.b16 %v436, %v435
        %v465 = vpack.c.b16 %v438, %v437
        %v466 = vpack.c.b16 %v440, %v439
        %v467 = vpack.c.b16 %v442, %v441
        %v468 = vpack.c.b16 %v444, %v443
        %vm469 = vcmask 261120
        %v471 = vsel %vm469, %v445, 0
        %v474 = vsel %vm469, %v446, 0
        %v477 = vsel %vm469, %v447, 0
        %v480 = vsel %vm469, %v448, 0
        %v483 = vsel %vm469, %v449, 0
        %v486 = vsel %vm469, %v450, 0
        %v489 = vsel %vm469, %v451, 0
        %v492 = vsel %vm469, %v452, 0
        %v495 = vsel %vm469, %v453, 0
        %v498 = vsel %vm469, %v454, 0
        %v501 = vsel %vm469, %v455, 0
        %v504 = vsel %vm469, %v456, 0
        %v507 = vsel %vm469, %v457, 0
        %v510 = vsel %vm469, %v458, 0
        %v513 = vsel %vm469, %v459, 0
        %v516 = vsel %vm469, %v460, 0
        %v519 = vsel %vm469, %v461, 0
        %v522 = vsel %vm469, %v462, 0
        %v525 = vsel %vm469, %v463, 0
        %v528 = vsel %vm469, %v464, 0
        %v531 = vsel %vm469, %v465, 0
        %v534 = vsel %vm469, %v466, 0
        %v537 = vsel %vm469, %v467, 0
        %v540 = vsel %vm469, %v468, 0
        %542 = vmatprep.subr.bf16.mxu0 %v298
        %543 = vmatpush1.bf16.msra.mxu0 %v297
        %544 = vmatprep.subr.bf16.mxu0 %v300
        %545 = vmatpush1.bf16.msra.mxu0 %v299
        %546 = vmatprep.subr.bf16.mxu0 0
        %547 = vmatpush1.bf16.msra.mxu0 0
        %548 = vmatprep.subr.bf16.mxu0 0
        %549 = vmatpush1.bf16.msra.mxu0 0
        %550 = vmatprep.subr.bf16.mxu0 0
        %551 = vmatpush1.bf16.msra.mxu0 0
        %552 = vmatprep.subr.bf16.mxu0 0
        %553 = vmatpush1.bf16.msra.mxu0 0
        %554 = vmatprep.subr.bf16.mxu0 0
        %555 = vmatpush1.bf16.msra.mxu0 0
        %556 = vmatprep.subr.bf16.mxu0 0
        %557 = vmatpush1.bf16.msra.mxu0 0
        %558 = vmatprep.subr.bf16.mxu0 0
        %559 = vmatpush1.bf16.msra.mxu0 0
        %560 = vmatprep.subr.bf16.mxu0 0
        %561 = vmatpush1.bf16.msra.mxu0 0
        %562 = vmatprep.subr.bf16.mxu0 0
        %563 = vmatpush1.bf16.msra.mxu0 0
        %564 = vmatprep.subr.bf16.mxu0 0
        %565 = vmatpush1.bf16.msra.mxu0 0
        %566 = vmatprep.subr.bf16.mxu0 0
        %567 = vmatpush1.bf16.msra.mxu0 0
        %568 = vmatprep.subr.bf16.mxu0 0
        %569 = vmatpush1.bf16.msra.mxu0 0
        %570 = vmatprep.subr.bf16.mxu0 0
        %571 = vmatpush1.bf16.msra.mxu0 0
        %572 = vmatprep.subr.bf16.mxu0 0
        %573 = vmatpush1.bf16.msra.mxu0 0
        %574 = vmatprep.mubr.bf16.mxu0 0
        %575 = vmatmul.mubr.bf16.gmra.mrb[0].mxu0 %v471
        %v576 = vpop.f32.mrb[0].mxu0
        %v577 = vadd.f32 0.0, %v576
        %v578 = vpop.f32.mrb[0].mxu0
        %v579 = vadd.f32 0.0, %v578
        %v580 = vpop.f32.mrb[0].mxu0
        %v581 = vadd.f32 0.0, %v580
        %v582 = vpop.f32.mrb[0].mxu0
        %v583 = vadd.f32 0.0, %v582
        %584 = vmatprep.mubr.bf16.mxu0 0
        %585 = vmatmul.mubr.bf16.gmra.mrb[0].mxu0 %v474
        %v586 = vpop.f32.mrb[0].mxu0
        %v587 = vadd.f32 0.0, %v586
        %v588 = vpop.f32.mrb[0].mxu0
        %v589 = vadd.f32 0.0, %v588
        %v590 = vpop.f32.mrb[0].mxu0
        %v591 = vadd.f32 0.0, %v590
        %v592 = vpop.f32.mrb[0].mxu0
        %v593 = vadd.f32 0.0, %v592
        %594 = vmatprep.mubr.bf16.mxu0 0
        %595 = vmatmul.mubr.bf16.gmra.mrb[0].mxu0 %v477
        %v596 = vpop.f32.mrb[0].mxu0
        %v597 = vadd.f32 0.0, %v596
        %v598 = vpop.f32.mrb[0].mxu0
        %v599 = vadd.f32 0.0, %v598
        %v600 = vpop.f32.mrb[0].mxu0
        %v601 = vadd.f32 0.0, %v600
        %v602 = vpop.f32.mrb[0].mxu0
        %v603 = vadd.f32 0.0, %v602
        %604 = vmatprep.mubr.bf16.mxu0 0
        %605 = vmatmul.mubr.bf16.gmra.mrb[0].mxu0 %v480
        %v606 = vpop.f32.mrb[0].mxu0
        %v607 = vadd.f32 0.0, %v606
        %v608 = vpop.f32.mrb[0].mxu0
        %v609 = vadd.f32 0.0, %v608
        %v610 = vpop.f32.mrb[0].mxu0
        %v611 = vadd.f32 0.0, %v610
        %v612 = vpop.f32.mrb[0].mxu0
        %v613 = vadd.f32 0.0, %v612
        %614 = vmatprep.mubr.bf16.mxu0 0
        %615 = vmatmul.mubr.bf16.gmra.mrb[0].mxu0 %v483
        %v616 = vpop.f32.mrb[0].mxu0
        %v617 = vadd.f32 0.0, %v616
        %v618 = vpop.f32.mrb[0].mxu0
        %v619 = vadd.f32 0.0, %v618
        %v620 = vpop.f32.mrb[0].mxu0
        %v621 = vadd.f32 0.0, %v620
        %v622 = vpop.f32.mrb[0].mxu0
        %v623 = vadd.f32 0.0, %v622
        %624 = vmatprep.mubr.bf16.mxu0 0
        %625 = vmatmul.mubr.bf16.gmra.mrb[0].mxu0 %v486
        %v626 = vpop.f32.mrb[0].mxu0
        %v627 = vadd.f32 0.0, %v626
        %v628 = vpop.f32.mrb[0].mxu0
        %v629 = vadd.f32 0.0, %v628
        %v630 = vpop.f32.mrb[0].mxu0
        %v631 = vadd.f32 0.0, %v630
        %v632 = vpop.f32.mrb[0].mxu0
        %v633 = vadd.f32 0.0, %v632
        %634 = vmatprep.mubr.bf16.mxu0 0
        %635 = vmatmul.mubr.bf16.gmra.mrb[0].mxu0 %v489
        %v636 = vpop.f32.mrb[0].mxu0
        %v637 = vadd.f32 0.0, %v636
        %v638 = vpop.f32.mrb[0].mxu0
        %v639 = vadd.f32 0.0, %v638
        %v640 = vpop.f32.mrb[0].mxu0
        %v641 = vadd.f32 0.0, %v640
        %v642 = vpop.f32.mrb[0].mxu0
        %v643 = vadd.f32 0.0, %v642
        %644 = vmatprep.mubr.bf16.mxu0 0
        %645 = vmatmul.mubr.bf16.gmra.mrb[0].mxu0 %v492
        %v646 = vpop.f32.mrb[0].mxu0
        %v647 = vadd.f32 0.0, %v646
        %v648 = vpop.f32.mrb[0].mxu0
        %v649 = vadd.f32 0.0, %v648
        %v650 = vpop.f32.mrb[0].mxu0
        %v651 = vadd.f32 0.0, %v650
        %v652 = vpop.f32.mrb[0].mxu0
        %v653 = vadd.f32 0.0, %v652
        %654 = vmatprep.mubr.bf16.mxu0 0
        %655 = vmatmul.mubr.bf16.gmra.mrb[0].mxu0 %v495
        %v656 = vpop.f32.mrb[0].mxu0
        %v657 = vadd.f32 0.0, %v656
        %v658 = vpop.f32.mrb[0].mxu0
        %v659 = vadd.f32 0.0, %v658
        %v660 = vpop.f32.mrb[0].mxu0
        %v661 = vadd.f32 0.0, %v660
        %v662 = vpop.f32.mrb[0].mxu0
        %v663 = vadd.f32 0.0, %v662
        %664 = vmatprep.mubr.bf16.mxu0 0
        %665 = vmatmul.mubr.bf16.gmra.mrb[0].mxu0 %v498
        %v666 = vpop.f32.mrb[0].mxu0
        %v667 = vadd.f32 0.0, %v666
        %v668 = vpop.f32.mrb[0].mxu0
        %v669 = vadd.f32 0.0, %v668
        %v670 = vpop.f32.mrb[0].mxu0
        %v671 = vadd.f32 0.0, %v670
        %v672 = vpop.f32.mrb[0].mxu0
        %v673 = vadd.f32 0.0, %v672
        %674 = vmatprep.mubr.bf16.mxu0 0
        %675 = vmatmul.mubr.bf16.gmra.mrb[0].mxu0 %v501
        %v676 = vpop.f32.mrb[0].mxu0
        %v677 = vadd.f32 0.0, %v676
        %v678 = vpop.f32.mrb[0].mxu0
        %v679 = vadd.f32 0.0, %v678
        %v680 = vpop.f32.mrb[0].mxu0
        %v681 = vadd.f32 0.0, %v680
        %v682 = vpop.f32.mrb[0].mxu0
        %v683 = vadd.f32 0.0, %v682
        %684 = vmatprep.mubr.bf16.mxu0 0
        %685 = vmatmul.mubr.bf16.gmra.mrb[0].mxu0 %v504
        %v686 = vpop.f32.mrb[0].mxu0
        %v687 = vadd.f32 0.0, %v686
        %v688 = vpop.f32.mrb[0].mxu0
        %v689 = vadd.f32 0.0, %v688
        %v690 = vpop.f32.mrb[0].mxu0
        %v691 = vadd.f32 0.0, %v690
        %v692 = vpop.f32.mrb[0].mxu0
        %v693 = vadd.f32 0.0, %v692
        %694 = vmatprep.mubr.bf16.mxu0 0
        %695 = vmatmul.mubr.bf16.gmra.mrb[0].mxu0 %v507
        %v696 = vpop.f32.mrb[0].mxu0
        %v697 = vadd.f32 0.0, %v696
        %v698 = vpop.f32.mrb[0].mxu0
        %v699 = vadd.f32 0.0, %v698
        %v700 = vpop.f32.mrb[0].mxu0
        %v701 = vadd.f32 0.0, %v700
        %v702 = vpop.f32.mrb[0].mxu0
        %v703 = vadd.f32 0.0, %v702
        %704 = vmatprep.mubr.bf16.mxu0 0
        %705 = vmatmul.mubr.bf16.gmra.mrb[0].mxu0 %v510
        %v706 = vpop.f32.mrb[0].mxu0
        %v707 = vadd.f32 0.0, %v706
        %v708 = vpop.f32.mrb[0].mxu0
        %v709 = vadd.f32 0.0, %v708
        %v710 = vpop.f32.mrb[0].mxu0
        %v711 = vadd.f32 0.0, %v710
        %v712 = vpop.f32.mrb[0].mxu0
        %v713 = vadd.f32 0.0, %v712
        %714 = vmatprep.mubr.bf16.mxu0 0
        %715 = vmatmul.mubr.bf16.gmra.mrb[0].mxu0 %v513
        %v716 = vpop.f32.mrb[0].mxu0
        %v717 = vadd.f32 0.0, %v716
        %v718 = vpop.f32.mrb[0].mxu0
        %v719 = vadd.f32 0.0, %v718
        %v720 = vpop.f32.mrb[0].mxu0
        %v721 = vadd.f32 0.0, %v720
        %v722 = vpop.f32.mrb[0].mxu0
        %v723 = vadd.f32 0.0, %v722
        %724 = vmatprep.mubr.bf16.mxu0 0
        %725 = vmatmul.mubr.bf16.gmra.mrb[0].mxu0 %v516
        %v726 = vpop.f32.mrb[0].mxu0
        %v727 = vadd.f32 0.0, %v726
        %v728 = vpop.f32.mrb[0].mxu0
        %v729 = vadd.f32 0.0, %v728
        %v730 = vpop.f32.mrb[0].mxu0
        %v731 = vadd.f32 0.0, %v730
        %v732 = vpop.f32.mrb[0].mxu0
        %v733 = vadd.f32 0.0, %v732
        %734 = vmatprep.mubr.bf16.mxu0 0
        %735 = vmatmul.mubr.bf16.gmra.mrb[0].mxu0 %v519
        %v736 = vpop.f32.mrb[0].mxu0
        %v737 = vadd.f32 0.0, %v736
        %v738 = vpop.f32.mrb[0].mxu0
        %v739 = vadd.f32 0.0, %v738
        %v740 = vpop.f32.mrb[0].mxu0
        %v741 = vadd.f32 0.0, %v740
        %v742 = vpop.f32.mrb[0].mxu0
        %v743 = vadd.f32 0.0, %v742
        %744 = vmatprep.mubr.bf16.mxu0 0
        %745 = vmatmul.mubr.bf16.gmra.mrb[0].mxu0 %v522
        %v746 = vpop.f32.mrb[0].mxu0
        %v747 = vadd.f32 0.0, %v746
        %v748 = vpop.f32.mrb[0].mxu0
        %v749 = vadd.f32 0.0, %v748
        %v750 = vpop.f32.mrb[0].mxu0
        %v751 = vadd.f32 0.0, %v750
        %v752 = vpop.f32.mrb[0].mxu0
        %v753 = vadd.f32 0.0, %v752
        %754 = vmatprep.mubr.bf16.mxu0 0
        %755 = vmatmul.mubr.bf16.gmra.mrb[0].mxu0 %v525
        %v756 = vpop.f32.mrb[0].mxu0
        %v757 = vadd.f32 0.0, %v756
        %v758 = vpop.f32.mrb[0].mxu0
        %v759 = vadd.f32 0.0, %v758
        %v760 = vpop.f32.mrb[0].mxu0
        %v761 = vadd.f32 0.0, %v760
        %v762 = vpop.f32.mrb[0].mxu0
        %v763 = vadd.f32 0.0, %v762
        %764 = vmatprep.mubr.bf16.mxu0 0
        %765 = vmatmul.mubr.bf16.gmra.mrb[0].mxu0 %v528
        %v766 = vpop.f32.mrb[0].mxu0
        %v767 = vadd.f32 0.0, %v766
        %v768 = vpop.f32.mrb[0].mxu0
        %v769 = vadd.f32 0.0, %v768
        %v770 = vpop.f32.mrb[0].mxu0
        %v771 = vadd.f32 0.0, %v770
        %v772 = vpop.f32.mrb[0].mxu0
        %v773 = vadd.f32 0.0, %v772
        %774 = vmatprep.mubr.bf16.mxu0 0
        %775 = vmatmul.mubr.bf16.gmra.mrb[0].mxu0 %v531
        %v776 = vpop.f32.mrb[0].mxu0
        %v777 = vadd.f32 0.0, %v776
        %v778 = vpop.f32.mrb[0].mxu0
        %v779 = vadd.f32 0.0, %v778
        %v780 = vpop.f32.mrb[0].mxu0
        %v781 = vadd.f32 0.0, %v780
        %v782 = vpop.f32.mrb[0].mxu0
        %v783 = vadd.f32 0.0, %v782
        %784 = vmatprep.mubr.bf16.mxu0 0
        %785 = vmatmul.mubr.bf16.gmra.mrb[0].mxu0 %v534
        %v786 = vpop.f32.mrb[0].mxu0
        %v787 = vadd.f32 0.0, %v786
        %v788 = vpop.f32.mrb[0].mxu0
        %v789 = vadd.f32 0.0, %v788
        %v790 = vpop.f32.mrb[0].mxu0
        %v791 = vadd.f32 0.0, %v790
        %v792 = vpop.f32.mrb[0].mxu0
        %v793 = vadd.f32 0.0, %v792
        %794 = vmatprep.mubr.bf16.mxu0 0
        %795 = vmatmul.mubr.bf16.gmra.mrb[0].mxu0 %v537
        %v796 = vpop.f32.mrb[0].mxu0
        %v797 = vadd.f32 0.0, %v796
        %v798 = vpop.f32.mrb[0].mxu0
        %v799 = vadd.f32 0.0, %v798
        %v800 = vpop.f32.mrb[0].mxu0
        %v801 = vadd.f32 0.0, %v800
        %v802 = vpop.f32.mrb[0].mxu0
        %v803 = vadd.f32 0.0, %v802
        %804 = vmatprep.mubr.bf16.mxu0 0
        %805 = vmatmul.mubr.bf16.gmra.mrb[0].mxu0 %v540
        %v806 = vpop.f32.mrb[0].mxu0
        %v807 = vadd.f32 0.0, %v806
        %v808 = vpop.f32.mrb[0].mxu0
        %v809 = vadd.f32 0.0, %v808
        %v810 = vpop.f32.mrb[0].mxu0
        %v811 = vadd.f32 0.0, %v810
        %v812 = vpop.f32.mrb[0].mxu0
        %v813 = vadd.f32 0.0, %v812
        %814 = vdwg.mxu0
        %v815 = vpack.c.bf16 %v581, %v577
        %v816 = vpack.c.bf16 %v583, %v579
        %v817 = vpack.c.bf16 %v591, %v587
        %v818 = vpack.c.bf16 %v593, %v589
        %v819 = vpack.c.bf16 %v601, %v597
        %v820 = vpack.c.bf16 %v603, %v599
        %v821 = vpack.c.bf16 %v611, %v607
        %v822 = vpack.c.bf16 %v613, %v609
        %v823 = vpack.c.bf16 %v621, %v617
        %v824 = vpack.c.bf16 %v623, %v619
        %v825 = vpack.c.bf16 %v631, %v627
        %v826 = vpack.c.bf16 %v633, %v629
        %v827 = vpack.c.bf16 %v641, %v637
        %v828 = vpack.c.bf16 %v643, %v639
        %v829 = vpack.c.bf16 %v651, %v647
        %v830 = vpack.c.bf16 %v653, %v649
        %v831 = vpack.c.bf16 %v661, %v657
        %v832 = vpack.c.bf16 %v663, %v659
        %v833 = vpack.c.bf16 %v671, %v667
        %v834 = vpack.c.bf16 %v673, %v669
        %v835 = vpack.c.bf16 %v681, %v677
        %v836 = vpack.c.bf16 %v683, %v679
        %v837 = vpack.c.bf16 %v691, %v687
        %v838 = vpack.c.bf16 %v693, %v689
        %v839 = vpack.c.bf16 %v701, %v697
        %v840 = vpack.c.bf16 %v703, %v699
        %v841 = vpack.c.bf16 %v711, %v707
        %v842 = vpack.c.bf16 %v713, %v709
        %v843 = vpack.c.bf16 %v721, %v717
        %v844 = vpack.c.bf16 %v723, %v719
        %v845 = vpack.c.bf16 %v731, %v727
        %v846 = vpack.c.bf16 %v733, %v729
        %v847 = vpack.c.bf16 %v741, %v737
        %v848 = vpack.c.bf16 %v743, %v739
        %v849 = vpack.c.bf16 %v751, %v747
        %v850 = vpack.c.bf16 %v753, %v749
        %v851 = vpack.c.bf16 %v761, %v757
        %v852 = vpack.c.bf16 %v763, %v759
        %v853 = vpack.c.bf16 %v771, %v767
        %v854 = vpack.c.bf16 %v773, %v769
        %v855 = vpack.c.bf16 %v781, %v777
        %v856 = vpack.c.bf16 %v783, %v779
        %v857 = vpack.c.bf16 %v791, %v787
        %v858 = vpack.c.bf16 %v793, %v789
        %v859 = vpack.c.bf16 %v801, %v797
        %v860 = vpack.c.bf16 %v803, %v799
        %v861 = vpack.c.bf16 %v811, %v807
        %v862 = vpack.c.bf16 %v813, %v809
        %v863 = vld [vmem:[%s2] sm:$0xf]
        %v864 = vld [vmem:[%s2 + $0x4] sm:$0xf]
        %v865 = vld [vmem:[%s2 + $0x8] sm:$0xf]
        %v866 = vld [vmem:[%s2 + $0xc] sm:$0xf]
        %v867 = vld [vmem:[%s3] sm:$0xf]
        %v868 = vld [vmem:[%s3 + $0x4] sm:$0xf]
        %v869 = vld [vmem:[%s3 + $0x8] sm:$0xf]
        %v870 = vld [vmem:[%s3 + $0xc] sm:$0xf]
        %871 = vxpose.xlu0.c.b16.start [1/8] %v831, 128
        %872 = vxpose.xlu0.c.b16.cont [2/8] %v833, 128
        %873 = vxpose.xlu0.c.b16.cont [3/8] 0, 128
        %874 = vxpose.xlu0.c.b16.cont [4/8] 0, 128
        %875 = vxpose.xlu0.c.b16.cont [5/8] 0, 128
        %876 = vxpose.xlu0.c.b16.cont [6/8] 0, 128
        %877 = vxpose.xlu0.c.b16.cont [7/8] 0, 128
        %878 = vxpose.xlu0.c.b16.end [8/8] 0, 128
        %v879 = vpop.trf.xlu0
        %v880 = vpop.trf.xlu0
        %v881 = vpop.trf.xlu0
        %v882 = vpop.trf.xlu0
        %v883 = vpop.trf.xlu0
        %v884 = vpop.trf.xlu0
        %v885 = vpop.trf.xlu0
        %v886 = vpop.trf.xlu0
        %887 = vxpose.xlu0.c.b16.start [1/8] %v832, 128
        %888 = vxpose.xlu0.c.b16.cont [2/8] %v834, 128
        %889 = vxpose.xlu0.c.b16.cont [3/8] 0, 128
        %890 = vxpose.xlu0.c.b16.cont [4/8] 0, 128
        %891 = vxpose.xlu0.c.b16.cont [5/8] 0, 128
        %892 = vxpose.xlu0.c.b16.cont [6/8] 0, 128
        %893 = vxpose.xlu0.c.b16.cont [7/8] 0, 128
        %894 = vxpose.xlu0.c.b16.end [8/8] 0, 128
        %v895 = vpop.trf.xlu0
        %v896 = vpop.trf.xlu0
        %v897 = vpop.trf.xlu0
        %v898 = vpop.trf.xlu0
        %v899 = vpop.trf.xlu0
        %v900 = vpop.trf.xlu0
        %v901 = vpop.trf.xlu0
        %v902 = vpop.trf.xlu0
        %v904 = vsel %vm469, %v879, 0
        %v907 = vsel %vm469, %v880, 0
        %v910 = vsel %vm469, %v881, 0
        %v913 = vsel %vm469, %v882, 0
        %v916 = vsel %vm469, %v883, 0
        %v919 = vsel %vm469, %v884, 0
        %v922 = vsel %vm469, %v885, 0
        %v925 = vsel %vm469, %v886, 0
        %v928 = vsel %vm469, %v895, 0
        %v931 = vsel %vm469, %v896, 0
        %v934 = vsel %vm469, %v897, 0
        %v937 = vsel %vm469, %v898, 0
        %v940 = vsel %vm469, %v899, 0
        %v943 = vsel %vm469, %v900, 0
        %v946 = vsel %vm469, %v901, 0
        %v949 = vsel %vm469, %v902, 0
        %951 = vmatprep.subr.bf16.mxu0 %v816
        %952 = vmatpush1.bf16.msra.mxu0 %v815
        %953 = vmatprep.subr.bf16.mxu0 %v818
        %954 = vmatpush1.bf16.msra.mxu0 %v817
        %955 = vmatprep.subr.bf16.mxu0 0
        %956 = vmatpush1.bf16.msra.mxu0 0
        %957 = vmatprep.subr.bf16.mxu0 0
        %958 = vmatpush1.bf16.msra.mxu0 0
        %959 = vmatprep.subr.bf16.mxu0 0
        %960 = vmatpush1.bf16.msra.mxu0 0
        %961 = vmatprep.subr.bf16.mxu0 0
        %962 = vmatpush1.bf16.msra.mxu0 0
        %963 = vmatprep.subr.bf16.mxu0 0
        %964 = vmatpush1.bf16.msra.mxu0 0
        %965 = vmatprep.subr.bf16.mxu0 0
        %966 = vmatpush1.bf16.msra.mxu0 0
        %967 = vmatprep.subr.bf16.mxu0 0
        %968 = vmatpush1.bf16.msra.mxu0 0
        %969 = vmatprep.subr.bf16.mxu0 0
        %970 = vmatpush1.bf16.msra.mxu0 0
        %971 = vmatprep.subr.bf16.mxu0 0
        %972 = vmatpush1.bf16.msra.mxu0 0
        %973 = vmatprep.subr.bf16.mxu0 0
        %974 = vmatpush1.bf16.msra.mxu0 0
        %975 = vmatprep.subr.bf16.mxu0 0
        %976 = vmatpush1.bf16.msra.mxu0 0
        %977 = vmatprep.subr.bf16.mxu0 0
        %978 = vmatpush1.bf16.msra.mxu0 0
        %979 = vmatprep.subr.bf16.mxu0 0
        %980 = vmatpush1.bf16.msra.mxu0 0
        %981 = vmatprep.subr.bf16.mxu0 0
        %982 = vmatpush1.bf16.msra.mxu0 0
        %983 = vmatprep.mubr.bf16.mxu0 0
        %984 = vmatmul.mubr.bf16.gmra.mrb[0].mxu0 %v904
        %v985 = vpop.f32.mrb[0].mxu0
        %v986 = vadd.f32 0.0, %v985
        %v987 = vpop.f32.mrb[0].mxu0
        %v988 = vadd.f32 0.0, %v987
        %v989 = vpop.f32.mrb[0].mxu0
        %v990 = vadd.f32 0.0, %v989
        %v991 = vpop.f32.mrb[0].mxu0
        %v992 = vadd.f32 0.0, %v991
        %993 = vmatprep.mubr.bf16.mxu0 0
        %994 = vmatmul.mubr.bf16.gmra.mrb[0].mxu0 %v907
        %v995 = vpop.f32.mrb[0].mxu0
        %v996 = vadd.f32 0.0, %v995
        %v997 = vpop.f32.mrb[0].mxu0
        %v998 = vadd.f32 0.0, %v997
        %v999 = vpop.f32.mrb[0].mxu0
        %v1000 = vadd.f32 0.0, %v999
        %v1001 = vpop.f32.mrb[0].mxu0
        %v1002 = vadd.f32 0.0, %v1001
        %1003 = vmatprep.mubr.bf16.mxu0 0
        %1004 = vmatmul.mubr.bf16.gmra.mrb[0].mxu0 %v910
        %v1005 = vpop.f32.mrb[0].mxu0
        %v1006 = vadd.f32 0.0, %v1005
        %v1007 = vpop.f32.mrb[0].mxu0
        %v1008 = vadd.f32 0.0, %v1007
        %v1009 = vpop.f32.mrb[0].mxu0
        %v1010 = vadd.f32 0.0, %v1009
        %v1011 = vpop.f32.mrb[0].mxu0
        %v1012 = vadd.f32 0.0, %v1011
        %1013 = vmatprep.mubr.bf16.mxu0 0
        %1014 = vmatmul.mubr.bf16.gmra.mrb[0].mxu0 %v913
        %v1015 = vpop.f32.mrb[0].mxu0
        %v1016 = vadd.f32 0.0, %v1015
        %v1017 = vpop.f32.mrb[0].mxu0
        %v1018 = vadd.f32 0.0, %v1017
        %v1019 = vpop.f32.mrb[0].mxu0
        %v1020 = vadd.f32 0.0, %v1019
        %v1021 = vpop.f32.mrb[0].mxu0
        %v1022 = vadd.f32 0.0, %v1021
        %1023 = vmatprep.mubr.bf16.mxu0 0
        %1024 = vmatmul.mubr.bf16.gmra.mrb[0].mxu0 %v916
        %v1025 = vpop.f32.mrb[0].mxu0
        %v1026 = vadd.f32 0.0, %v1025
        %v1027 = vpop.f32.mrb[0].mxu0
        %v1028 = vadd.f32 0.0, %v1027
        %v1029 = vpop.f32.mrb[0].mxu0
        %v1030 = vadd.f32 0.0, %v1029
        %v1031 = vpop.f32.mrb[0].mxu0
        %v1032 = vadd.f32 0.0, %v1031
        %1033 = vmatprep.mubr.bf16.mxu0 0
        %1034 = vmatmul.mubr.bf16.gmra.mrb[0].mxu0 %v919
        %v1035 = vpop.f32.mrb[0].mxu0
        %v1036 = vadd.f32 0.0, %v1035
        %v1037 = vpop.f32.mrb[0].mxu0
        %v1038 = vadd.f32 0.0, %v1037
        %v1039 = vpop.f32.mrb[0].mxu0
        %v1040 = vadd.f32 0.0, %v1039
        %v1041 = vpop.f32.mrb[0].mxu0
        %v1042 = vadd.f32 0.0, %v1041
        %1043 = vmatprep.mubr.bf16.mxu0 0
        %1044 = vmatmul.mubr.bf16.gmra.mrb[0].mxu0 %v922
        %v1045 = vpop.f32.mrb[0].mxu0
        %v1046 = vadd.f32 0.0, %v1045
        %v1047 = vpop.f32.mrb[0].mxu0
        %v1048 = vadd.f32 0.0, %v1047
        %v1049 = vpop.f32.mrb[0].mxu0
        %v1050 = vadd.f32 0.0, %v1049
        %v1051 = vpop.f32.mrb[0].mxu0
        %v1052 = vadd.f32 0.0, %v1051
        %1053 = vmatprep.mubr.bf16.mxu0 0
        %1054 = vmatmul.mubr.bf16.gmra.mrb[0].mxu0 %v925
        %v1055 = vpop.f32.mrb[0].mxu0
        %v1056 = vadd.f32 0.0, %v1055
        %v1057 = vpop.f32.mrb[0].mxu0
        %v1058 = vadd.f32 0.0, %v1057
        %v1059 = vpop.f32.mrb[0].mxu0
        %v1060 = vadd.f32 0.0, %v1059
        %v1061 = vpop.f32.mrb[0].mxu0
        %v1062 = vadd.f32 0.0, %v1061
        %1063 = vmatprep.mubr.bf16.mxu0 0
        %1064 = vmatmul.mubr.bf16.gmra.mrb[0].mxu0 %v928
        %v1065 = vpop.f32.mrb[0].mxu0
        %v1066 = vadd.f32 0.0, %v1065
        %v1067 = vpop.f32.mrb[0].mxu0
        %v1068 = vadd.f32 0.0, %v1067
        %v1069 = vpop.f32.mrb[0].mxu0
        %v1070 = vadd.f32 0.0, %v1069
        %v1071 = vpop.f32.mrb[0].mxu0
        %v1072 = vadd.f32 0.0, %v1071
        %1073 = vmatprep.mubr.bf16.mxu0 0
        %1074 = vmatmul.mubr.bf16.gmra.mrb[0].mxu0 %v931
        %v1075 = vpop.f32.mrb[0].mxu0
        %v1076 = vadd.f32 0.0, %v1075
        %v1077 = vpop.f32.mrb[0].mxu0
        %v1078 = vadd.f32 0.0, %v1077
        %v1079 = vpop.f32.mrb[0].mxu0
        %v1080 = vadd.f32 0.0, %v1079
        %v1081 = vpop.f32.mrb[0].mxu0
        %v1082 = vadd.f32 0.0, %v1081
        %1083 = vmatprep.mubr.bf16.mxu0 0
        %1084 = vmatmul.mubr.bf16.gmra.mrb[0].mxu0 %v934
        %v1085 = vpop.f32.mrb[0].mxu0
        %v1086 = vadd.f32 0.0, %v1085
        %v1087 = vpop.f32.mrb[0].mxu0
        %v1088 = vadd.f32 0.0, %v1087
        %v1089 = vpop.f32.mrb[0].mxu0
        %v1090 = vadd.f32 0.0, %v1089
        %v1091 = vpop.f32.mrb[0].mxu0
        %v1092 = vadd.f32 0.0, %v1091
        %1093 = vmatprep.mubr.bf16.mxu0 0
        %1094 = vmatmul.mubr.bf16.gmra.mrb[0].mxu0 %v937
        %v1095 = vpop.f32.mrb[0].mxu0
        %v1096 = vadd.f32 0.0, %v1095
        %v1097 = vpop.f32.mrb[0].mxu0
        %v1098 = vadd.f32 0.0, %v1097
        %v1099 = vpop.f32.mrb[0].mxu0
        %v1100 = vadd.f32 0.0, %v1099
        %v1101 = vpop.f32.mrb[0].mxu0
        %v1102 = vadd.f32 0.0, %v1101
        %1103 = vmatprep.mubr.bf16.mxu0 0
        %1104 = vmatmul.mubr.bf16.gmra.mrb[0].mxu0 %v940
        %v1105 = vpop.f32.mrb[0].mxu0
        %v1106 = vadd.f32 0.0, %v1105
        %v1107 = vpop.f32.mrb[0].mxu0
        %v1108 = vadd.f32 0.0, %v1107
        %v1109 = vpop.f32.mrb[0].mxu0
        %v1110 = vadd.f32 0.0, %v1109
        %v1111 = vpop.f32.mrb[0].mxu0
        %v1112 = vadd.f32 0.0, %v1111
        %1113 = vmatprep.mubr.bf16.mxu0 0
        %1114 = vmatmul.mubr.bf16.gmra.mrb[0].mxu0 %v943
        %v1115 = vpop.f32.mrb[0].mxu0
        %v1116 = vadd.f32 0.0, %v1115
        %v1117 = vpop.f32.mrb[0].mxu0
        %v1118 = vadd.f32 0.0, %v1117
        %v1119 = vpop.f32.mrb[0].mxu0
        %v1120 = vadd.f32 0.0, %v1119
        %v1121 = vpop.f32.mrb[0].mxu0
        %v1122 = vadd.f32 0.0, %v1121
        %1123 = vmatprep.mubr.bf16.mxu0 0
        %1124 = vmatmul.mubr.bf16.gmra.mrb[0].mxu0 %v946
        %v1125 = vpop.f32.mrb[0].mxu0
        %v1126 = vadd.f32 0.0, %v1125
        %v1127 = vpop.f32.mrb[0].mxu0
        %v1128 = vadd.f32 0.0, %v1127
        %v1129 = vpop.f32.mrb[0].mxu0
        %v1130 = vadd.f32 0.0, %v1129
        %v1131 = vpop.f32.mrb[0].mxu0
        %v1132 = vadd.f32 0.0, %v1131
        %1133 = vmatprep.mubr.bf16.mxu0 0
        %1134 = vmatmul.mubr.bf16.gmra.mrb[0].mxu0 %v949
        %v1135 = vpop.f32.mrb[0].mxu0
        %v1136 = vadd.f32 0.0, %v1135
        %v1137 = vpop.f32.mrb[0].mxu0
        %v1138 = vadd.f32 0.0, %v1137
        %v1139 = vpop.f32.mrb[0].mxu0
        %v1140 = vadd.f32 0.0, %v1139
        %v1141 = vpop.f32.mrb[0].mxu0
        %v1142 = vadd.f32 0.0, %v1141
        %1143 = vdwg.mxu0
        %v1148 = vunpack.c.l.b16 %v863
        %v1149 = vunpack.c.l.b16 %v864
        %v1150 = vunpack.c.l.b16 %v865
        %v1151 = vunpack.c.l.b16 %v866
        %v1152 = vpack.c.b16 %v1149, %v1148
        %v1153 = vpack.c.b16 %v1151, %v1150
        %1156 = vxpose.xlu0.c.b16.start [1/8] %v1152, 128
        %1157 = vxpose.xlu0.c.b16.cont [2/8] %v1153, 128
        %1158 = vxpose.xlu0.c.b16.cont [3/8] 0, 128
        %1159 = vxpose.xlu0.c.b16.cont [4/8] 0, 128
        %1160 = vxpose.xlu0.c.b16.cont [5/8] 0, 128
        %1161 = vxpose.xlu0.c.b16.cont [6/8] 0, 128
        %1162 = vxpose.xlu0.c.b16.cont [7/8] 0, 128
        %1163 = vxpose.xlu0.c.b16.end [8/8] 0, 128
        %v1164 = vpop.trf.xlu0
        %v1165 = vpop.trf.xlu0
        %v1166 = vpop.trf.xlu0
        %v1167 = vpop.trf.xlu0
        %v1168 = vpop.trf.xlu0
        %v1169 = vpop.trf.xlu0
        %v1170 = vpop.trf.xlu0
        %v1171 = vpop.trf.xlu0
        %v1173 = vsel %vm469, %v1164, 0
        %1175 = vmatprep.subr.bf16.mxu0 %v816
        %1176 = vmatpush1.bf16.msra.mxu0 %v815
        %1177 = vmatprep.subr.bf16.mxu0 %v818
        %1178 = vmatpush1.bf16.msra.mxu0 %v817
        %1179 = vmatprep.subr.bf16.mxu0 0
        %1180 = vmatpush1.bf16.msra.mxu0 0
        %1181 = vmatprep.subr.bf16.mxu0 0
        %1182 = vmatpush1.bf16.msra.mxu0 0
        %1183 = vmatprep.subr.bf16.mxu0 0
        %1184 = vmatpush1.bf16.msra.mxu0 0
        %1185 = vmatprep.subr.bf16.mxu0 0
        %1186 = vmatpush1.bf16.msra.mxu0 0
        %1187 = vmatprep.subr.bf16.mxu0 0
        %1188 = vmatpush1.bf16.msra.mxu0 0
        %1189 = vmatprep.subr.bf16.mxu0 0
        %1190 = vmatpush1.bf16.msra.mxu0 0
        %1191 = vmatprep.subr.bf16.mxu0 0
        %1192 = vmatpush1.bf16.msra.mxu0 0
        %1193 = vmatprep.subr.bf16.mxu0 0
        %1194 = vmatpush1.bf16.msra.mxu0 0
        %1195 = vmatprep.subr.bf16.mxu0 0
        %1196 = vmatpush1.bf16.msra.mxu0 0
        %1197 = vmatprep.subr.bf16.mxu0 0
        %1198 = vmatpush1.bf16.msra.mxu0 0
        %1199 = vmatprep.subr.bf16.mxu0 0
        %1200 = vmatpush1.bf16.msra.mxu0 0
        %1201 = vmatprep.subr.bf16.mxu0 0
        %1202 = vmatpush1.bf16.msra.mxu0 0
        %1203 = vmatprep.subr.bf16.mxu0 0
        %1204 = vmatpush1.bf16.msra.mxu0 0
        %1205 = vmatprep.subr.bf16.mxu0 0
        %1206 = vmatpush1.bf16.msra.mxu0 0
        %1207 = vmatprep.mubr.bf16.mxu0 0
        %1208 = vmatmul.mubr.bf16.gmra.mrb[0].mxu0 %v1173
        %v1209 = vpop.f32.mrb[0].mxu0
        %v1210 = vadd.f32 0.0, %v1209
        %v1211 = vpop.f32.mrb[0].mxu0
        %v1212 = vadd.f32 0.0, %v1211
        %v1213 = vpop.f32.mrb[0].mxu0
        %v1214 = vpop.f32.mrb[0].mxu0
        %1215 = vdwg.mxu0
        %v1216 = vmax.f32 %v986, %v996
        %v1217 = vmax.f32 %v990, %v1000
        %v1218 = vmax.f32 %v1216, %v1006
        %v1219 = vmax.f32 %v1217, %v1010
        %v1220 = vmax.f32 %v1218, %v1016
        %v1221 = vmax.f32 %v1219, %v1020
        %v1222 = vmax.f32 %v1220, %v1026
        %v1223 = vmax.f32 %v1221, %v1030
        %v1224 = vmax.f32 %v1222, %v1036
        %v1225 = vmax.f32 %v1223, %v1040
        %v1226 = vmax.f32 %v1224, %v1046
        %v1227 = vmax.f32 %v1225, %v1050
        %v1228 = vmax.f32 %v1226, %v1056
        %v1229 = vmax.f32 %v1227, %v1060
        %v1230 = vmax.f32 %v1228, %v1066
        %v1231 = vmax.f32 %v1229, %v1070
        %v1232 = vmax.f32 %v1230, %v1076
        %v1233 = vmax.f32 %v1231, %v1080
        %v1234 = vmax.f32 %v1232, %v1086
        %v1235 = vmax.f32 %v1233, %v1090
        %v1236 = vmax.f32 %v1234, %v1096
        %v1237 = vmax.f32 %v1235, %v1100
        %v1238 = vmax.f32 %v1236, %v1106
        %v1239 = vmax.f32 %v1237, %v1110
        %v1240 = vmax.f32 %v1238, %v1116
        %v1241 = vmax.f32 %v1239, %v1120
        %v1242 = vmax.f32 %v1240, %v1126
        %v1243 = vmax.f32 %v1241, %v1130
        %v1244 = vmax.f32 %v1242, %v1136
        %v1245 = vmax.f32 %v1243, %v1140
        %v1246 = vmax.f32 %v1244, %v1245
        %v1247 = vrot.slane %v1246, 4
        %v1248 = vmax.f32 %v1246, %v1247
        %v1249 = vrot.slane %v1248, 2
        %v1250 = vmax.f32 %v1248, %v1249
        %v1251 = vrot.slane %v1250, 1
        %v1252 = vmax.f32 %v1250, %v1251
        %v1253 = vmax.f32 %v988, %v998
        %v1254 = vmax.f32 %v992, %v1002
        %v1255 = vmax.f32 %v1253, %v1008
        %v1256 = vmax.f32 %v1254, %v1012
        %v1257 = vmax.f32 %v1255, %v1018
        %v1258 = vmax.f32 %v1256, %v1022
        %v1259 = vmax.f32 %v1257, %v1028
        %v1260 = vmax.f32 %v1258, %v1032
        %v1261 = vmax.f32 %v1259, %v1038
        %v1262 = vmax.f32 %v1260, %v1042
        %v1263 = vmax.f32 %v1261, %v1048
        %v1264 = vmax.f32 %v1262, %v1052
        %v1265 = vmax.f32 %v1263, %v1058
        %v1266 = vmax.f32 %v1264, %v1062
        %v1267 = vmax.f32 %v1265, %v1068
        %v1268 = vmax.f32 %v1266, %v1072
        %v1269 = vmax.f32 %v1267, %v1078
        %v1270 = vmax.f32 %v1268, %v1082
        %v1271 = vmax.f32 %v1269, %v1088
        %v1272 = vmax.f32 %v1270, %v1092
        %v1273 = vmax.f32 %v1271, %v1098
        %v1274 = vmax.f32 %v1272, %v1102
        %v1275 = vmax.f32 %v1273, %v1108
        %v1276 = vmax.f32 %v1274, %v1112
        %v1277 = vmax.f32 %v1275, %v1118
        %v1278 = vmax.f32 %v1276, %v1122
        %v1279 = vmax.f32 %v1277, %v1128
        %v1280 = vmax.f32 %v1278, %v1132
        %v1281 = vmax.f32 %v1279, %v1138
        %v1282 = vmax.f32 %v1280, %v1142
        %v1283 = vmax.f32 %v1281, %v1282
        %v1284 = vrot.slane %v1283, 4
        %v1285 = vmax.f32 %v1283, %v1284
        %v1286 = vrot.slane %v1285, 2
        %v1287 = vmax.f32 %v1285, %v1286
        %v1288 = vrot.slane %v1287, 1
        %v1289 = vmax.f32 %v1287, %v1288
        %vm1290 = vcmask 1043456
        %v1291 = vsel %vm1290, %v1210, -inf
        %v1292 = vrot.slane %v1291, 4
        %v1293 = vmax.f32 %v1291, %v1292
        %v1294 = vrot.slane %v1293, 2
        %v1295 = vmax.f32 %v1293, %v1294
        %v1296 = vrot.slane %v1295, 1
        %v1297 = vmax.f32 %v1295, %v1296
        %v1298 = vsel %vm1290, %v1212, -inf
        %v1299 = vrot.slane %v1298, 4
        %v1300 = vmax.f32 %v1298, %v1299
        %v1301 = vrot.slane %v1300, 2
        %v1302 = vmax.f32 %v1300, %v1301
        %v1303 = vrot.slane %v1302, 1
        %v1304 = vmax.f32 %v1302, %v1303
        %v1305 = vmax.f32 %v1252, %v1297
        %v1306 = vmax.f32 %v1289, %v1304
        %v1307 = vsub.f32 %v986, %v1305
        %v1308 = vsub.f32 %v988, %v1306
        %v1309 = vsub.f32 %v990, %v1305
        %v1310 = vsub.f32 %v992, %v1306
        %v1311 = vsub.f32 %v996, %v1305
        %v1312 = vsub.f32 %v998, %v1306
        %v1313 = vsub.f32 %v1000, %v1305
        %v1314 = vsub.f32 %v1002, %v1306
        %v1315 = vsub.f32 %v1006, %v1305
        %v1316 = vsub.f32 %v1008, %v1306
        %v1317 = vsub.f32 %v1010, %v1305
        %v1318 = vsub.f32 %v1012, %v1306
        %v1319 = vsub.f32 %v1016, %v1305
        %v1320 = vsub.f32 %v1018, %v1306
        %v1321 = vsub.f32 %v1020, %v1305
        %v1322 = vsub.f32 %v1022, %v1306
        %v1323 = vsub.f32 %v1026, %v1305
        %v1324 = vsub.f32 %v1028, %v1306
        %v1325 = vsub.f32 %v1030, %v1305
        %v1326 = vsub.f32 %v1032, %v1306
        %v1327 = vsub.f32 %v1036, %v1305
        %v1328 = vsub.f32 %v1038, %v1306
        %v1329 = vsub.f32 %v1040, %v1305
        %v1330 = vsub.f32 %v1042, %v1306
        %v1331 = vsub.f32 %v1046, %v1305
        %v1332 = vsub.f32 %v1048, %v1306
        %v1333 = vsub.f32 %v1050, %v1305
        %v1334 = vsub.f32 %v1052, %v1306
        %v1335 = vsub.f32 %v1056, %v1305
        %v1336 = vsub.f32 %v1058, %v1306
        %v1337 = vsub.f32 %v1060, %v1305
        %v1338 = vsub.f32 %v1062, %v1306
        %v1339 = vsub.f32 %v1066, %v1305
        %v1340 = vsub.f32 %v1068, %v1306
        %v1341 = vsub.f32 %v1070, %v1305
        %v1342 = vsub.f32 %v1072, %v1306
        %v1343 = vsub.f32 %v1076, %v1305
        %v1344 = vsub.f32 %v1078, %v1306
        %v1345 = vsub.f32 %v1080, %v1305
        %v1346 = vsub.f32 %v1082, %v1306
        %v1347 = vsub.f32 %v1086, %v1305
        %v1348 = vsub.f32 %v1088, %v1306
        %v1349 = vsub.f32 %v1090, %v1305
        %v1350 = vsub.f32 %v1092, %v1306
        %v1351 = vsub.f32 %v1096, %v1305
        %v1352 = vsub.f32 %v1098, %v1306
        %v1353 = vsub.f32 %v1100, %v1305
        %v1354 = vsub.f32 %v1102, %v1306
        %v1355 = vsub.f32 %v1106, %v1305
        %v1356 = vsub.f32 %v1108, %v1306
        %v1357 = vsub.f32 %v1110, %v1305
        %v1358 = vsub.f32 %v1112, %v1306
        %v1359 = vsub.f32 %v1116, %v1305
        %v1360 = vsub.f32 %v1118, %v1306
        %v1361 = vsub.f32 %v1120, %v1305
        %v1362 = vsub.f32 %v1122, %v1306
        %v1363 = vsub.f32 %v1126, %v1305
        %v1364 = vsub.f32 %v1128, %v1306
        %v1365 = vsub.f32 %v1130, %v1305
        %v1366 = vsub.f32 %v1132, %v1306
        %v1367 = vsub.f32 %v1136, %v1305
        %v1368 = vsub.f32 %v1138, %v1306
        %v1369 = vsub.f32 %v1140, %v1305
        %v1370 = vsub.f32 %v1142, %v1306
        %v1371 = vmul.f32 %v1307, 1.442695
        %v1372 = vpow.pop %v1371
        %v1373 = vmul.f32 %v1308, 1.442695
        %v1374 = vpow.pop %v1373
        %v1375 = vmul.f32 %v1309, 1.442695
        %v1376 = vpow.pop %v1375
        %v1377 = vmul.f32 %v1310, 1.442695
        %v1378 = vpow.pop %v1377
        %v1379 = vmul.f32 %v1311, 1.442695
        %v1380 = vpow.pop %v1379
        %v1381 = vmul.f32 %v1312, 1.442695
        %v1382 = vpow.pop %v1381
        %v1383 = vmul.f32 %v1313, 1.442695
        %v1384 = vpow.pop %v1383
        %v1385 = vmul.f32 %v1314, 1.442695
        %v1386 = vpow.pop %v1385
        %v1387 = vmul.f32 %v1315, 1.442695
        %v1388 = vpow.pop %v1387
        %v1389 = vmul.f32 %v1316, 1.442695
        %v1390 = vpow.pop %v1389
        %v1391 = vmul.f32 %v1317, 1.442695
        %v1392 = vpow.pop %v1391
        %v1393 = vmul.f32 %v1318, 1.442695
        %v1394 = vpow.pop %v1393
        %v1395 = vmul.f32 %v1319, 1.442695
        %v1396 = vpow.pop %v1395
        %v1397 = vmul.f32 %v1320, 1.442695
        %v1398 = vpow.pop %v1397
        %v1399 = vmul.f32 %v1321, 1.442695
        %v1400 = vpow.pop %v1399
        %v1401 = vmul.f32 %v1322, 1.442695
        %v1402 = vpow.pop %v1401
        %v1403 = vmul.f32 %v1323, 1.442695
        %v1404 = vpow.pop %v1403
        %v1405 = vmul.f32 %v1324, 1.442695
        %v1406 = vpow.pop %v1405
        %v1407 = vmul.f32 %v1325, 1.442695
        %v1408 = vpow.pop %v1407
        %v1409 = vmul.f32 %v1326, 1.442695
        %v1410 = vpow.pop %v1409
        %v1411 = vmul.f32 %v1327, 1.442695
        %v1412 = vpow.pop %v1411
        %v1413 = vmul.f32 %v1328, 1.442695
        %v1414 = vpow.pop %v1413
        %v1415 = vmul.f32 %v1329, 1.442695
        %v1416 = vpow.pop %v1415
        %v1417 = vmul.f32 %v1330, 1.442695
        %v1418 = vpow.pop %v1417
        %v1419 = vmul.f32 %v1331, 1.442695
        %v1420 = vpow.pop %v1419
        %v1421 = vmul.f32 %v1332, 1.442695
        %v1422 = vpow.pop %v1421
        %v1423 = vmul.f32 %v1333, 1.442695
        %v1424 = vpow.pop %v1423
        %v1425 = vmul.f32 %v1334, 1.442695
        %v1426 = vpow.pop %v1425
        %v1427 = vmul.f32 %v1335, 1.442695
        %v1428 = vpow.pop %v1427
        %v1429 = vmul.f32 %v1336, 1.442695
        %v1430 = vpow.pop %v1429
        %v1431 = vmul.f32 %v1337, 1.442695
        %v1432 = vpow.pop %v1431
        %v1433 = vmul.f32 %v1338, 1.442695
        %v1434 = vpow.pop %v1433
        %v1435 = vmul.f32 %v1339, 1.442695
        %v1436 = vpow.pop %v1435
        %v1437 = vmul.f32 %v1340, 1.442695
        %v1438 = vpow.pop %v1437
        %v1439 = vmul.f32 %v1341, 1.442695
        %v1440 = vpow.pop %v1439
        %v1441 = vmul.f32 %v1342, 1.442695
        %v1442 = vpow.pop %v1441
        %v1443 = vmul.f32 %v1343, 1.442695
        %v1444 = vpow.pop %v1443
        %v1445 = vmul.f32 %v1344, 1.442695
        %v1446 = vpow.pop %v1445
        %v1447 = vmul.f32 %v1345, 1.442695
        %v1448 = vpow.pop %v1447
        %v1449 = vmul.f32 %v1346, 1.442695
        %v1450 = vpow.pop %v1449
        %v1451 = vmul.f32 %v1347, 1.442695
        %v1452 = vpow.pop %v1451
        %v1453 = vmul.f32 %v1348, 1.442695
        %v1454 = vpow.pop %v1453
        %v1455 = vmul.f32 %v1349, 1.442695
        %v1456 = vpow.pop %v1455
        %v1457 = vmul.f32 %v1350, 1.442695
        %v1458 = vpow.pop %v1457
        %v1459 = vmul.f32 %v1351, 1.442695
        %v1460 = vpow.pop %v1459
        %v1461 = vmul.f32 %v1352, 1.442695
        %v1462 = vpow.pop %v1461
        %v1463 = vmul.f32 %v1353, 1.442695
        %v1464 = vpow.pop %v1463
        %v1465 = vmul.f32 %v1354, 1.442695
        %v1466 = vpow.pop %v1465
        %v1467 = vmul.f32 %v1355, 1.442695
        %v1468 = vpow.pop %v1467
        %v1469 = vmul.f32 %v1356, 1.442695
        %v1470 = vpow.pop %v1469
        %v1471 = vmul.f32 %v1357, 1.442695
        %v1472 = vpow.pop %v1471
        %v1473 = vmul.f32 %v1358, 1.442695
        %v1474 = vpow.pop %v1473
        %v1475 = vmul.f32 %v1359, 1.442695
        %v1476 = vpow.pop %v1475
        %v1477 = vmul.f32 %v1360, 1.442695
        %v1478 = vpow.pop %v1477
        %v1479 = vmul.f32 %v1361, 1.442695
        %v1480 = vpow.pop %v1479
        %v1481 = vmul.f32 %v1362, 1.442695
        %v1482 = vpow.pop %v1481
        %v1483 = vmul.f32 %v1363, 1.442695
        %v1484 = vpow.pop %v1483
        %v1485 = vmul.f32 %v1364, 1.442695
        %v1486 = vpow.pop %v1485
        %v1487 = vmul.f32 %v1365, 1.442695
        %v1488 = vpow.pop %v1487
        %v1489 = vmul.f32 %v1366, 1.442695
        %v1490 = vpow.pop %v1489
        %v1491 = vmul.f32 %v1367, 1.442695
        %v1492 = vpow.pop %v1491
        %v1493 = vmul.f32 %v1368, 1.442695
        %v1494 = vpow.pop %v1493
        %v1495 = vmul.f32 %v1369, 1.442695
        %v1496 = vpow.pop %v1495
        %v1497 = vmul.f32 %v1370, 1.442695
        %v1498 = vpow.pop %v1497
        %v1499 = vsub.f32 %v1210, %v1305
        %v1500 = vsub.f32 %v1212, %v1306
        %v1501 = vmul.f32 %v1499, 1.442695
        %v1502 = vpow.pop %v1501
        %v1503 = vmul.f32 %v1500, 1.442695
        %v1504 = vpow.pop %v1503
        %v1505 = vadd.f32 %v1372, %v1376
        %v1506 = vadd.f32 %v1505, %v1380
        %v1507 = vadd.f32 %v1506, %v1384
        %v1508 = vadd.f32 %v1507, %v1388
        %v1509 = vadd.f32 %v1508, %v1392
        %v1510 = vadd.f32 %v1509, %v1396
        %v1511 = vadd.f32 %v1510, %v1400
        %v1512 = vadd.f32 %v1511, %v1404
        %v1513 = vadd.f32 %v1512, %v1408
        %v1514 = vadd.f32 %v1513, %v1412
        %v1515 = vadd.f32 %v1514, %v1416
        %v1516 = vadd.f32 %v1515, %v1420
        %v1517 = vadd.f32 %v1516, %v1424
        %v1518 = vadd.f32 %v1517, %v1428
        %v1519 = vadd.f32 %v1518, %v1432
        %v1520 = vadd.f32 %v1519, %v1436
        %v1521 = vadd.f32 %v1520, %v1440
        %v1522 = vadd.f32 %v1521, %v1444
        %v1523 = vadd.f32 %v1522, %v1448
        %v1524 = vadd.f32 %v1523, %v1452
        %v1525 = vadd.f32 %v1524, %v1456
        %v1526 = vadd.f32 %v1525, %v1460
        %v1527 = vadd.f32 %v1526, %v1464
        %v1528 = vadd.f32 %v1527, %v1468
        %v1529 = vadd.f32 %v1528, %v1472
        %v1530 = vadd.f32 %v1529, %v1476
        %v1531 = vadd.f32 %v1530, %v1480
        %v1532 = vadd.f32 %v1531, %v1484
        %v1533 = vadd.f32 %v1532, %v1488
        %v1534 = vadd.f32 %v1533, %v1492
        %v1535 = vadd.f32 %v1534, %v1496
        %v1536 = vrot.slane %v1535, 4
        %v1537 = vadd.f32 %v1535, %v1536
        %v1538 = vrot.slane %v1537, 2
        %v1539 = vadd.f32 %v1537, %v1538
        %v1540 = vrot.slane %v1539, 1
        %v1541 = vadd.f32 %v1539, %v1540
        %v1542 = vadd.f32 %v1374, %v1378
        %v1543 = vadd.f32 %v1542, %v1382
        %v1544 = vadd.f32 %v1543, %v1386
        %v1545 = vadd.f32 %v1544, %v1390
        %v1546 = vadd.f32 %v1545, %v1394
        %v1547 = vadd.f32 %v1546, %v1398
        %v1548 = vadd.f32 %v1547, %v1402
        %v1549 = vadd.f32 %v1548, %v1406
        %v1550 = vadd.f32 %v1549, %v1410
        %v1551 = vadd.f32 %v1550, %v1414
        %v1552 = vadd.f32 %v1551, %v1418
        %v1553 = vadd.f32 %v1552, %v1422
        %v1554 = vadd.f32 %v1553, %v1426
        %v1555 = vadd.f32 %v1554, %v1430
        %v1556 = vadd.f32 %v1555, %v1434
        %v1557 = vadd.f32 %v1556, %v1438
        %v1558 = vadd.f32 %v1557, %v1442
        %v1559 = vadd.f32 %v1558, %v1446
        %v1560 = vadd.f32 %v1559, %v1450
        %v1561 = vadd.f32 %v1560, %v1454
        %v1562 = vadd.f32 %v1561, %v1458
        %v1563 = vadd.f32 %v1562, %v1462
        %v1564 = vadd.f32 %v1563, %v1466
        %v1565 = vadd.f32 %v1564, %v1470
        %v1566 = vadd.f32 %v1565, %v1474
        %v1567 = vadd.f32 %v1566, %v1478
        %v1568 = vadd.f32 %v1567, %v1482
        %v1569 = vadd.f32 %v1568, %v1486
        %v1570 = vadd.f32 %v1569, %v1490
        %v1571 = vadd.f32 %v1570, %v1494
        %v1572 = vadd.f32 %v1571, %v1498
        %v1573 = vrot.slane %v1572, 4
        %v1574 = vadd.f32 %v1572, %v1573
        %v1575 = vrot.slane %v1574, 2
        %v1576 = vadd.f32 %v1574, %v1575
        %v1577 = vrot.slane %v1576, 1
        %v1578 = vadd.f32 %v1576, %v1577
        %v1579 = vsel %vm1290, %v1502, 0.0
        %v1580 = vrot.slane %v1579, 4
        %v1581 = vadd.f32 %v1579, %v1580
        %v1582 = vrot.slane %v1581, 2
        %v1583 = vadd.f32 %v1581, %v1582
        %v1584 = vrot.slane %v1583, 1
        %v1585 = vadd.f32 %v1583, %v1584
        %v1586 = vsel %vm1290, %v1504, 0.0
        %v1587 = vrot.slane %v1586, 4
        %v1588 = vadd.f32 %v1586, %v1587
        %v1589 = vrot.slane %v1588, 2
        %v1590 = vadd.f32 %v1588, %v1589
        %v1591 = vrot.slane %v1590, 1
        %v1592 = vadd.f32 %v1590, %v1591
        %v1593 = vadd.f32 %v1541, %v1585
        %v1594 = vadd.f32 %v1578, %v1592
        %v1595 = vpack.c.bf16 %v1376, %v1372
        %v1596 = vpack.c.bf16 %v1378, %v1374
        %v1597 = vpack.c.bf16 %v1384, %v1380
        %v1598 = vpack.c.bf16 %v1386, %v1382
        %v1599 = vpack.c.bf16 %v1392, %v1388
        %v1600 = vpack.c.bf16 %v1394, %v1390
        %v1601 = vpack.c.bf16 %v1400, %v1396
        %v1602 = vpack.c.bf16 %v1402, %v1398
        %v1603 = vpack.c.bf16 %v1408, %v1404
        %v1604 = vpack.c.bf16 %v1410, %v1406
        %v1605 = vpack.c.bf16 %v1416, %v1412
        %v1606 = vpack.c.bf16 %v1418, %v1414
        %v1607 = vpack.c.bf16 %v1424, %v1420
        %v1608 = vpack.c.bf16 %v1426, %v1422
        %v1609 = vpack.c.bf16 %v1432, %v1428
        %v1610 = vpack.c.bf16 %v1434, %v1430
        %v1611 = vpack.c.bf16 %v1440, %v1436
        %v1612 = vpack.c.bf16 %v1442, %v1438
        %v1613 = vpack.c.bf16 %v1448, %v1444
        %v1614 = vpack.c.bf16 %v1450, %v1446
        %v1615 = vpack.c.bf16 %v1456, %v1452
        %v1616 = vpack.c.bf16 %v1458, %v1454
        %v1617 = vpack.c.bf16 %v1464, %v1460
        %v1618 = vpack.c.bf16 %v1466, %v1462
        %v1619 = vpack.c.bf16 %v1472, %v1468
        %v1620 = vpack.c.bf16 %v1474, %v1470
        %v1621 = vpack.c.bf16 %v1480, %v1476
        %v1622 = vpack.c.bf16 %v1482, %v1478
        %v1623 = vpack.c.bf16 %v1488, %v1484
        %v1624 = vpack.c.bf16 %v1490, %v1486
        %v1625 = vpack.c.bf16 %v1496, %v1492
        %v1626 = vpack.c.bf16 %v1498, %v1494
        %v1627 = vpack.c.bf16 %v1502, %v1502
        %v1628 = vpack.c.bf16 %v1504, %v1504
        %v1633 = vunpack.c.l.b16 %v867
        %v1634 = vunpack.c.l.b16 %v868
        %v1635 = vunpack.c.l.b16 %v869
        %v1636 = vunpack.c.l.b16 %v870
        %v1637 = vpack.c.b16 %v1634, %v1633
        %v1638 = vpack.c.b16 %v1636, %v1635
        %vm1639 = vcmask 31744
        %v1641 = vsel %vm1639, %v1637, 0
        %v1644 = vsel %vm1639, %v1638, 0
        %vm1646 = vcmask 1041408
        %v1648 = vsel %vm1646, %v1627, 0
        %v1651 = vsel %vm1646, %v1628, 0
        %1653 = vmatprep.subr.bf16.mxu0 %v1651
        %1654 = vmatpush1.bf16.msra.mxu0 %v1648
        %1655 = vmatprep.subr.bf16.mxu0 0
        %1656 = vmatpush1.bf16.msra.mxu0 0
        %1657 = vmatprep.subr.bf16.mxu0 0
        %1658 = vmatpush1.bf16.msra.mxu0 0
        %1659 = vmatprep.subr.bf16.mxu0 0
        %1660 = vmatpush1.bf16.msra.mxu0 0
        %1661 = vmatprep.subr.bf16.mxu0 0
        %1662 = vmatpush1.bf16.msra.mxu0 0
        %1663 = vmatprep.subr.bf16.mxu0 0
        %1664 = vmatpush1.bf16.msra.mxu0 0
        %1665 = vmatprep.subr.bf16.mxu0 0
        %1666 = vmatpush1.bf16.msra.mxu0 0
        %1667 = vmatprep.subr.bf16.mxu0 0
        %1668 = vmatpush1.bf16.msra.mxu0 0
        %1669 = vmatprep.subr.bf16.mxu0 0
        %1670 = vmatpush1.bf16.msra.mxu0 0
        %1671 = vmatprep.subr.bf16.mxu0 0
        %1672 = vmatpush1.bf16.msra.mxu0 0
        %1673 = vmatprep.subr.bf16.mxu0 0
        %1674 = vmatpush1.bf16.msra.mxu0 0
        %1675 = vmatprep.subr.bf16.mxu0 0
        %1676 = vmatpush1.bf16.msra.mxu0 0
        %1677 = vmatprep.subr.bf16.mxu0 0
        %1678 = vmatpush1.bf16.msra.mxu0 0
        %1679 = vmatprep.subr.bf16.mxu0 0
        %1680 = vmatpush1.bf16.msra.mxu0 0
        %1681 = vmatprep.subr.bf16.mxu0 0
        %1682 = vmatpush1.bf16.msra.mxu0 0
        %1683 = vmatprep.subr.bf16.mxu0 0
        %1684 = vmatpush1.bf16.msra.mxu0 0
        %1685 = vmatprep.mubr.bf16.mxu0 0
        %1686 = vmatmul.mubr.bf16.gmra.mrb[0].mxu0 %v1641
        %v1687 = vpop.f32.mrb[0].mxu0
        %v1688 = vadd.f32 0.0, %v1687
        %v1689 = vpop.f32.mrb[0].mxu0
        %v1690 = vadd.f32 0.0, %v1689
        %v1691 = vpop.f32.mrb[0].mxu0
        %v1692 = vadd.f32 0.0, %v1691
        %v1693 = vpop.f32.mrb[0].mxu0
        %v1694 = vadd.f32 0.0, %v1693
        %1695 = vmatprep.mubr.bf16.mxu0 0
        %1696 = vmatmul.mubr.bf16.gmra.mrb[0].mxu0 %v1644
        %v1697 = vpop.f32.mrb[0].mxu0
        %v1698 = vadd.f32 0.0, %v1697
        %v1699 = vpop.f32.mrb[0].mxu0
        %v1700 = vadd.f32 0.0, %v1699
        %v1701 = vpop.f32.mrb[0].mxu0
        %v1702 = vadd.f32 0.0, %v1701
        %v1703 = vpop.f32.mrb[0].mxu0
        %v1704 = vadd.f32 0.0, %v1703
        %1705 = vdwg.mxu0
        %1706 = vmatprep.subr.bf16.mxu0 %v1596
        %1707 = vmatpush1.bf16.msra.mxu0 %v1595
        %1708 = vmatprep.subr.bf16.mxu0 %v1598
        %1709 = vmatpush1.bf16.msra.mxu0 %v1597
        %1710 = vmatprep.subr.bf16.mxu0 %v1600
        %1711 = vmatpush1.bf16.msra.mxu0 %v1599
        %1712 = vmatprep.subr.bf16.mxu0 %v1602
        %1713 = vmatpush1.bf16.msra.mxu0 %v1601
        %1714 = vmatprep.subr.bf16.mxu0 %v1604
        %1715 = vmatpush1.bf16.msra.mxu0 %v1603
        %1716 = vmatprep.subr.bf16.mxu0 %v1606
        %1717 = vmatpush1.bf16.msra.mxu0 %v1605
        %1718 = vmatprep.subr.bf16.mxu0 %v1608
        %1719 = vmatpush1.bf16.msra.mxu0 %v1607
        %1720 = vmatprep.subr.bf16.mxu0 %v1610
        %1721 = vmatpush1.bf16.msra.mxu0 %v1609
        %1722 = vmatprep.subr.bf16.mxu0 %v1612
        %1723 = vmatpush1.bf16.msra.mxu0 %v1611
        %1724 = vmatprep.subr.bf16.mxu0 %v1614
        %1725 = vmatpush1.bf16.msra.mxu0 %v1613
        %1726 = vmatprep.subr.bf16.mxu0 %v1616
        %1727 = vmatpush1.bf16.msra.mxu0 %v1615
        %1728 = vmatprep.subr.bf16.mxu0 %v1618
        %1729 = vmatpush1.bf16.msra.mxu0 %v1617
        %1730 = vmatprep.subr.bf16.mxu0 %v1620
        %1731 = vmatpush1.bf16.msra.mxu0 %v1619
        %1732 = vmatprep.subr.bf16.mxu0 %v1622
        %1733 = vmatpush1.bf16.msra.mxu0 %v1621
        %1734 = vmatprep.subr.bf16.mxu0 %v1624
        %1735 = vmatpush1.bf16.msra.mxu0 %v1623
        %1736 = vmatprep.subr.bf16.mxu0 %v1626
        %1737 = vmatpush1.bf16.msra.mxu0 %v1625
        %1738 = vmatprep.mubr.bf16.mxu0 %v848
        %1739 = vmatmul.mubr.bf16.gmra.mrb[0].mxu0 %v847
        %v1740 = vpop.f32.mrb[0].mxu0
        %v1741 = vadd.f32 %v1688, %v1740
        %v1742 = vpop.f32.mrb[0].mxu0
        %v1743 = vadd.f32 %v1690, %v1742
        %v1744 = vpop.f32.mrb[0].mxu0
        %v1745 = vadd.f32 %v1692, %v1744
        %v1746 = vpop.f32.mrb[0].mxu0
        %v1747 = vadd.f32 %v1694, %v1746
        %1748 = vmatprep.mubr.bf16.mxu0 %v850
        %1749 = vmatmul.mubr.bf16.gmra.mrb[0].mxu0 %v849
        %v1750 = vpop.f32.mrb[0].mxu0
        %v1751 = vadd.f32 %v1698, %v1750
        %v1752 = vpop.f32.mrb[0].mxu0
        %v1753 = vadd.f32 %v1700, %v1752
        %v1754 = vpop.f32.mrb[0].mxu0
        %v1755 = vadd.f32 %v1702, %v1754
        %v1756 = vpop.f32.mrb[0].mxu0
        %v1757 = vadd.f32 %v1704, %v1756
        %1758 = vdwg.mxu0
        %v1759 = vrcp.pop %v1593
        %v1760 = vrcp.pop %v1594
        %v1761 = vmul.f32 %v1741, %v1759
        %v1762 = vmul.f32 %v1743, %v1760
        %v1763 = vmul.f32 %v1745, %v1759
        %v1764 = vmul.f32 %v1747, %v1760
        %v1765 = vmul.f32 %v1751, %v1759
        %v1766 = vmul.f32 %v1753, %v1760
        %v1767 = vmul.f32 %v1755, %v1759
        %v1768 = vmul.f32 %v1757, %v1760
        %v1769 = vld [vmem:[%s4] sm:$0xff]
        %v1770 = vld [vmem:[%s4 + $0x8] sm:$0xff]
        %v1771 = vld [vmem:[%s4 + $0x10] sm:$0xff]
        %v1772 = vld [vmem:[%s4 + $0x18] sm:$0xff]
        %s1773 = scalar_lea.vmem %s2, 16
        %v1774 = vld [vmem:[%s1773] sm:$0xf]
        %v1775 = vld [vmem:[%s1773 + $0x4] sm:$0xf]
        %v1776 = vld [vmem:[%s1773 + $0x8] sm:$0xf]
        %v1777 = vld [vmem:[%s1773 + $0xc] sm:$0xf]
        %s1778 = scalar_lea.vmem %s3, 16
        %v1779 = vld [vmem:[%s1778] sm:$0xf]
        %v1780 = vld [vmem:[%s1778 + $0x4] sm:$0xf]
        %v1781 = vld [vmem:[%s1778 + $0x8] sm:$0xf]
        %v1782 = vld [vmem:[%s1778 + $0xc] sm:$0xf]
        %1783 = vxpose.xlu0.c.b16.start [1/8] %v835, 128
        %1784 = vxpose.xlu0.c.b16.cont [2/8] %v837, 128
        %1785 = vxpose.xlu0.c.b16.cont [3/8] 0, 128
        %1786 = vxpose.xlu0.c.b16.cont [4/8] 0, 128
        %1787 = vxpose.xlu0.c.b16.cont [5/8] 0, 128
        %1788 = vxpose.xlu0.c.b16.cont [6/8] 0, 128
        %1789 = vxpose.xlu0.c.b16.cont [7/8] 0, 128
        %1790 = vxpose.xlu0.c.b16.end [8/8] 0, 128
        %v1791 = vpop.trf.xlu0
        %v1792 = vpop.trf.xlu0
        %v1793 = vpop.trf.xlu0
        %v1794 = vpop.trf.xlu0
        %v1795 = vpop.trf.xlu0
        %v1796 = vpop.trf.xlu0
        %v1797 = vpop.trf.xlu0
        %v1798 = vpop.trf.xlu0
        %1799 = vxpose.xlu0.c.b16.start [1/8] %v836, 128
        %1800 = vxpose.xlu0.c.b16.cont [2/8] %v838, 128
        %1801 = vxpose.xlu0.c.b16.cont [3/8] 0, 128
        %1802 = vxpose.xlu0.c.b16.cont [4/8] 0, 128
        %1803 = vxpose.xlu0.c.b16.cont [5/8] 0, 128
        %1804 = vxpose.xlu0.c.b16.cont [6/8] 0, 128
        %1805 = vxpose.xlu0.c.b16.cont [7/8] 0, 128
        %1806 = vxpose.xlu0.c.b16.end [8/8] 0, 128
        %v1807 = vpop.trf.xlu0
        %v1808 = vpop.trf.xlu0
        %v1809 = vpop.trf.xlu0
        %v1810 = vpop.trf.xlu0
        %v1811 = vpop.trf.xlu0
        %v1812 = vpop.trf.xlu0
        %v1813 = vpop.trf.xlu0
        %v1814 = vpop.trf.xlu0
        %v1816 = vsel %vm469, %v1791, 0
        %v1819 = vsel %vm469, %v1792, 0
        %v1822 = vsel %vm469, %v1793, 0
        %v1825 = vsel %vm469, %v1794, 0
        %v1828 = vsel %vm469, %v1795, 0
        %v1831 = vsel %vm469, %v1796, 0
        %v1834 = vsel %vm469, %v1797, 0
        %v1837 = vsel %vm469, %v1798, 0
        %v1840 = vsel %vm469, %v1807, 0
        %v1843 = vsel %vm469, %v1808, 0
        %v1846 = vsel %vm469, %v1809, 0
        %v1849 = vsel %vm469, %v1810, 0
        %v1852 = vsel %vm469, %v1811, 0
        %v1855 = vsel %vm469, %v1812, 0
        %v1858 = vsel %vm469, %v1813, 0
        %v1861 = vsel %vm469, %v1814, 0
        %1863 = vmatprep.subr.bf16.mxu0 %v820
        %1864 = vmatpush1.bf16.msra.mxu0 %v819
        %1865 = vmatprep.subr.bf16.mxu0 %v822
        %1866 = vmatpush1.bf16.msra.mxu0 %v821
        %1867 = vmatprep.subr.bf16.mxu0 0
        %1868 = vmatpush1.bf16.msra.mxu0 0
        %1869 = vmatprep.subr.bf16.mxu0 0
        %1870 = vmatpush1.bf16.msra.mxu0 0
        %1871 = vmatprep.subr.bf16.mxu0 0
        %1872 = vmatpush1.bf16.msra.mxu0 0
        %1873 = vmatprep.subr.bf16.mxu0 0
        %1874 = vmatpush1.bf16.msra.mxu0 0
        %1875 = vmatprep.subr.bf16.mxu0 0
        %1876 = vmatpush1.bf16.msra.mxu0 0
        %1877 = vmatprep.subr.bf16.mxu0 0
        %1878 = vmatpush1.bf16.msra.mxu0 0
        %1879 = vmatprep.subr.bf16.mxu0 0
        %1880 = vmatpush1.bf16.msra.mxu0 0
        %1881 = vmatprep.subr.bf16.mxu0 0
        %1882 = vmatpush1.bf16.msra.mxu0 0
        %1883 = vmatprep.subr.bf16.mxu0 0
        %1884 = vmatpush1.bf16.msra.mxu0 0
        %1885 = vmatprep.subr.bf16.mxu0 0
        %1886 = vmatpush1.bf16.msra.mxu0 0
        %1887 = vmatprep.subr.bf16.mxu0 0
        %1888 = vmatpush1.bf16.msra.mxu0 0
        %1889 = vmatprep.subr.bf16.mxu0 0
        %1890 = vmatpush1.bf16.msra.mxu0 0
        %1891 = vmatprep.subr.bf16.mxu0 0
        %1892 = vmatpush1.bf16.msra.mxu0 0
        %1893 = vmatprep.subr.bf16.mxu0 0
        %1894 = vmatpush1.bf16.msra.mxu0 0
        %1895 = vmatprep.mubr.bf16.mxu0 0
        %1896 = vmatmul.mubr.bf16.gmra.mrb[0].mxu0 %v1816
        %v1897 = vpop.f32.mrb[0].mxu0
        %v1898 = vadd.f32 0.0, %v1897
        %v1899 = vpop.f32.mrb[0].mxu0
        %v1900 = vadd.f32 0.0, %v1899
        %v1901 = vpop.f32.mrb[0].mxu0
        %v1902 = vadd.f32 0.0, %v1901
        %v1903 = vpop.f32.mrb[0].mxu0
        %v1904 = vadd.f32 0.0, %v1903
        %1905 = vmatprep.mubr.bf16.mxu0 0
        %1906 = vmatmul.mubr.bf16.gmra.mrb[0].mxu0 %v1819
        %v1907 = vpop.f32.mrb[0].mxu0
        %v1908 = vadd.f32 0.0, %v1907
        %v1909 = vpop.f32.mrb[0].mxu0
        %v1910 = vadd.f32 0.0, %v1909
        %v1911 = vpop.f32.mrb[0].mxu0
        %v1912 = vadd.f32 0.0, %v1911
        %v1913 = vpop.f32.mrb[0].mxu0
        %v1914 = vadd.f32 0.0, %v1913
        %1915 = vmatprep.mubr.bf16.mxu0 0
        %1916 = vmatmul.mubr.bf16.gmra.mrb[0].mxu0 %v1822
        %v1917 = vpop.f32.mrb[0].mxu0
        %v1918 = vadd.f32 0.0, %v1917
        %v1919 = vpop.f32.mrb[0].mxu0
        %v1920 = vadd.f32 0.0, %v1919
        %v1921 = vpop.f32.mrb[0].mxu0
        %v1922 = vadd.f32 0.0, %v1921
        %v1923 = vpop.f32.mrb[0].mxu0
        %v1924 = vadd.f32 0.0, %v1923
        %1925 = vmatprep.mubr.bf16.mxu0 0
        %1926 = vmatmul.mubr.bf16.gmra.mrb[0].mxu0 %v1825
        %v1927 = vpop.f32.mrb[0].mxu0
        %v1928 = vadd.f32 0.0, %v1927
        %v1929 = vpop.f32.mrb[0].mxu0
        %v1930 = vadd.f32 0.0, %v1929
        %v1931 = vpop.f32.mrb[0].mxu0
        %v1932 = vadd.f32 0.0, %v1931
        %v1933 = vpop.f32.mrb[0].mxu0
        %v1934 = vadd.f32 0.0, %v1933
        %1935 = vmatprep.mubr.bf16.mxu0 0
        %1936 = vmatmul.mubr.bf16.gmra.mrb[0].mxu0 %v1828
        %v1937 = vpop.f32.mrb[0].mxu0
        %v1938 = vadd.f32 0.0, %v1937
        %v1939 = vpop.f32.mrb[0].mxu0
        %v1940 = vadd.f32 0.0, %v1939
        %v1941 = vpop.f32.mrb[0].mxu0
        %v1942 = vadd.f32 0.0, %v1941
        %v1943 = vpop.f32.mrb[0].mxu0
        %v1944 = vadd.f32 0.0, %v1943
        %1945 = vmatprep.mubr.bf16.mxu0 0
        %1946 = vmatmul.mubr.bf16.gmra.mrb[0].mxu0 %v1831
        %v1947 = vpop.f32.mrb[0].mxu0
        %v1948 = vadd.f32 0.0, %v1947
        %v1949 = vpop.f32.mrb[0].mxu0
        %v1950 = vadd.f32 0.0, %v1949
        %v1951 = vpop.f32.mrb[0].mxu0
        %v1952 = vadd.f32 0.0, %v1951
        %v1953 = vpop.f32.mrb[0].mxu0
        %v1954 = vadd.f32 0.0, %v1953
        %1955 = vmatprep.mubr.bf16.mxu0 0
        %1956 = vmatmul.mubr.bf16.gmra.mrb[0].mxu0 %v1834
        %v1957 = vpop.f32.mrb[0].mxu0
        %v1958 = vadd.f32 0.0, %v1957
        %v1959 = vpop.f32.mrb[0].mxu0
        %v1960 = vadd.f32 0.0, %v1959
        %v1961 = vpop.f32.mrb[0].mxu0
        %v1962 = vadd.f32 0.0, %v1961
        %v1963 = vpop.f32.mrb[0].mxu0
        %v1964 = vadd.f32 0.0, %v1963
        %1965 = vmatprep.mubr.bf16.mxu0 0
        %1966 = vmatmul.mubr.bf16.gmra.mrb[0].mxu0 %v1837
        %v1967 = vpop.f32.mrb[0].mxu0
        %v1968 = vadd.f32 0.0, %v1967
        %v1969 = vpop.f32.mrb[0].mxu0
        %v1970 = vadd.f32 0.0, %v1969
        %v1971 = vpop.f32.mrb[0].mxu0
        %v1972 = vadd.f32 0.0, %v1971
        %v1973 = vpop.f32.mrb[0].mxu0
        %v1974 = vadd.f32 0.0, %v1973
        %1975 = vmatprep.mubr.bf16.mxu0 0
        %1976 = vmatmul.mubr.bf16.gmra.mrb[0].mxu0 %v1840
        %v1977 = vpop.f32.mrb[0].mxu0
        %v1978 = vadd.f32 0.0, %v1977
        %v1979 = vpop.f32.mrb[0].mxu0
        %v1980 = vadd.f32 0.0, %v1979
        %v1981 = vpop.f32.mrb[0].mxu0
        %v1982 = vadd.f32 0.0, %v1981
        %v1983 = vpop.f32.mrb[0].mxu0
        %v1984 = vadd.f32 0.0, %v1983
        %1985 = vmatprep.mubr.bf16.mxu0 0
        %1986 = vmatmul.mubr.bf16.gmra.mrb[0].mxu0 %v1843
        %v1987 = vpop.f32.mrb[0].mxu0
        %v1988 = vadd.f32 0.0, %v1987
        %v1989 = vpop.f32.mrb[0].mxu0
        %v1990 = vadd.f32 0.0, %v1989
        %v1991 = vpop.f32.mrb[0].mxu0
        %v1992 = vadd.f32 0.0, %v1991
        %v1993 = vpop.f32.mrb[0].mxu0
        %v1994 = vadd.f32 0.0, %v1993
        %1995 = vmatprep.mubr.bf16.mxu0 0
        %1996 = vmatmul.mubr.bf16.gmra.mrb[0].mxu0 %v1846
        %v1997 = vpop.f32.mrb[0].mxu0
        %v1998 = vadd.f32 0.0, %v1997
        %v1999 = vpop.f32.mrb[0].mxu0
        %v2000 = vadd.f32 0.0, %v1999
        %v2001 = vpop.f32.mrb[0].mxu0
        %v2002 = vadd.f32 0.0, %v2001
        %v2003 = vpop.f32.mrb[0].mxu0
        %v2004 = vadd.f32 0.0, %v2003
        %2005 = vmatprep.mubr.bf16.mxu0 0
        %2006 = vmatmul.mubr.bf16.gmra.mrb[0].mxu0 %v1849
        %v2007 = vpop.f32.mrb[0].mxu0
        %v2008 = vadd.f32 0.0, %v2007
        %v2009 = vpop.f32.mrb[0].mxu0
        %v2010 = vadd.f32 0.0, %v2009
        %v2011 = vpop.f32.mrb[0].mxu0
        %v2012 = vadd.f32 0.0, %v2011
        %v2013 = vpop.f32.mrb[0].mxu0
        %v2014 = vadd.f32 0.0, %v2013
        %2015 = vmatprep.mubr.bf16.mxu0 0
        %2016 = vmatmul.mubr.bf16.gmra.mrb[0].mxu0 %v1852
        %v2017 = vpop.f32.mrb[0].mxu0
        %v2018 = vadd.f32 0.0, %v2017
        %v2019 = vpop.f32.mrb[0].mxu0
        %v2020 = vadd.f32 0.0, %v2019
        %v2021 = vpop.f32.mrb[0].mxu0
        %v2022 = vadd.f32 0.0, %v2021
        %v2023 = vpop.f32.mrb[0].mxu0
        %v2024 = vadd.f32 0.0, %v2023
        %2025 = vmatprep.mubr.bf16.mxu0 0
        %2026 = vmatmul.mubr.bf16.gmra.mrb[0].mxu0 %v1855
        %v2027 = vpop.f32.mrb[0].mxu0
        %v2028 = vadd.f32 0.0, %v2027
        %v2029 = vpop.f32.mrb[0].mxu0
        %v2030 = vadd.f32 0.0, %v2029
        %v2031 = vpop.f32.mrb[0].mxu0
        %v2032 = vadd.f32 0.0, %v2031
        %v2033 = vpop.f32.mrb[0].mxu0
        %v2034 = vadd.f32 0.0, %v2033
        %2035 = vmatprep.mubr.bf16.mxu0 0
        %2036 = vmatmul.mubr.bf16.gmra.mrb[0].mxu0 %v1858
        %v2037 = vpop.f32.mrb[0].mxu0
        %v2038 = vadd.f32 0.0, %v2037
        %v2039 = vpop.f32.mrb[0].mxu0
        %v2040 = vadd.f32 0.0, %v2039
        %v2041 = vpop.f32.mrb[0].mxu0
        %v2042 = vadd.f32 0.0, %v2041
        %v2043 = vpop.f32.mrb[0].mxu0
        %v2044 = vadd.f32 0.0, %v2043
        %2045 = vmatprep.mubr.bf16.mxu0 0
        %2046 = vmatmul.mubr.bf16.gmra.mrb[0].mxu0 %v1861
        %v2047 = vpop.f32.mrb[0].mxu0
        %v2048 = vadd.f32 0.0, %v2047
        %v2049 = vpop.f32.mrb[0].mxu0
        %v2050 = vadd.f32 0.0, %v2049
        %v2051 = vpop.f32.mrb[0].mxu0
        %v2052 = vadd.f32 0.0, %v2051
        %v2053 = vpop.f32.mrb[0].mxu0
        %v2054 = vadd.f32 0.0, %v2053
        %2055 = vdwg.mxu0
        %v2060 = vunpack.c.l.b16 %v1774
        %v2061 = vunpack.c.l.b16 %v1775
        %v2062 = vunpack.c.l.b16 %v1776
        %v2063 = vunpack.c.l.b16 %v1777
        %v2064 = vpack.c.b16 %v2061, %v2060
        %v2065 = vpack.c.b16 %v2063, %v2062
        %2068 = vxpose.xlu0.c.b16.start [1/8] %v2064, 128
        %2069 = vxpose.xlu0.c.b16.cont [2/8] %v2065, 128
        %2070 = vxpose.xlu0.c.b16.cont [3/8] 0, 128
        %2071 = vxpose.xlu0.c.b16.cont [4/8] 0, 128
        %2072 = vxpose.xlu0.c.b16.cont [5/8] 0, 128
        %2073 = vxpose.xlu0.c.b16.cont [6/8] 0, 128
        %2074 = vxpose.xlu0.c.b16.cont [7/8] 0, 128
        %2075 = vxpose.xlu0.c.b16.end [8/8] 0, 128
        %v2076 = vpop.trf.xlu0
        %v2077 = vpop.trf.xlu0
        %v2078 = vpop.trf.xlu0
        %v2079 = vpop.trf.xlu0
        %v2080 = vpop.trf.xlu0
        %v2081 = vpop.trf.xlu0
        %v2082 = vpop.trf.xlu0
        %v2083 = vpop.trf.xlu0
        %v2085 = vsel %vm469, %v2076, 0
        %2087 = vmatprep.subr.bf16.mxu0 %v820
        %2088 = vmatpush1.bf16.msra.mxu0 %v819
        %2089 = vmatprep.subr.bf16.mxu0 %v822
        %2090 = vmatpush1.bf16.msra.mxu0 %v821
        %2091 = vmatprep.subr.bf16.mxu0 0
        %2092 = vmatpush1.bf16.msra.mxu0 0
        %2093 = vmatprep.subr.bf16.mxu0 0
        %2094 = vmatpush1.bf16.msra.mxu0 0
        %2095 = vmatprep.subr.bf16.mxu0 0
        %2096 = vmatpush1.bf16.msra.mxu0 0
        %2097 = vmatprep.subr.bf16.mxu0 0
        %2098 = vmatpush1.bf16.msra.mxu0 0
        %2099 = vmatprep.subr.bf16.mxu0 0
        %2100 = vmatpush1.bf16.msra.mxu0 0
        %2101 = vmatprep.subr.bf16.mxu0 0
        %2102 = vmatpush1.bf16.msra.mxu0 0
        %2103 = vmatprep.subr.bf16.mxu0 0
        %2104 = vmatpush1.bf16.msra.mxu0 0
        %2105 = vmatprep.subr.bf16.mxu0 0
        %2106 = vmatpush1.bf16.msra.mxu0 0
        %2107 = vmatprep.subr.bf16.mxu0 0
        %2108 = vmatpush1.bf16.msra.mxu0 0
        %2109 = vmatprep.subr.bf16.mxu0 0
        %2110 = vmatpush1.bf16.msra.mxu0 0
        %2111 = vmatprep.subr.bf16.mxu0 0
        %2112 = vmatpush1.bf16.msra.mxu0 0
        %2113 = vmatprep.subr.bf16.mxu0 0
        %2114 = vmatpush1.bf16.msra.mxu0 0
        %2115 = vmatprep.subr.bf16.mxu0 0
        %2116 = vmatpush1.bf16.msra.mxu0 0
        %2117 = vmatprep.subr.bf16.mxu0 0
        %2118 = vmatpush1.bf16.msra.mxu0 0
        %2119 = vmatprep.mubr.bf16.mxu0 0
        %2120 = vmatmul.mubr.bf16.gmra.mrb[0].mxu0 %v2085
        %v2121 = vpop.f32.mrb[0].mxu0
        %v2122 = vadd.f32 0.0, %v2121
        %v2123 = vpop.f32.mrb[0].mxu0
        %v2124 = vadd.f32 0.0, %v2123
        %v2125 = vpop.f32.mrb[0].mxu0
        %v2126 = vpop.f32.mrb[0].mxu0
        %2127 = vdwg.mxu0
        %v2128 = vmax.f32 %v1898, %v1908
        %v2129 = vmax.f32 %v1902, %v1912
        %v2130 = vmax.f32 %v2128, %v1918
        %v2131 = vmax.f32 %v2129, %v1922
        %v2132 = vmax.f32 %v2130, %v1928
        %v2133 = vmax.f32 %v2131, %v1932
        %v2134 = vmax.f32 %v2132, %v1938
        %v2135 = vmax.f32 %v2133, %v1942
        %v2136 = vmax.f32 %v2134, %v1948
        %v2137 = vmax.f32 %v2135, %v1952
        %v2138 = vmax.f32 %v2136, %v1958
        %v2139 = vmax.f32 %v2137, %v1962
        %v2140 = vmax.f32 %v2138, %v1968
        %v2141 = vmax.f32 %v2139, %v1972
        %v2142 = vmax.f32 %v2140, %v1978
        %v2143 = vmax.f32 %v2141, %v1982
        %v2144 = vmax.f32 %v2142, %v1988
        %v2145 = vmax.f32 %v2143, %v1992
        %v2146 = vmax.f32 %v2144, %v1998
        %v2147 = vmax.f32 %v2145, %v2002
        %v2148 = vmax.f32 %v2146, %v2008
        %v2149 = vmax.f32 %v2147, %v2012
        %v2150 = vmax.f32 %v2148, %v2018
        %v2151 = vmax.f32 %v2149, %v2022
        %v2152 = vmax.f32 %v2150, %v2028
        %v2153 = vmax.f32 %v2151, %v2032
        %v2154 = vmax.f32 %v2152, %v2038
        %v2155 = vmax.f32 %v2153, %v2042
        %v2156 = vmax.f32 %v2154, %v2048
        %v2157 = vmax.f32 %v2155, %v2052
        %v2158 = vmax.f32 %v2156, %v2157
        %v2159 = vrot.slane %v2158, 4
        %v2160 = vmax.f32 %v2158, %v2159
        %v2161 = vrot.slane %v2160, 2
        %v2162 = vmax.f32 %v2160, %v2161
        %v2163 = vrot.slane %v2162, 1
        %v2164 = vmax.f32 %v2162, %v2163
        %v2165 = vmax.f32 %v1900, %v1910
        %v2166 = vmax.f32 %v1904, %v1914
        %v2167 = vmax.f32 %v2165, %v1920
        %v2168 = vmax.f32 %v2166, %v1924
        %v2169 = vmax.f32 %v2167, %v1930
        %v2170 = vmax.f32 %v2168, %v1934
        %v2171 = vmax.f32 %v2169, %v1940
        %v2172 = vmax.f32 %v2170, %v1944
        %v2173 = vmax.f32 %v2171, %v1950
        %v2174 = vmax.f32 %v2172, %v1954
        %v2175 = vmax.f32 %v2173, %v1960
        %v2176 = vmax.f32 %v2174, %v1964
        %v2177 = vmax.f32 %v2175, %v1970
        %v2178 = vmax.f32 %v2176, %v1974
        %v2179 = vmax.f32 %v2177, %v1980
        %v2180 = vmax.f32 %v2178, %v1984
        %v2181 = vmax.f32 %v2179, %v1990
        %v2182 = vmax.f32 %v2180, %v1994
        %v2183 = vmax.f32 %v2181, %v2000
        %v2184 = vmax.f32 %v2182, %v2004
        %v2185 = vmax.f32 %v2183, %v2010
        %v2186 = vmax.f32 %v2184, %v2014
        %v2187 = vmax.f32 %v2185, %v2020
        %v2188 = vmax.f32 %v2186, %v2024
        %v2189 = vmax.f32 %v2187, %v2030
        %v2190 = vmax.f32 %v2188, %v2034
        %v2191 = vmax.f32 %v2189, %v2040
        %v2192 = vmax.f32 %v2190, %v2044
        %v2193 = vmax.f32 %v2191, %v2050
        %v2194 = vmax.f32 %v2192, %v2054
        %v2195 = vmax.f32 %v2193, %v2194
        %v2196 = vrot.slane %v2195, 4
        %v2197 = vmax.f32 %v2195, %v2196
        %v2198 = vrot.slane %v2197, 2
        %v2199 = vmax.f32 %v2197, %v2198
        %v2200 = vrot.slane %v2199, 1
        %v2201 = vmax.f32 %v2199, %v2200
        %v2202 = vsel %vm1290, %v2122, -inf
        %v2203 = vrot.slane %v2202, 4
        %v2204 = vmax.f32 %v2202, %v2203
        %v2205 = vrot.slane %v2204, 2
        %v2206 = vmax.f32 %v2204, %v2205
        %v2207 = vrot.slane %v2206, 1
        %v2208 = vmax.f32 %v2206, %v2207
        %v2209 = vsel %vm1290, %v2124, -inf
        %v2210 = vrot.slane %v2209, 4
        %v2211 = vmax.f32 %v2209, %v2210
        %v2212 = vrot.slane %v2211, 2
        %v2213 = vmax.f32 %v2211, %v2212
        %v2214 = vrot.slane %v2213, 1
        %v2215 = vmax.f32 %v2213, %v2214
        %v2216 = vmax.f32 %v2164, %v2208
        %v2217 = vmax.f32 %v2201, %v2215
        %v2218 = vsub.f32 %v1898, %v2216
        %v2219 = vsub.f32 %v1900, %v2217
        %v2220 = vsub.f32 %v1902, %v2216
        %v2221 = vsub.f32 %v1904, %v2217
        %v2222 = vsub.f32 %v1908, %v2216
        %v2223 = vsub.f32 %v1910, %v2217
        %v2224 = vsub.f32 %v1912, %v2216
        %v2225 = vsub.f32 %v1914, %v2217
        %v2226 = vsub.f32 %v1918, %v2216
        %v2227 = vsub.f32 %v1920, %v2217
        %v2228 = vsub.f32 %v1922, %v2216
        %v2229 = vsub.f32 %v1924, %v2217
        %v2230 = vsub.f32 %v1928, %v2216
        %v2231 = vsub.f32 %v1930, %v2217
        %v2232 = vsub.f32 %v1932, %v2216
        %v2233 = vsub.f32 %v1934, %v2217
        %v2234 = vsub.f32 %v1938, %v2216
        %v2235 = vsub.f32 %v1940, %v2217
        %v2236 = vsub.f32 %v1942, %v2216
        %v2237 = vsub.f32 %v1944, %v2217
        %v2238 = vsub.f32 %v1948, %v2216
        %v2239 = vsub.f32 %v1950, %v2217
        %v2240 = vsub.f32 %v1952, %v2216
        %v2241 = vsub.f32 %v1954, %v2217
        %v2242 = vsub.f32 %v1958, %v2216
        %v2243 = vsub.f32 %v1960, %v2217
        %v2244 = vsub.f32 %v1962, %v2216
        %v2245 = vsub.f32 %v1964, %v2217
        %v2246 = vsub.f32 %v1968, %v2216
        %v2247 = vsub.f32 %v1970, %v2217
        %v2248 = vsub.f32 %v1972, %v2216
        %v2249 = vsub.f32 %v1974, %v2217
        %v2250 = vsub.f32 %v1978, %v2216
        %v2251 = vsub.f32 %v1980, %v2217
        %v2252 = vsub.f32 %v1982, %v2216
        %v2253 = vsub.f32 %v1984, %v2217
        %v2254 = vsub.f32 %v1988, %v2216
        %v2255 = vsub.f32 %v1990, %v2217
        %v2256 = vsub.f32 %v1992, %v2216
        %v2257 = vsub.f32 %v1994, %v2217
        %v2258 = vsub.f32 %v1998, %v2216
        %v2259 = vsub.f32 %v2000, %v2217
        %v2260 = vsub.f32 %v2002, %v2216
        %v2261 = vsub.f32 %v2004, %v2217
        %v2262 = vsub.f32 %v2008, %v2216
        %v2263 = vsub.f32 %v2010, %v2217
        %v2264 = vsub.f32 %v2012, %v2216
        %v2265 = vsub.f32 %v2014, %v2217
        %v2266 = vsub.f32 %v2018, %v2216
        %v2267 = vsub.f32 %v2020, %v2217
        %v2268 = vsub.f32 %v2022, %v2216
        %v2269 = vsub.f32 %v2024, %v2217
        %v2270 = vsub.f32 %v2028, %v2216
        %v2271 = vsub.f32 %v2030, %v2217
        %v2272 = vsub.f32 %v2032, %v2216
        %v2273 = vsub.f32 %v2034, %v2217
        %v2274 = vsub.f32 %v2038, %v2216
        %v2275 = vsub.f32 %v2040, %v2217
        %v2276 = vsub.f32 %v2042, %v2216
        %v2277 = vsub.f32 %v2044, %v2217
        %v2278 = vsub.f32 %v2048, %v2216
        %v2279 = vsub.f32 %v2050, %v2217
        %v2280 = vsub.f32 %v2052, %v2216
        %v2281 = vsub.f32 %v2054, %v2217
        %v2282 = vmul.f32 %v2218, 1.442695
        %v2283 = vpow.pop %v2282
        %v2284 = vmul.f32 %v2219, 1.442695
        %v2285 = vpow.pop %v2284
        %v2286 = vmul.f32 %v2220, 1.442695
        %v2287 = vpow.pop %v2286
        %v2288 = vmul.f32 %v2221, 1.442695
        %v2289 = vpow.pop %v2288
        %v2290 = vmul.f32 %v2222, 1.442695
        %v2291 = vpow.pop %v2290
        %v2292 = vmul.f32 %v2223, 1.442695
        %v2293 = vpow.pop %v2292
        %v2294 = vmul.f32 %v2224, 1.442695
        %v2295 = vpow.pop %v2294
        %v2296 = vmul.f32 %v2225, 1.442695
        %v2297 = vpow.pop %v2296
        %v2298 = vmul.f32 %v2226, 1.442695
        %v2299 = vpow.pop %v2298
        %v2300 = vmul.f32 %v2227, 1.442695
        %v2301 = vpow.pop %v2300
        %v2302 = vmul.f32 %v2228, 1.442695
        %v2303 = vpow.pop %v2302
        %v2304 = vmul.f32 %v2229, 1.442695
        %v2305 = vpow.pop %v2304
        %v2306 = vmul.f32 %v2230, 1.442695
        %v2307 = vpow.pop %v2306
        %v2308 = vmul.f32 %v2231, 1.442695
        %v2309 = vpow.pop %v2308
        %v2310 = vmul.f32 %v2232, 1.442695
        %v2311 = vpow.pop %v2310
        %v2312 = vmul.f32 %v2233, 1.442695
        %v2313 = vpow.pop %v2312
        %v2314 = vmul.f32 %v2234, 1.442695
        %v2315 = vpow.pop %v2314
        %v2316 = vmul.f32 %v2235, 1.442695
        %v2317 = vpow.pop %v2316
        %v2318 = vmul.f32 %v2236, 1.442695
        %v2319 = vpow.pop %v2318
        %v2320 = vmul.f32 %v2237, 1.442695
        %v2321 = vpow.pop %v2320
        %v2322 = vmul.f32 %v2238, 1.442695
        %v2323 = vpow.pop %v2322
        %v2324 = vmul.f32 %v2239, 1.442695
        %v2325 = vpow.pop %v2324
        %v2326 = vmul.f32 %v2240, 1.442695
        %v2327 = vpow.pop %v2326
        %v2328 = vmul.f32 %v2241, 1.442695
        %v2329 = vpow.pop %v2328
        %v2330 = vmul.f32 %v2242, 1.442695
        %v2331 = vpow.pop %v2330
        %v2332 = vmul.f32 %v2243, 1.442695
        %v2333 = vpow.pop %v2332
        %v2334 = vmul.f32 %v2244, 1.442695
        %v2335 = vpow.pop %v2334
        %v2336 = vmul.f32 %v2245, 1.442695
        %v2337 = vpow.pop %v2336
        %v2338 = vmul.f32 %v2246, 1.442695
        %v2339 = vpow.pop %v2338
        %v2340 = vmul.f32 %v2247, 1.442695
        %v2341 = vpow.pop %v2340
        %v2342 = vmul.f32 %v2248, 1.442695
        %v2343 = vpow.pop %v2342
        %v2344 = vmul.f32 %v2249, 1.442695
        %v2345 = vpow.pop %v2344
        %v2346 = vmul.f32 %v2250, 1.442695
        %v2347 = vpow.pop %v2346
        %v2348 = vmul.f32 %v2251, 1.442695
        %v2349 = vpow.pop %v2348
        %v2350 = vmul.f32 %v2252, 1.442695
        %v2351 = vpow.pop %v2350
        %v2352 = vmul.f32 %v2253, 1.442695
        %v2353 = vpow.pop %v2352
        %v2354 = vmul.f32 %v2254, 1.442695
        %v2355 = vpow.pop %v2354
        %v2356 = vmul.f32 %v2255, 1.442695
        %v2357 = vpow.pop %v2356
        %v2358 = vmul.f32 %v2256, 1.442695
        %v2359 = vpow.pop %v2358
        %v2360 = vmul.f32 %v2257, 1.442695
        %v2361 = vpow.pop %v2360
        %v2362 = vmul.f32 %v2258, 1.442695
        %v2363 = vpow.pop %v2362
        %v2364 = vmul.f32 %v2259, 1.442695
        %v2365 = vpow.pop %v2364
        %v2366 = vmul.f32 %v2260, 1.442695
        %v2367 = vpow.pop %v2366
        %v2368 = vmul.f32 %v2261, 1.442695
        %v2369 = vpow.pop %v2368
        %v2370 = vmul.f32 %v2262, 1.442695
        %v2371 = vpow.pop %v2370
        %v2372 = vmul.f32 %v2263, 1.442695
        %v2373 = vpow.pop %v2372
        %v2374 = vmul.f32 %v2264, 1.442695
        %v2375 = vpow.pop %v2374
        %v2376 = vmul.f32 %v2265, 1.442695
        %v2377 = vpow.pop %v2376
        %v2378 = vmul.f32 %v2266, 1.442695
        %v2379 = vpow.pop %v2378
        %v2380 = vmul.f32 %v2267, 1.442695
        %v2381 = vpow.pop %v2380
        %v2382 = vmul.f32 %v2268, 1.442695
        %v2383 = vpow.pop %v2382
        %v2384 = vmul.f32 %v2269, 1.442695
        %v2385 = vpow.pop %v2384
        %v2386 = vmul.f32 %v2270, 1.442695
        %v2387 = vpow.pop %v2386
        %v2388 = vmul.f32 %v2271, 1.442695
        %v2389 = vpow.pop %v2388
        %v2390 = vmul.f32 %v2272, 1.442695
        %v2391 = vpow.pop %v2390
        %v2392 = vmul.f32 %v2273, 1.442695
        %v2393 = vpow.pop %v2392
        %v2394 = vmul.f32 %v2274, 1.442695
        %v2395 = vpow.pop %v2394
        %v2396 = vmul.f32 %v2275, 1.442695
        %v2397 = vpow.pop %v2396
        %v2398 = vmul.f32 %v2276, 1.442695
        %v2399 = vpow.pop %v2398
        %v2400 = vmul.f32 %v2277, 1.442695
        %v2401 = vpow.pop %v2400
        %v2402 = vmul.f32 %v2278, 1.442695
        %v2403 = vpow.pop %v2402
        %v2404 = vmul.f32 %v2279, 1.442695
        %v2405 = vpow.pop %v2404
        %v2406 = vmul.f32 %v2280, 1.442695
        %v2407 = vpow.pop %v2406
        %v2408 = vmul.f32 %v2281, 1.442695
        %v2409 = vpow.pop %v2408
        %v2410 = vsub.f32 %v2122, %v2216
        %v2411 = vsub.f32 %v2124, %v2217
        %v2412 = vmul.f32 %v2410, 1.442695
        %v2413 = vpow.pop %v2412
        %v2414 = vmul.f32 %v2411, 1.442695
        %v2415 = vpow.pop %v2414
        %v2416 = vadd.f32 %v2283, %v2287
        %v2417 = vadd.f32 %v2416, %v2291
        %v2418 = vadd.f32 %v2417, %v2295
        %v2419 = vadd.f32 %v2418, %v2299
        %v2420 = vadd.f32 %v2419, %v2303
        %v2421 = vadd.f32 %v2420, %v2307
        %v2422 = vadd.f32 %v2421, %v2311
        %v2423 = vadd.f32 %v2422, %v2315
        %v2424 = vadd.f32 %v2423, %v2319
        %v2425 = vadd.f32 %v2424, %v2323
        %v2426 = vadd.f32 %v2425, %v2327
        %v2427 = vadd.f32 %v2426, %v2331
        %v2428 = vadd.f32 %v2427, %v2335
        %v2429 = vadd.f32 %v2428, %v2339
        %v2430 = vadd.f32 %v2429, %v2343
        %v2431 = vadd.f32 %v2430, %v2347
        %v2432 = vadd.f32 %v2431, %v2351
        %v2433 = vadd.f32 %v2432, %v2355
        %v2434 = vadd.f32 %v2433, %v2359
        %v2435 = vadd.f32 %v2434, %v2363
        %v2436 = vadd.f32 %v2435, %v2367
        %v2437 = vadd.f32 %v2436, %v2371
        %v2438 = vadd.f32 %v2437, %v2375
        %v2439 = vadd.f32 %v2438, %v2379
        %v2440 = vadd.f32 %v2439, %v2383
        %v2441 = vadd.f32 %v2440, %v2387
        %v2442 = vadd.f32 %v2441, %v2391
        %v2443 = vadd.f32 %v2442, %v2395
        %v2444 = vadd.f32 %v2443, %v2399
        %v2445 = vadd.f32 %v2444, %v2403
        %v2446 = vadd.f32 %v2445, %v2407
        %v2447 = vrot.slane %v2446, 4
        %v2448 = vadd.f32 %v2446, %v2447
        %v2449 = vrot.slane %v2448, 2
        %v2450 = vadd.f32 %v2448, %v2449
        %v2451 = vrot.slane %v2450, 1
        %v2452 = vadd.f32 %v2450, %v2451
        %v2453 = vadd.f32 %v2285, %v2289
        %v2454 = vadd.f32 %v2453, %v2293
        %v2455 = vadd.f32 %v2454, %v2297
        %v2456 = vadd.f32 %v2455, %v2301
        %v2457 = vadd.f32 %v2456, %v2305
        %v2458 = vadd.f32 %v2457, %v2309
        %v2459 = vadd.f32 %v2458, %v2313
        %v2460 = vadd.f32 %v2459, %v2317
        %v2461 = vadd.f32 %v2460, %v2321
        %v2462 = vadd.f32 %v2461, %v2325
        %v2463 = vadd.f32 %v2462, %v2329
        %v2464 = vadd.f32 %v2463, %v2333
        %v2465 = vadd.f32 %v2464, %v2337
        %v2466 = vadd.f32 %v2465, %v2341
        %v2467 = vadd.f32 %v2466, %v2345
        %v2468 = vadd.f32 %v2467, %v2349
        %v2469 = vadd.f32 %v2468, %v2353
        %v2470 = vadd.f32 %v2469, %v2357
        %v2471 = vadd.f32 %v2470, %v2361
        %v2472 = vadd.f32 %v2471, %v2365
        %v2473 = vadd.f32 %v2472, %v2369
        %v2474 = vadd.f32 %v2473, %v2373
        %v2475 = vadd.f32 %v2474, %v2377
        %v2476 = vadd.f32 %v2475, %v2381
        %v2477 = vadd.f32 %v2476, %v2385
        %v2478 = vadd.f32 %v2477, %v2389
        %v2479 = vadd.f32 %v2478, %v2393
        %v2480 = vadd.f32 %v2479, %v2397
        %v2481 = vadd.f32 %v2480, %v2401
        %v2482 = vadd.f32 %v2481, %v2405
        %v2483 = vadd.f32 %v2482, %v2409
        %v2484 = vrot.slane %v2483, 4
        %v2485 = vadd.f32 %v2483, %v2484
        %v2486 = vrot.slane %v2485, 2
        %v2487 = vadd.f32 %v2485, %v2486
        %v2488 = vrot.slane %v2487, 1
        %v2489 = vadd.f32 %v2487, %v2488
        %v2490 = vsel %vm1290, %v2413, 0.0
        %v2491 = vrot.slane %v2490, 4
        %v2492 = vadd.f32 %v2490, %v2491
        %v2493 = vrot.slane %v2492, 2
        %v2494 = vadd.f32 %v2492, %v2493
        %v2495 = vrot.slane %v2494, 1
        %v2496 = vadd.f32 %v2494, %v2495
        %v2497 = vsel %vm1290, %v2415, 0.0
        %v2498 = vrot.slane %v2497, 4
        %v2499 = vadd.f32 %v2497, %v2498
        %v2500 = vrot.slane %v2499, 2
        %v2501 = vadd.f32 %v2499, %v2500
        %v2502 = vrot.slane %v2501, 1
        %v2503 = vadd.f32 %v2501, %v2502
        %v2504 = vadd.f32 %v2452, %v2496
        %v2505 = vadd.f32 %v2489, %v2503
        %v2506 = vpack.c.bf16 %v2287, %v2283
        %v2507 = vpack.c.bf16 %v2289, %v2285
        %v2508 = vpack.c.bf16 %v2295, %v2291
        %v2509 = vpack.c.bf16 %v2297, %v2293
        %v2510 = vpack.c.bf16 %v2303, %v2299
        %v2511 = vpack.c.bf16 %v2305, %v2301
        %v2512 = vpack.c.bf16 %v2311, %v2307
        %v2513 = vpack.c.bf16 %v2313, %v2309
        %v2514 = vpack.c.bf16 %v2319, %v2315
        %v2515 = vpack.c.bf16 %v2321, %v2317
        %v2516 = vpack.c.bf16 %v2327, %v2323
        %v2517 = vpack.c.bf16 %v2329, %v2325
        %v2518 = vpack.c.bf16 %v2335, %v2331
        %v2519 = vpack.c.bf16 %v2337, %v2333
        %v2520 = vpack.c.bf16 %v2343, %v2339
        %v2521 = vpack.c.bf16 %v2345, %v2341
        %v2522 = vpack.c.bf16 %v2351, %v2347
        %v2523 = vpack.c.bf16 %v2353, %v2349
        %v2524 = vpack.c.bf16 %v2359, %v2355
        %v2525 = vpack.c.bf16 %v2361, %v2357
        %v2526 = vpack.c.bf16 %v2367, %v2363
        %v2527 = vpack.c.bf16 %v2369, %v2365
        %v2528 = vpack.c.bf16 %v2375, %v2371
        %v2529 = vpack.c.bf16 %v2377, %v2373
        %v2530 = vpack.c.bf16 %v2383, %v2379
        %v2531 = vpack.c.bf16 %v2385, %v2381
        %v2532 = vpack.c.bf16 %v2391, %v2387
        %v2533 = vpack.c.bf16 %v2393, %v2389
        %v2534 = vpack.c.bf16 %v2399, %v2395
        %v2535 = vpack.c.bf16 %v2401, %v2397
        %v2536 = vpack.c.bf16 %v2407, %v2403
        %v2537 = vpack.c.bf16 %v2409, %v2405
        %v2538 = vpack.c.bf16 %v2413, %v2413
        %v2539 = vpack.c.bf16 %v2415, %v2415
        %v2544 = vunpack.c.l.b16 %v1779
        %v2545 = vunpack.c.l.b16 %v1780
        %v2546 = vunpack.c.l.b16 %v1781
        %v2547 = vunpack.c.l.b16 %v1782
        %v2548 = vpack.c.b16 %v2545, %v2544
        %v2549 = vpack.c.b16 %v2547, %v2546
        %v2551 = vsel %vm1639, %v2548, 0
        %v2554 = vsel %vm1639, %v2549, 0
        %v2557 = vsel %vm1646, %v2538, 0
        %v2560 = vsel %vm1646, %v2539, 0
        %2562 = vmatprep.subr.bf16.mxu0 %v2560
        %2563 = vmatpush1.bf16.msra.mxu0 %v2557
        %2564 = vmatprep.subr.bf16.mxu0 0
        %2565 = vmatpush1.bf16.msra.mxu0 0
        %2566 = vmatprep.subr.bf16.mxu0 0
        %2567 = vmatpush1.bf16.msra.mxu0 0
        %2568 = vmatprep.subr.bf16.mxu0 0
        %2569 = vmatpush1.bf16.msra.mxu0 0
        %2570 = vmatprep.subr.bf16.mxu0 0
        %2571 = vmatpush1.bf16.msra.mxu0 0
        %2572 = vmatprep.subr.bf16.mxu0 0
        %2573 = vmatpush1.bf16.msra.mxu0 0
        %2574 = vmatprep.subr.bf16.mxu0 0
        %2575 = vmatpush1.bf16.msra.mxu0 0
        %2576 = vmatprep.subr.bf16.mxu0 0
        %2577 = vmatpush1.bf16.msra.mxu0 0
        %2578 = vmatprep.subr.bf16.mxu0 0
        %2579 = vmatpush1.bf16.msra.mxu0 0
        %2580 = vmatprep.subr.bf16.mxu0 0
        %2581 = vmatpush1.bf16.msra.mxu0 0
        %2582 = vmatprep.subr.bf16.mxu0 0
        %2583 = vmatpush1.bf16.msra.mxu0 0
        %2584 = vmatprep.subr.bf16.mxu0 0
        %2585 = vmatpush1.bf16.msra.mxu0 0
        %2586 = vmatprep.subr.bf16.mxu0 0
        %2587 = vmatpush1.bf16.msra.mxu0 0
        %2588 = vmatprep.subr.bf16.mxu0 0
        %2589 = vmatpush1.bf16.msra.mxu0 0
        %2590 = vmatprep.subr.bf16.mxu0 0
        %2591 = vmatpush1.bf16.msra.mxu0 0
        %2592 = vmatprep.subr.bf16.mxu0 0
        %2593 = vmatpush1.bf16.msra.mxu0 0
        %2594 = vmatprep.mubr.bf16.mxu0 0
        %2595 = vmatmul.mubr.bf16.gmra.mrb[0].mxu0 %v2551
        %v2596 = vpop.f32.mrb[0].mxu0
        %v2597 = vadd.f32 0.0, %v2596
        %v2598 = vpop.f32.mrb[0].mxu0
        %v2599 = vadd.f32 0.0, %v2598
        %v2600 = vpop.f32.mrb[0].mxu0
        %v2601 = vadd.f32 0.0, %v2600
        %v2602 = vpop.f32.mrb[0].mxu0
        %v2603 = vadd.f32 0.0, %v2602
        %2604 = vmatprep.mubr.bf16.mxu0 0
        %2605 = vmatmul.mubr.bf16.gmra.mrb[0].mxu0 %v2554
        %v2606 = vpop.f32.mrb[0].mxu0
        %v2607 = vadd.f32 0.0, %v2606
        %v2608 = vpop.f32.mrb[0].mxu0
        %v2609 = vadd.f32 0.0, %v2608
        %v2610 = vpop.f32.mrb[0].mxu0
        %v2611 = vadd.f32 0.0, %v2610
        %v2612 = vpop.f32.mrb[0].mxu0
        %v2613 = vadd.f32 0.0, %v2612
        %2614 = vdwg.mxu0
        %2615 = vmatprep.subr.bf16.mxu0 %v2507
        %2616 = vmatpush1.bf16.msra.mxu0 %v2506
        %2617 = vmatprep.subr.bf16.mxu0 %v2509
        %2618 = vmatpush1.bf16.msra.mxu0 %v2508
        %2619 = vmatprep.subr.bf16.mxu0 %v2511
        %2620 = vmatpush1.bf16.msra.mxu0 %v2510
        %2621 = vmatprep.subr.bf16.mxu0 %v2513
        %2622 = vmatpush1.bf16.msra.mxu0 %v2512
        %2623 = vmatprep.subr.bf16.mxu0 %v2515
        %2624 = vmatpush1.bf16.msra.mxu0 %v2514
        %2625 = vmatprep.subr.bf16.mxu0 %v2517
        %2626 = vmatpush1.bf16.msra.mxu0 %v2516
        %2627 = vmatprep.subr.bf16.mxu0 %v2519
        %2628 = vmatpush1.bf16.msra.mxu0 %v2518
        %2629 = vmatprep.subr.bf16.mxu0 %v2521
        %2630 = vmatpush1.bf16.msra.mxu0 %v2520
        %2631 = vmatprep.subr.bf16.mxu0 %v2523
        %2632 = vmatpush1.bf16.msra.mxu0 %v2522
        %2633 = vmatprep.subr.bf16.mxu0 %v2525
        %2634 = vmatpush1.bf16.msra.mxu0 %v2524
        %2635 = vmatprep.subr.bf16.mxu0 %v2527
        %2636 = vmatpush1.bf16.msra.mxu0 %v2526
        %2637 = vmatprep.subr.bf16.mxu0 %v2529
        %2638 = vmatpush1.bf16.msra.mxu0 %v2528
        %2639 = vmatprep.subr.bf16.mxu0 %v2531
        %2640 = vmatpush1.bf16.msra.mxu0 %v2530
        %2641 = vmatprep.subr.bf16.mxu0 %v2533
        %2642 = vmatpush1.bf16.msra.mxu0 %v2532
        %2643 = vmatprep.subr.bf16.mxu0 %v2535
        %2644 = vmatpush1.bf16.msra.mxu0 %v2534
        %2645 = vmatprep.subr.bf16.mxu0 %v2537
        %2646 = vmatpush1.bf16.msra.mxu0 %v2536
        %2647 = vmatprep.mubr.bf16.mxu0 %v852
        %2648 = vmatmul.mubr.bf16.gmra.mrb[0].mxu0 %v851
        %v2649 = vpop.f32.mrb[0].mxu0
        %v2650 = vadd.f32 %v2597, %v2649
        %v2651 = vpop.f32.mrb[0].mxu0
        %v2652 = vadd.f32 %v2599, %v2651
        %v2653 = vpop.f32.mrb[0].mxu0
        %v2654 = vadd.f32 %v2601, %v2653
        %v2655 = vpop.f32.mrb[0].mxu0
        %v2656 = vadd.f32 %v2603, %v2655
        %2657 = vmatprep.mubr.bf16.mxu0 %v854
        %2658 = vmatmul.mubr.bf16.gmra.mrb[0].mxu0 %v853
        %v2659 = vpop.f32.mrb[0].mxu0
        %v2660 = vadd.f32 %v2607, %v2659
        %v2661 = vpop.f32.mrb[0].mxu0
        %v2662 = vadd.f32 %v2609, %v2661
        %v2663 = vpop.f32.mrb[0].mxu0
        %v2664 = vadd.f32 %v2611, %v2663
        %v2665 = vpop.f32.mrb[0].mxu0
        %v2666 = vadd.f32 %v2613, %v2665
        %2667 = vdwg.mxu0
        %v2668 = vrcp.pop %v2504
        %v2669 = vrcp.pop %v2505
        %v2670 = vmul.f32 %v2650, %v2668
        %v2671 = vmul.f32 %v2652, %v2669
        %v2672 = vmul.f32 %v2654, %v2668
        %v2673 = vmul.f32 %v2656, %v2669
        %v2674 = vmul.f32 %v2660, %v2668
        %v2675 = vmul.f32 %v2662, %v2669
        %v2676 = vmul.f32 %v2664, %v2668
        %v2677 = vmul.f32 %v2666, %v2669
        %s2678 = scalar_lea.vmem %s4, 32
        %v2679 = vld [vmem:[%s2678] sm:$0xff]
        %v2680 = vld [vmem:[%s2678 + $0x8] sm:$0xff]
        %v2681 = vld [vmem:[%s2678 + $0x10] sm:$0xff]
        %v2682 = vld [vmem:[%s2678 + $0x18] sm:$0xff]
        %v2684 = vsel %vm469, %v2679, 0
        %v2687 = vsel %vm469, %v2680, 0
        %v2690 = vsel %vm469, %v2681, 0
        %v2693 = vsel %vm469, %v2682, 0
        %2695 = vmatprep.subr.mxu0 %v2671
        %2696 = vmatpush1.msra.mxu0 %v2670
        %2697 = vmatprep.subr.mxu0 %v2673
        %2698 = vmatpush1.msra.mxu0 %v2672
        %2699 = vmatprep.subr.mxu0 %v2675
        %2700 = vmatpush1.msra.mxu0 %v2674
        %2701 = vmatprep.subr.mxu0 %v2677
        %2702 = vmatpush1.msra.mxu0 %v2676
        %2703 = vmatprep.subr.mxu0 0.0
        %2704 = vmatpush1.msra.mxu0 0.0
        %2705 = vmatprep.subr.mxu0 0.0
        %2706 = vmatpush1.msra.mxu0 0.0
        %2707 = vmatprep.subr.mxu0 0.0
        %2708 = vmatpush1.msra.mxu0 0.0
        %2709 = vmatprep.subr.mxu0 0.0
        %2710 = vmatpush1.msra.mxu0 0.0
        %2711 = vmatprep.subr.mxu0 0.0
        %2712 = vmatpush1.msra.mxu0 0.0
        %2713 = vmatprep.subr.mxu0 0.0
        %2714 = vmatpush1.msra.mxu0 0.0
        %2715 = vmatprep.subr.mxu0 0.0
        %2716 = vmatpush1.msra.mxu0 0.0
        %2717 = vmatprep.subr.mxu0 0.0
        %2718 = vmatpush1.msra.mxu0 0.0
        %2719 = vmatprep.subr.mxu0 0.0
        %2720 = vmatpush1.msra.mxu0 0.0
        %2721 = vmatprep.subr.mxu0 0.0
        %2722 = vmatpush1.msra.mxu0 0.0
        %2723 = vmatprep.subr.mxu0 0.0
        %2724 = vmatpush1.msra.mxu0 0.0
        %2725 = vmatprep.subr.mxu0 0.0
        %2726 = vmatpush1.msra.mxu0 0.0
        %2727 = vmatprep.subr.mxu0 0.0
        %2728 = vmatpush1.msra.mxu0 0.0
        %2729 = vmatprep.subr.mxu0 0.0
        %2730 = vmatpush1.msra.mxu0 0.0
        %2731 = vmatprep.subr.mxu0 0.0
        %2732 = vmatpush1.msra.mxu0 0.0
        %2733 = vmatprep.subr.mxu0 0.0
        %2734 = vmatpush1.msra.mxu0 0.0
        %2735 = vmatprep.subr.mxu0 0.0
        %2736 = vmatpush1.msra.mxu0 0.0
        %2737 = vmatprep.subr.mxu0 0.0
        %2738 = vmatpush1.msra.mxu0 0.0
        %2739 = vmatprep.subr.mxu0 0.0
        %2740 = vmatpush1.msra.mxu0 0.0
        %2741 = vmatprep.subr.mxu0 0.0
        %2742 = vmatpush1.msra.mxu0 0.0
        %2743 = vmatprep.subr.mxu0 0.0
        %2744 = vmatpush1.msra.mxu0 0.0
        %2745 = vmatprep.subr.mxu0 0.0
        %2746 = vmatpush1.msra.mxu0 0.0
        %2747 = vmatprep.subr.mxu0 0.0
        %2748 = vmatpush1.msra.mxu0 0.0
        %2749 = vmatprep.subr.mxu0 0.0
        %2750 = vmatpush1.msra.mxu0 0.0
        %2751 = vmatprep.subr.mxu0 0.0
        %2752 = vmatpush1.msra.mxu0 0.0
        %2753 = vmatprep.subr.mxu0 0.0
        %2754 = vmatpush1.msra.mxu0 0.0
        %2755 = vmatprep.subr.mxu0 0.0
        %2756 = vmatpush1.msra.mxu0 0.0
        %2757 = vmatprep.subr.mxu0 0.0
        %2758 = vmatpush1.msra.mxu0 0.0
        %2759 = vmatprep.mubr.f32.mxu0 0.0
        %2760 = vmatmul.mubr.f32.gmra.mrb[0].mxu0 %v2684
        %v2761 = vpop.f32.mrb[0].mxu0
        %v2762 = vadd.f32 0.0, %v2761
        %v2763 = vpop.f32.mrb[0].mxu0
        %v2764 = vadd.f32 0.0, %v2763
        %2765 = vmatprep.mubr.f32.mxu0 0.0
        %2766 = vmatmul.mubr.f32.gmra.mrb[0].mxu0 %v2687
        %v2767 = vpop.f32.mrb[0].mxu0
        %v2768 = vadd.f32 0.0, %v2767
        %v2769 = vpop.f32.mrb[0].mxu0
        %v2770 = vadd.f32 0.0, %v2769
        %2771 = vmatprep.mubr.f32.mxu0 0.0
        %2772 = vmatmul.mubr.f32.gmra.mrb[0].mxu0 %v2690
        %v2773 = vpop.f32.mrb[0].mxu0
        %v2774 = vadd.f32 0.0, %v2773
        %v2775 = vpop.f32.mrb[0].mxu0
        %v2776 = vadd.f32 0.0, %v2775
        %2777 = vmatprep.mubr.f32.mxu0 0.0
        %2778 = vmatmul.mubr.f32.gmra.mrb[0].mxu0 %v2693
        %v2779 = vpop.f32.mrb[0].mxu0
        %v2780 = vadd.f32 0.0, %v2779
        %v2781 = vpop.f32.mrb[0].mxu0
        %v2782 = vadd.f32 0.0, %v2781
        %2783 = vdwg.mxu0
        %v2785 = vsel %vm469, %v1769, 0
        %v2788 = vsel %vm469, %v1770, 0
        %v2791 = vsel %vm469, %v1771, 0
        %v2794 = vsel %vm469, %v1772, 0
        %2796 = vmatprep.subr.mxu0 %v1762
        %2797 = vmatpush1.msra.mxu0 %v1761
        %2798 = vmatprep.subr.mxu0 %v1764
        %2799 = vmatpush1.msra.mxu0 %v1763
        %2800 = vmatprep.subr.mxu0 %v1766
        %2801 = vmatpush1.msra.mxu0 %v1765
        %2802 = vmatprep.subr.mxu0 %v1768
        %2803 = vmatpush1.msra.mxu0 %v1767
        %2804 = vmatprep.subr.mxu0 0.0
        %2805 = vmatpush1.msra.mxu0 0.0
        %2806 = vmatprep.subr.mxu0 0.0
        %2807 = vmatpush1.msra.mxu0 0.0
        %2808 = vmatprep.subr.mxu0 0.0
        %2809 = vmatpush1.msra.mxu0 0.0
        %2810 = vmatprep.subr.mxu0 0.0
        %2811 = vmatpush1.msra.mxu0 0.0
        %2812 = vmatprep.subr.mxu0 0.0
        %2813 = vmatpush1.msra.mxu0 0.0
        %2814 = vmatprep.subr.mxu0 0.0
        %2815 = vmatpush1.msra.mxu0 0.0
        %2816 = vmatprep.subr.mxu0 0.0
        %2817 = vmatpush1.msra.mxu0 0.0
        %2818 = vmatprep.subr.mxu0 0.0
        %2819 = vmatpush1.msra.mxu0 0.0
        %2820 = vmatprep.subr.mxu0 0.0
        %2821 = vmatpush1.msra.mxu0 0.0
        %2822 = vmatprep.subr.mxu0 0.0
        %2823 = vmatpush1.msra.mxu0 0.0
        %2824 = vmatprep.subr.mxu0 0.0
        %2825 = vmatpush1.msra.mxu0 0.0
        %2826 = vmatprep.subr.mxu0 0.0
        %2827 = vmatpush1.msra.mxu0 0.0
        %2828 = vmatprep.subr.mxu0 0.0
        %2829 = vmatpush1.msra.mxu0 0.0
        %2830 = vmatprep.subr.mxu0 0.0
        %2831 = vmatpush1.msra.mxu0 0.0
        %2832 = vmatprep.subr.mxu0 0.0
        %2833 = vmatpush1.msra.mxu0 0.0
        %2834 = vmatprep.subr.mxu0 0.0
        %2835 = vmatpush1.msra.mxu0 0.0
        %2836 = vmatprep.subr.mxu0 0.0
        %2837 = vmatpush1.msra.mxu0 0.0
        %2838 = vmatprep.subr.mxu0 0.0
        %2839 = vmatpush1.msra.mxu0 0.0
        %2840 = vmatprep.subr.mxu0 0.0
        %2841 = vmatpush1.msra.mxu0 0.0
        %2842 = vmatprep.subr.mxu0 0.0
        %2843 = vmatpush1.msra.mxu0 0.0
        %2844 = vmatprep.subr.mxu0 0.0
        %2845 = vmatpush1.msra.mxu0 0.0
        %2846 = vmatprep.subr.mxu0 0.0
        %2847 = vmatpush1.msra.mxu0 0.0
        %2848 = vmatprep.subr.mxu0 0.0
        %2849 = vmatpush1.msra.mxu0 0.0
        %2850 = vmatprep.subr.mxu0 0.0
        %2851 = vmatpush1.msra.mxu0 0.0
        %2852 = vmatprep.subr.mxu0 0.0
        %2853 = vmatpush1.msra.mxu0 0.0
        %2854 = vmatprep.subr.mxu0 0.0
        %2855 = vmatpush1.msra.mxu0 0.0
        %2856 = vmatprep.subr.mxu0 0.0
        %2857 = vmatpush1.msra.mxu0 0.0
        %2858 = vmatprep.subr.mxu0 0.0
        %2859 = vmatpush1.msra.mxu0 0.0
        %2860 = vmatprep.mubr.f32.mxu0 0.0
        %2861 = vmatmul.mubr.f32.gmra.mrb[0].mxu0 %v2785
        %v2862 = vpop.f32.mrb[0].mxu0
        %v2863 = vadd.f32 %v2762, %v2862
        %v2864 = vpop.f32.mrb[0].mxu0
        %v2865 = vadd.f32 %v2764, %v2864
        %2866 = vmatprep.mubr.f32.mxu0 0.0
        %2867 = vmatmul.mubr.f32.gmra.mrb[0].mxu0 %v2788
        %v2868 = vpop.f32.mrb[0].mxu0
        %v2869 = vadd.f32 %v2768, %v2868
        %v2870 = vpop.f32.mrb[0].mxu0
        %v2871 = vadd.f32 %v2770, %v2870
        %2872 = vmatprep.mubr.f32.mxu0 0.0
        %2873 = vmatmul.mubr.f32.gmra.mrb[0].mxu0 %v2791
        %v2874 = vpop.f32.mrb[0].mxu0
        %v2875 = vadd.f32 %v2774, %v2874
        %v2876 = vpop.f32.mrb[0].mxu0
        %v2877 = vadd.f32 %v2776, %v2876
        %2878 = vmatprep.mubr.f32.mxu0 0.0
        %2879 = vmatmul.mubr.f32.gmra.mrb[0].mxu0 %v2794
        %v2880 = vpop.f32.mrb[0].mxu0
        %v2881 = vadd.f32 %v2780, %v2880
        %v2882 = vpop.f32.mrb[0].mxu0
        %v2883 = vadd.f32 %v2782, %v2882
        %2884 = vdwg.mxu0
        %s2885 = scalar_lea.vmem %s2, 32
        %v2886 = vld [vmem:[%s2885] sm:$0xf]
        %v2887 = vld [vmem:[%s2885 + $0x4] sm:$0xf]
        %v2888 = vld [vmem:[%s2885 + $0x8] sm:$0xf]
        %v2889 = vld [vmem:[%s2885 + $0xc] sm:$0xf]
        %s2890 = scalar_lea.vmem %s3, 32
        %v2891 = vld [vmem:[%s2890] sm:$0xf]
        %v2892 = vld [vmem:[%s2890 + $0x4] sm:$0xf]
        %v2893 = vld [vmem:[%s2890 + $0x8] sm:$0xf]
        %v2894 = vld [vmem:[%s2890 + $0xc] sm:$0xf]
        %2895 = vxpose.xlu0.c.b16.start [1/8] %v839, 128
        %2896 = vxpose.xlu0.c.b16.cont [2/8] %v841, 128
        %2897 = vxpose.xlu0.c.b16.cont [3/8] 0, 128
        %2898 = vxpose.xlu0.c.b16.cont [4/8] 0, 128
        %2899 = vxpose.xlu0.c.b16.cont [5/8] 0, 128
        %2900 = vxpose.xlu0.c.b16.cont [6/8] 0, 128
        %2901 = vxpose.xlu0.c.b16.cont [7/8] 0, 128
        %2902 = vxpose.xlu0.c.b16.end [8/8] 0, 128
        %v2903 = vpop.trf.xlu0
        %v2904 = vpop.trf.xlu0
        %v2905 = vpop.trf.xlu0
        %v2906 = vpop.trf.xlu0
        %v2907 = vpop.trf.xlu0
        %v2908 = vpop.trf.xlu0
        %v2909 = vpop.trf.xlu0
        %v2910 = vpop.trf.xlu0
        %2911 = vxpose.xlu0.c.b16.start [1/8] %v840, 128
        %2912 = vxpose.xlu0.c.b16.cont [2/8] %v842, 128
        %2913 = vxpose.xlu0.c.b16.cont [3/8] 0, 128
        %2914 = vxpose.xlu0.c.b16.cont [4/8] 0, 128
        %2915 = vxpose.xlu0.c.b16.cont [5/8] 0, 128
        %2916 = vxpose.xlu0.c.b16.cont [6/8] 0, 128
        %2917 = vxpose.xlu0.c.b16.cont [7/8] 0, 128
        %2918 = vxpose.xlu0.c.b16.end [8/8] 0, 128
        %v2919 = vpop.trf.xlu0
        %v2920 = vpop.trf.xlu0
        %v2921 = vpop.trf.xlu0
        %v2922 = vpop.trf.xlu0
        %v2923 = vpop.trf.xlu0
        %v2924 = vpop.trf.xlu0
        %v2925 = vpop.trf.xlu0
        %v2926 = vpop.trf.xlu0
        %v2928 = vsel %vm469, %v2903, 0
        %v2931 = vsel %vm469, %v2904, 0
        %v2934 = vsel %vm469, %v2905, 0
        %v2937 = vsel %vm469, %v2906, 0
        %v2940 = vsel %vm469, %v2907, 0
        %v2943 = vsel %vm469, %v2908, 0
        %v2946 = vsel %vm469, %v2909, 0
        %v2949 = vsel %vm469, %v2910, 0
        %v2952 = vsel %vm469, %v2919, 0
        %v2955 = vsel %vm469, %v2920, 0
        %v2958 = vsel %vm469, %v2921, 0
        %v2961 = vsel %vm469, %v2922, 0
        %v2964 = vsel %vm469, %v2923, 0
        %v2967 = vsel %vm469, %v2924, 0
        %v2970 = vsel %vm469, %v2925, 0
        %v2973 = vsel %vm469, %v2926, 0
        %2975 = vmatprep.subr.bf16.mxu0 %v824
        %2976 = vmatpush1.bf16.msra.mxu0 %v823
        %2977 = vmatprep.subr.bf16.mxu0 %v826
        %2978 = vmatpush1.bf16.msra.mxu0 %v825
        %2979 = vmatprep.subr.bf16.mxu0 0
        %2980 = vmatpush1.bf16.msra.mxu0 0
        %2981 = vmatprep.subr.bf16.mxu0 0
        %2982 = vmatpush1.bf16.msra.mxu0 0
        %2983 = vmatprep.subr.bf16.mxu0 0
        %2984 = vmatpush1.bf16.msra.mxu0 0
        %2985 = vmatprep.subr.bf16.mxu0 0
        %2986 = vmatpush1.bf16.msra.mxu0 0
        %2987 = vmatprep.subr.bf16.mxu0 0
        %2988 = vmatpush1.bf16.msra.mxu0 0
        %2989 = vmatprep.subr.bf16.mxu0 0
        %2990 = vmatpush1.bf16.msra.mxu0 0
        %2991 = vmatprep.subr.bf16.mxu0 0
        %2992 = vmatpush1.bf16.msra.mxu0 0
        %2993 = vmatprep.subr.bf16.mxu0 0
        %2994 = vmatpush1.bf16.msra.mxu0 0
        %2995 = vmatprep.subr.bf16.mxu0 0
        %2996 = vmatpush1.bf16.msra.mxu0 0
        %2997 = vmatprep.subr.bf16.mxu0 0
        %2998 = vmatpush1.bf16.msra.mxu0 0
        %2999 = vmatprep.subr.bf16.mxu0 0
        %3000 = vmatpush1.bf16.msra.mxu0 0
        %3001 = vmatprep.subr.bf16.mxu0 0
        %3002 = vmatpush1.bf16.msra.mxu0 0
        %3003 = vmatprep.subr.bf16.mxu0 0
        %3004 = vmatpush1.bf16.msra.mxu0 0
        %3005 = vmatprep.subr.bf16.mxu0 0
        %3006 = vmatpush1.bf16.msra.mxu0 0
        %3007 = vmatprep.mubr.bf16.mxu0 0
        %3008 = vmatmul.mubr.bf16.gmra.mrb[0].mxu0 %v2928
        %v3009 = vpop.f32.mrb[0].mxu0
        %v3010 = vadd.f32 0.0, %v3009
        %v3011 = vpop.f32.mrb[0].mxu0
        %v3012 = vadd.f32 0.0, %v3011
        %v3013 = vpop.f32.mrb[0].mxu0
        %v3014 = vadd.f32 0.0, %v3013
        %v3015 = vpop.f32.mrb[0].mxu0
        %v3016 = vadd.f32 0.0, %v3015
        %3017 = vmatprep.mubr.bf16.mxu0 0
        %3018 = vmatmul.mubr.bf16.gmra.mrb[0].mxu0 %v2931
        %v3019 = vpop.f32.mrb[0].mxu0
        %v3020 = vadd.f32 0.0, %v3019
        %v3021 = vpop.f32.mrb[0].mxu0
        %v3022 = vadd.f32 0.0, %v3021
        %v3023 = vpop.f32.mrb[0].mxu0
        %v3024 = vadd.f32 0.0, %v3023
        %v3025 = vpop.f32.mrb[0].mxu0
        %v3026 = vadd.f32 0.0, %v3025
        %3027 = vmatprep.mubr.bf16.mxu0 0
        %3028 = vmatmul.mubr.bf16.gmra.mrb[0].mxu0 %v2934
        %v3029 = vpop.f32.mrb[0].mxu0
        %v3030 = vadd.f32 0.0, %v3029
        %v3031 = vpop.f32.mrb[0].mxu0
        %v3032 = vadd.f32 0.0, %v3031
        %v3033 = vpop.f32.mrb[0].mxu0
        %v3034 = vadd.f32 0.0, %v3033
        %v3035 = vpop.f32.mrb[0].mxu0
        %v3036 = vadd.f32 0.0, %v3035
        %3037 = vmatprep.mubr.bf16.mxu0 0
        %3038 = vmatmul.mubr.bf16.gmra.mrb[0].mxu0 %v2937
        %v3039 = vpop.f32.mrb[0].mxu0
        %v3040 = vadd.f32 0.0, %v3039
        %v3041 = vpop.f32.mrb[0].mxu0
        %v3042 = vadd.f32 0.0, %v3041
        %v3043 = vpop.f32.mrb[0].mxu0
        %v3044 = vadd.f32 0.0, %v3043
        %v3045 = vpop.f32.mrb[0].mxu0
        %v3046 = vadd.f32 0.0, %v3045
        %3047 = vmatprep.mubr.bf16.mxu0 0
        %3048 = vmatmul.mubr.bf16.gmra.mrb[0].mxu0 %v2940
        %v3049 = vpop.f32.mrb[0].mxu0
        %v3050 = vadd.f32 0.0, %v3049
        %v3051 = vpop.f32.mrb[0].mxu0
        %v3052 = vadd.f32 0.0, %v3051
        %v3053 = vpop.f32.mrb[0].mxu0
        %v3054 = vadd.f32 0.0, %v3053
        %v3055 = vpop.f32.mrb[0].mxu0
        %v3056 = vadd.f32 0.0, %v3055
        %3057 = vmatprep.mubr.bf16.mxu0 0
        %3058 = vmatmul.mubr.bf16.gmra.mrb[0].mxu0 %v2943
        %v3059 = vpop.f32.mrb[0].mxu0
        %v3060 = vadd.f32 0.0, %v3059
        %v3061 = vpop.f32.mrb[0].mxu0
        %v3062 = vadd.f32 0.0, %v3061
        %v3063 = vpop.f32.mrb[0].mxu0
        %v3064 = vadd.f32 0.0, %v3063
        %v3065 = vpop.f32.mrb[0].mxu0
        %v3066 = vadd.f32 0.0, %v3065
        %3067 = vmatprep.mubr.bf16.mxu0 0
        %3068 = vmatmul.mubr.bf16.gmra.mrb[0].mxu0 %v2946
        %v3069 = vpop.f32.mrb[0].mxu0
        %v3070 = vadd.f32 0.0, %v3069
        %v3071 = vpop.f32.mrb[0].mxu0
        %v3072 = vadd.f32 0.0, %v3071
        %v3073 = vpop.f32.mrb[0].mxu0
        %v3074 = vadd.f32 0.0, %v3073
        %v3075 = vpop.f32.mrb[0].mxu0
        %v3076 = vadd.f32 0.0, %v3075
        %3077 = vmatprep.mubr.bf16.mxu0 0
        %3078 = vmatmul.mubr.bf16.gmra.mrb[0].mxu0 %v2949
        %v3079 = vpop.f32.mrb[0].mxu0
        %v3080 = vadd.f32 0.0, %v3079
        %v3081 = vpop.f32.mrb[0].mxu0
        %v3082 = vadd.f32 0.0, %v3081
        %v3083 = vpop.f32.mrb[0].mxu0
        %v3084 = vadd.f32 0.0, %v3083
        %v3085 = vpop.f32.mrb[0].mxu0
        %v3086 = vadd.f32 0.0, %v3085
        %3087 = vmatprep.mubr.bf16.mxu0 0
        %3088 = vmatmul.mubr.bf16.gmra.mrb[0].mxu0 %v2952
        %v3089 = vpop.f32.mrb[0].mxu0
        %v3090 = vadd.f32 0.0, %v3089
        %v3091 = vpop.f32.mrb[0].mxu0
        %v3092 = vadd.f32 0.0, %v3091
        %v3093 = vpop.f32.mrb[0].mxu0
        %v3094 = vadd.f32 0.0, %v3093
        %v3095 = vpop.f32.mrb[0].mxu0
        %v3096 = vadd.f32 0.0, %v3095
        %3097 = vmatprep.mubr.bf16.mxu0 0
        %3098 = vmatmul.mubr.bf16.gmra.mrb[0].mxu0 %v2955
        %v3099 = vpop.f32.mrb[0].mxu0
        %v3100 = vadd.f32 0.0, %v3099
        %v3101 = vpop.f32.mrb[0].mxu0
        %v3102 = vadd.f32 0.0, %v3101
        %v3103 = vpop.f32.mrb[0].mxu0
        %v3104 = vadd.f32 0.0, %v3103
        %v3105 = vpop.f32.mrb[0].mxu0
        %v3106 = vadd.f32 0.0, %v3105
        %3107 = vmatprep.mubr.bf16.mxu0 0
        %3108 = vmatmul.mubr.bf16.gmra.mrb[0].mxu0 %v2958
        %v3109 = vpop.f32.mrb[0].mxu0
        %v3110 = vadd.f32 0.0, %v3109
        %v3111 = vpop.f32.mrb[0].mxu0
        %v3112 = vadd.f32 0.0, %v3111
        %v3113 = vpop.f32.mrb[0].mxu0
        %v3114 = vadd.f32 0.0, %v3113
        %v3115 = vpop.f32.mrb[0].mxu0
        %v3116 = vadd.f32 0.0, %v3115
        %3117 = vmatprep.mubr.bf16.mxu0 0
        %3118 = vmatmul.mubr.bf16.gmra.mrb[0].mxu0 %v2961
        %v3119 = vpop.f32.mrb[0].mxu0
        %v3120 = vadd.f32 0.0, %v3119
        %v3121 = vpop.f32.mrb[0].mxu0
        %v3122 = vadd.f32 0.0, %v3121
        %v3123 = vpop.f32.mrb[0].mxu0
        %v3124 = vadd.f32 0.0, %v3123
        %v3125 = vpop.f32.mrb[0].mxu0
        %v3126 = vadd.f32 0.0, %v3125
        %3127 = vmatprep.mubr.bf16.mxu0 0
        %3128 = vmatmul.mubr.bf16.gmra.mrb[0].mxu0 %v2964
        %v3129 = vpop.f32.mrb[0].mxu0
        %v3130 = vadd.f32 0.0, %v3129
        %v3131 = vpop.f32.mrb[0].mxu0
        %v3132 = vadd.f32 0.0, %v3131
        %v3133 = vpop.f32.mrb[0].mxu0
        %v3134 = vadd.f32 0.0, %v3133
        %v3135 = vpop.f32.mrb[0].mxu0
        %v3136 = vadd.f32 0.0, %v3135
        %3137 = vmatprep.mubr.bf16.mxu0 0
        %3138 = vmatmul.mubr.bf16.gmra.mrb[0].mxu0 %v2967
        %v3139 = vpop.f32.mrb[0].mxu0
        %v3140 = vadd.f32 0.0, %v3139
        %v3141 = vpop.f32.mrb[0].mxu0
        %v3142 = vadd.f32 0.0, %v3141
        %v3143 = vpop.f32.mrb[0].mxu0
        %v3144 = vadd.f32 0.0, %v3143
        %v3145 = vpop.f32.mrb[0].mxu0
        %v3146 = vadd.f32 0.0, %v3145
        %3147 = vmatprep.mubr.bf16.mxu0 0
        %3148 = vmatmul.mubr.bf16.gmra.mrb[0].mxu0 %v2970
        %v3149 = vpop.f32.mrb[0].mxu0
        %v3150 = vadd.f32 0.0, %v3149
        %v3151 = vpop.f32.mrb[0].mxu0
        %v3152 = vadd.f32 0.0, %v3151
        %v3153 = vpop.f32.mrb[0].mxu0
        %v3154 = vadd.f32 0.0, %v3153
        %v3155 = vpop.f32.mrb[0].mxu0
        %v3156 = vadd.f32 0.0, %v3155
        %3157 = vmatprep.mubr.bf16.mxu0 0
        %3158 = vmatmul.mubr.bf16.gmra.mrb[0].mxu0 %v2973
        %v3159 = vpop.f32.mrb[0].mxu0
        %v3160 = vadd.f32 0.0, %v3159
        %v3161 = vpop.f32.mrb[0].mxu0
        %v3162 = vadd.f32 0.0, %v3161
        %v3163 = vpop.f32.mrb[0].mxu0
        %v3164 = vadd.f32 0.0, %v3163
        %v3165 = vpop.f32.mrb[0].mxu0
        %v3166 = vadd.f32 0.0, %v3165
        %3167 = vdwg.mxu0
        %v3172 = vunpack.c.l.b16 %v2886
        %v3173 = vunpack.c.l.b16 %v2887
        %v3174 = vunpack.c.l.b16 %v2888
        %v3175 = vunpack.c.l.b16 %v2889
        %v3176 = vpack.c.b16 %v3173, %v3172
        %v3177 = vpack.c.b16 %v3175, %v3174
        %3180 = vxpose.xlu0.c.b16.start [1/8] %v3176, 128
        %3181 = vxpose.xlu0.c.b16.cont [2/8] %v3177, 128
        %3182 = vxpose.xlu0.c.b16.cont [3/8] 0, 128
        %3183 = vxpose.xlu0.c.b16.cont [4/8] 0, 128
        %3184 = vxpose.xlu0.c.b16.cont [5/8] 0, 128
        %3185 = vxpose.xlu0.c.b16.cont [6/8] 0, 128
        %3186 = vxpose.xlu0.c.b16.cont [7/8] 0, 128
        %3187 = vxpose.xlu0.c.b16.end [8/8] 0, 128
        %v3188 = vpop.trf.xlu0
        %v3189 = vpop.trf.xlu0
        %v3190 = vpop.trf.xlu0
        %v3191 = vpop.trf.xlu0
        %v3192 = vpop.trf.xlu0
        %v3193 = vpop.trf.xlu0
        %v3194 = vpop.trf.xlu0
        %v3195 = vpop.trf.xlu0
        %v3197 = vsel %vm469, %v3188, 0
        %3199 = vmatprep.subr.bf16.mxu0 %v824
        %3200 = vmatpush1.bf16.msra.mxu0 %v823
        %3201 = vmatprep.subr.bf16.mxu0 %v826
        %3202 = vmatpush1.bf16.msra.mxu0 %v825
        %3203 = vmatprep.subr.bf16.mxu0 0
        %3204 = vmatpush1.bf16.msra.mxu0 0
        %3205 = vmatprep.subr.bf16.mxu0 0
        %3206 = vmatpush1.bf16.msra.mxu0 0
        %3207 = vmatprep.subr.bf16.mxu0 0
        %3208 = vmatpush1.bf16.msra.mxu0 0
        %3209 = vmatprep.subr.bf16.mxu0 0
        %3210 = vmatpush1.bf16.msra.mxu0 0
        %3211 = vmatprep.subr.bf16.mxu0 0
        %3212 = vmatpush1.bf16.msra.mxu0 0
        %3213 = vmatprep.subr.bf16.mxu0 0
        %3214 = vmatpush1.bf16.msra.mxu0 0
        %3215 = vmatprep.subr.bf16.mxu0 0
        %3216 = vmatpush1.bf16.msra.mxu0 0
        %3217 = vmatprep.subr.bf16.mxu0 0
        %3218 = vmatpush1.bf16.msra.mxu0 0
        %3219 = vmatprep.subr.bf16.mxu0 0
        %3220 = vmatpush1.bf16.msra.mxu0 0
        %3221 = vmatprep.subr.bf16.mxu0 0
        %3222 = vmatpush1.bf16.msra.mxu0 0
        %3223 = vmatprep.subr.bf16.mxu0 0
        %3224 = vmatpush1.bf16.msra.mxu0 0
        %3225 = vmatprep.subr.bf16.mxu0 0
        %3226 = vmatpush1.bf16.msra.mxu0 0
        %3227 = vmatprep.subr.bf16.mxu0 0
        %3228 = vmatpush1.bf16.msra.mxu0 0
        %3229 = vmatprep.subr.bf16.mxu0 0
        %3230 = vmatpush1.bf16.msra.mxu0 0
        %3231 = vmatprep.mubr.bf16.mxu0 0
        %3232 = vmatmul.mubr.bf16.gmra.mrb[0].mxu0 %v3197
        %v3233 = vpop.f32.mrb[0].mxu0
        %v3234 = vadd.f32 0.0, %v3233
        %v3235 = vpop.f32.mrb[0].mxu0
        %v3236 = vadd.f32 0.0, %v3235
        %v3237 = vpop.f32.mrb[0].mxu0
        %v3238 = vpop.f32.mrb[0].mxu0
        %3239 = vdwg.mxu0
        %v3240 = vmax.f32 %v3010, %v3020
        %v3241 = vmax.f32 %v3014, %v3024
        %v3242 = vmax.f32 %v3240, %v3030
        %v3243 = vmax.f32 %v3241, %v3034
        %v3244 = vmax.f32 %v3242, %v3040
        %v3245 = vmax.f32 %v3243, %v3044
        %v3246 = vmax.f32 %v3244, %v3050
        %v3247 = vmax.f32 %v3245, %v3054
        %v3248 = vmax.f32 %v3246, %v3060
        %v3249 = vmax.f32 %v3247, %v3064
        %v3250 = vmax.f32 %v3248, %v3070
        %v3251 = vmax.f32 %v3249, %v3074
        %v3252 = vmax.f32 %v3250, %v3080
        %v3253 = vmax.f32 %v3251, %v3084
        %v3254 = vmax.f32 %v3252, %v3090
        %v3255 = vmax.f32 %v3253, %v3094
        %v3256 = vmax.f32 %v3254, %v3100
        %v3257 = vmax.f32 %v3255, %v3104
        %v3258 = vmax.f32 %v3256, %v3110
        %v3259 = vmax.f32 %v3257, %v3114
        %v3260 = vmax.f32 %v3258, %v3120
        %v3261 = vmax.f32 %v3259, %v3124
        %v3262 = vmax.f32 %v3260, %v3130
        %v3263 = vmax.f32 %v3261, %v3134
        %v3264 = vmax.f32 %v3262, %v3140
        %v3265 = vmax.f32 %v3263, %v3144
        %v3266 = vmax.f32 %v3264, %v3150
        %v3267 = vmax.f32 %v3265, %v3154
        %v3268 = vmax.f32 %v3266, %v3160
        %v3269 = vmax.f32 %v3267, %v3164
        %v3270 = vmax.f32 %v3268, %v3269
        %v3271 = vrot.slane %v3270, 4
        %v3272 = vmax.f32 %v3270, %v3271
        %v3273 = vrot.slane %v3272, 2
        %v3274 = vmax.f32 %v3272, %v3273
        %v3275 = vrot.slane %v3274, 1
        %v3276 = vmax.f32 %v3274, %v3275
        %v3277 = vmax.f32 %v3012, %v3022
        %v3278 = vmax.f32 %v3016, %v3026
        %v3279 = vmax.f32 %v3277, %v3032
        %v3280 = vmax.f32 %v3278, %v3036
        %v3281 = vmax.f32 %v3279, %v3042
        %v3282 = vmax.f32 %v3280, %v3046
        %v3283 = vmax.f32 %v3281, %v3052
        %v3284 = vmax.f32 %v3282, %v3056
        %v3285 = vmax.f32 %v3283, %v3062
        %v3286 = vmax.f32 %v3284, %v3066
        %v3287 = vmax.f32 %v3285, %v3072
        %v3288 = vmax.f32 %v3286, %v3076
        %v3289 = vmax.f32 %v3287, %v3082
        %v3290 = vmax.f32 %v3288, %v3086
        %v3291 = vmax.f32 %v3289, %v3092
        %v3292 = vmax.f32 %v3290, %v3096
        %v3293 = vmax.f32 %v3291, %v3102
        %v3294 = vmax.f32 %v3292, %v3106
        %v3295 = vmax.f32 %v3293, %v3112
        %v3296 = vmax.f32 %v3294, %v3116
        %v3297 = vmax.f32 %v3295, %v3122
        %v3298 = vmax.f32 %v3296, %v3126
        %v3299 = vmax.f32 %v3297, %v3132
        %v3300 = vmax.f32 %v3298, %v3136
        %v3301 = vmax.f32 %v3299, %v3142
        %v3302 = vmax.f32 %v3300, %v3146
        %v3303 = vmax.f32 %v3301, %v3152
        %v3304 = vmax.f32 %v3302, %v3156
        %v3305 = vmax.f32 %v3303, %v3162
        %v3306 = vmax.f32 %v3304, %v3166
        %v3307 = vmax.f32 %v3305, %v3306
        %v3308 = vrot.slane %v3307, 4
        %v3309 = vmax.f32 %v3307, %v3308
        %v3310 = vrot.slane %v3309, 2
        %v3311 = vmax.f32 %v3309, %v3310
        %v3312 = vrot.slane %v3311, 1
        %v3313 = vmax.f32 %v3311, %v3312
        %v3314 = vsel %vm1290, %v3234, -inf
        %v3315 = vrot.slane %v3314, 4
        %v3316 = vmax.f32 %v3314, %v3315
        %v3317 = vrot.slane %v3316, 2
        %v3318 = vmax.f32 %v3316, %v3317
        %v3319 = vrot.slane %v3318, 1
        %v3320 = vmax.f32 %v3318, %v3319
        %v3321 = vsel %vm1290, %v3236, -inf
        %v3322 = vrot.slane %v3321, 4
        %v3323 = vmax.f32 %v3321, %v3322
        %v3324 = vrot.slane %v3323, 2
        %v3325 = vmax.f32 %v3323, %v3324
        %v3326 = vrot.slane %v3325, 1
        %v3327 = vmax.f32 %v3325, %v3326
        %v3328 = vmax.f32 %v3276, %v3320
        %v3329 = vmax.f32 %v3313, %v3327
        %v3330 = vsub.f32 %v3010, %v3328
        %v3331 = vsub.f32 %v3012, %v3329
        %v3332 = vsub.f32 %v3014, %v3328
        %v3333 = vsub.f32 %v3016, %v3329
        %v3334 = vsub.f32 %v3020, %v3328
        %v3335 = vsub.f32 %v3022, %v3329
        %v3336 = vsub.f32 %v3024, %v3328
        %v3337 = vsub.f32 %v3026, %v3329
        %v3338 = vsub.f32 %v3030, %v3328
        %v3339 = vsub.f32 %v3032, %v3329
        %v3340 = vsub.f32 %v3034, %v3328
        %v3341 = vsub.f32 %v3036, %v3329
        %v3342 = vsub.f32 %v3040, %v3328
        %v3343 = vsub.f32 %v3042, %v3329
        %v3344 = vsub.f32 %v3044, %v3328
        %v3345 = vsub.f32 %v3046, %v3329
        %v3346 = vsub.f32 %v3050, %v3328
        %v3347 = vsub.f32 %v3052, %v3329
        %v3348 = vsub.f32 %v3054, %v3328
        %v3349 = vsub.f32 %v3056, %v3329
        %v3350 = vsub.f32 %v3060, %v3328
        %v3351 = vsub.f32 %v3062, %v3329
        %v3352 = vsub.f32 %v3064, %v3328
        %v3353 = vsub.f32 %v3066, %v3329
        %v3354 = vsub.f32 %v3070, %v3328
        %v3355 = vsub.f32 %v3072, %v3329
        %v3356 = vsub.f32 %v3074, %v3328
        %v3357 = vsub.f32 %v3076, %v3329
        %v3358 = vsub.f32 %v3080, %v3328
        %v3359 = vsub.f32 %v3082, %v3329
        %v3360 = vsub.f32 %v3084, %v3328
        %v3361 = vsub.f32 %v3086, %v3329
        %v3362 = vsub.f32 %v3090, %v3328
        %v3363 = vsub.f32 %v3092, %v3329
        %v3364 = vsub.f32 %v3094, %v3328
        %v3365 = vsub.f32 %v3096, %v3329
        %v3366 = vsub.f32 %v3100, %v3328
        %v3367 = vsub.f32 %v3102, %v3329
        %v3368 = vsub.f32 %v3104, %v3328
        %v3369 = vsub.f32 %v3106, %v3329
        %v3370 = vsub.f32 %v3110, %v3328
        %v3371 = vsub.f32 %v3112, %v3329
        %v3372 = vsub.f32 %v3114, %v3328
        %v3373 = vsub.f32 %v3116, %v3329
        %v3374 = vsub.f32 %v3120, %v3328
        %v3375 = vsub.f32 %v3122, %v3329
        %v3376 = vsub.f32 %v3124, %v3328
        %v3377 = vsub.f32 %v3126, %v3329
        %v3378 = vsub.f32 %v3130, %v3328
        %v3379 = vsub.f32 %v3132, %v3329
        %v3380 = vsub.f32 %v3134, %v3328
        %v3381 = vsub.f32 %v3136, %v3329
        %v3382 = vsub.f32 %v3140, %v3328
        %v3383 = vsub.f32 %v3142, %v3329
        %v3384 = vsub.f32 %v3144, %v3328
        %v3385 = vsub.f32 %v3146, %v3329
        %v3386 = vsub.f32 %v3150, %v3328
        %v3387 = vsub.f32 %v3152, %v3329
        %v3388 = vsub.f32 %v3154, %v3328
        %v3389 = vsub.f32 %v3156, %v3329
        %v3390 = vsub.f32 %v3160, %v3328
        %v3391 = vsub.f32 %v3162, %v3329
        %v3392 = vsub.f32 %v3164, %v3328
        %v3393 = vsub.f32 %v3166, %v3329
        %v3394 = vmul.f32 %v3330, 1.442695
        %v3395 = vpow.pop %v3394
        %v3396 = vmul.f32 %v3331, 1.442695
        %v3397 = vpow.pop %v3396
        %v3398 = vmul.f32 %v3332, 1.442695
        %v3399 = vpow.pop %v3398
        %v3400 = vmul.f32 %v3333, 1.442695
        %v3401 = vpow.pop %v3400
        %v3402 = vmul.f32 %v3334, 1.442695
        %v3403 = vpow.pop %v3402
        %v3404 = vmul.f32 %v3335, 1.442695
        %v3405 = vpow.pop %v3404
        %v3406 = vmul.f32 %v3336, 1.442695
        %v3407 = vpow.pop %v3406
        %v3408 = vmul.f32 %v3337, 1.442695
        %v3409 = vpow.pop %v3408
        %v3410 = vmul.f32 %v3338, 1.442695
        %v3411 = vpow.pop %v3410
        %v3412 = vmul.f32 %v3339, 1.442695
        %v3413 = vpow.pop %v3412
        %v3414 = vmul.f32 %v3340, 1.442695
        %v3415 = vpow.pop %v3414
        %v3416 = vmul.f32 %v3341, 1.442695
        %v3417 = vpow.pop %v3416
        %v3418 = vmul.f32 %v3342, 1.442695
        %v3419 = vpow.pop %v3418
        %v3420 = vmul.f32 %v3343, 1.442695
        %v3421 = vpow.pop %v3420
        %v3422 = vmul.f32 %v3344, 1.442695
        %v3423 = vpow.pop %v3422
        %v3424 = vmul.f32 %v3345, 1.442695
        %v3425 = vpow.pop %v3424
        %v3426 = vmul.f32 %v3346, 1.442695
        %v3427 = vpow.pop %v3426
        %v3428 = vmul.f32 %v3347, 1.442695
        %v3429 = vpow.pop %v3428
        %v3430 = vmul.f32 %v3348, 1.442695
        %v3431 = vpow.pop %v3430
        %v3432 = vmul.f32 %v3349, 1.442695
        %v3433 = vpow.pop %v3432
        %v3434 = vmul.f32 %v3350, 1.442695
        %v3435 = vpow.pop %v3434
        %v3436 = vmul.f32 %v3351, 1.442695
        %v3437 = vpow.pop %v3436
        %v3438 = vmul.f32 %v3352, 1.442695
        %v3439 = vpow.pop %v3438
        %v3440 = vmul.f32 %v3353, 1.442695
        %v3441 = vpow.pop %v3440
        %v3442 = vmul.f32 %v3354, 1.442695
        %v3443 = vpow.pop %v3442
        %v3444 = vmul.f32 %v3355, 1.442695
        %v3445 = vpow.pop %v3444
        %v3446 = vmul.f32 %v3356, 1.442695
        %v3447 = vpow.pop %v3446
        %v3448 = vmul.f32 %v3357, 1.442695
        %v3449 = vpow.pop %v3448
        %v3450 = vmul.f32 %v3358, 1.442695
        %v3451 = vpow.pop %v3450
        %v3452 = vmul.f32 %v3359, 1.442695
        %v3453 = vpow.pop %v3452
        %v3454 = vmul.f32 %v3360, 1.442695
        %v3455 = vpow.pop %v3454
        %v3456 = vmul.f32 %v3361, 1.442695
        %v3457 = vpow.pop %v3456
        %v3458 = vmul.f32 %v3362, 1.442695
        %v3459 = vpow.pop %v3458
        %v3460 = vmul.f32 %v3363, 1.442695
        %v3461 = vpow.pop %v3460
        %v3462 = vmul.f32 %v3364, 1.442695
        %v3463 = vpow.pop %v3462
        %v3464 = vmul.f32 %v3365, 1.442695
        %v3465 = vpow.pop %v3464
        %v3466 = vmul.f32 %v3366, 1.442695
        %v3467 = vpow.pop %v3466
        %v3468 = vmul.f32 %v3367, 1.442695
        %v3469 = vpow.pop %v3468
        %v3470 = vmul.f32 %v3368, 1.442695
        %v3471 = vpow.pop %v3470
        %v3472 = vmul.f32 %v3369, 1.442695
        %v3473 = vpow.pop %v3472
        %v3474 = vmul.f32 %v3370, 1.442695
        %v3475 = vpow.pop %v3474
        %v3476 = vmul.f32 %v3371, 1.442695
        %v3477 = vpow.pop %v3476
        %v3478 = vmul.f32 %v3372, 1.442695
        %v3479 = vpow.pop %v3478
        %v3480 = vmul.f32 %v3373, 1.442695
        %v3481 = vpow.pop %v3480
        %v3482 = vmul.f32 %v3374, 1.442695
        %v3483 = vpow.pop %v3482
        %v3484 = vmul.f32 %v3375, 1.442695
        %v3485 = vpow.pop %v3484
        %v3486 = vmul.f32 %v3376, 1.442695
        %v3487 = vpow.pop %v3486
        %v3488 = vmul.f32 %v3377, 1.442695
        %v3489 = vpow.pop %v3488
        %v3490 = vmul.f32 %v3378, 1.442695
        %v3491 = vpow.pop %v3490
        %v3492 = vmul.f32 %v3379, 1.442695
        %v3493 = vpow.pop %v3492
        %v3494 = vmul.f32 %v3380, 1.442695
        %v3495 = vpow.pop %v3494
        %v3496 = vmul.f32 %v3381, 1.442695
        %v3497 = vpow.pop %v3496
        %v3498 = vmul.f32 %v3382, 1.442695
        %v3499 = vpow.pop %v3498
        %v3500 = vmul.f32 %v3383, 1.442695
        %v3501 = vpow.pop %v3500
        %v3502 = vmul.f32 %v3384, 1.442695
        %v3503 = vpow.pop %v3502
        %v3504 = vmul.f32 %v3385, 1.442695
        %v3505 = vpow.pop %v3504
        %v3506 = vmul.f32 %v3386, 1.442695
        %v3507 = vpow.pop %v3506
        %v3508 = vmul.f32 %v3387, 1.442695
        %v3509 = vpow.pop %v3508
        %v3510 = vmul.f32 %v3388, 1.442695
        %v3511 = vpow.pop %v3510
        %v3512 = vmul.f32 %v3389, 1.442695
        %v3513 = vpow.pop %v3512
        %v3514 = vmul.f32 %v3390, 1.442695
        %v3515 = vpow.pop %v3514
        %v3516 = vmul.f32 %v3391, 1.442695
        %v3517 = vpow.pop %v3516
        %v3518 = vmul.f32 %v3392, 1.442695
        %v3519 = vpow.pop %v3518
        %v3520 = vmul.f32 %v3393, 1.442695
        %v3521 = vpow.pop %v3520
        %v3522 = vsub.f32 %v3234, %v3328
        %v3523 = vsub.f32 %v3236, %v3329
        %v3524 = vmul.f32 %v3522, 1.442695
        %v3525 = vpow.pop %v3524
        %v3526 = vmul.f32 %v3523, 1.442695
        %v3527 = vpow.pop %v3526
        %v3528 = vadd.f32 %v3395, %v3399
        %v3529 = vadd.f32 %v3528, %v3403
        %v3530 = vadd.f32 %v3529, %v3407
        %v3531 = vadd.f32 %v3530, %v3411
        %v3532 = vadd.f32 %v3531, %v3415
        %v3533 = vadd.f32 %v3532, %v3419
        %v3534 = vadd.f32 %v3533, %v3423
        %v3535 = vadd.f32 %v3534, %v3427
        %v3536 = vadd.f32 %v3535, %v3431
        %v3537 = vadd.f32 %v3536, %v3435
        %v3538 = vadd.f32 %v3537, %v3439
        %v3539 = vadd.f32 %v3538, %v3443
        %v3540 = vadd.f32 %v3539, %v3447
        %v3541 = vadd.f32 %v3540, %v3451
        %v3542 = vadd.f32 %v3541, %v3455
        %v3543 = vadd.f32 %v3542, %v3459
        %v3544 = vadd.f32 %v3543, %v3463
        %v3545 = vadd.f32 %v3544, %v3467
        %v3546 = vadd.f32 %v3545, %v3471
        %v3547 = vadd.f32 %v3546, %v3475
        %v3548 = vadd.f32 %v3547, %v3479
        %v3549 = vadd.f32 %v3548, %v3483
        %v3550 = vadd.f32 %v3549, %v3487
        %v3551 = vadd.f32 %v3550, %v3491
        %v3552 = vadd.f32 %v3551, %v3495
        %v3553 = vadd.f32 %v3552, %v3499
        %v3554 = vadd.f32 %v3553, %v3503
        %v3555 = vadd.f32 %v3554, %v3507
        %v3556 = vadd.f32 %v3555, %v3511
        %v3557 = vadd.f32 %v3556, %v3515
        %v3558 = vadd.f32 %v3557, %v3519
        %v3559 = vrot.slane %v3558, 4
        %v3560 = vadd.f32 %v3558, %v3559
        %v3561 = vrot.slane %v3560, 2
        %v3562 = vadd.f32 %v3560, %v3561
        %v3563 = vrot.slane %v3562, 1
        %v3564 = vadd.f32 %v3562, %v3563
        %v3565 = vadd.f32 %v3397, %v3401
        %v3566 = vadd.f32 %v3565, %v3405
        %v3567 = vadd.f32 %v3566, %v3409
        %v3568 = vadd.f32 %v3567, %v3413
        %v3569 = vadd.f32 %v3568, %v3417
        %v3570 = vadd.f32 %v3569, %v3421
        %v3571 = vadd.f32 %v3570, %v3425
        %v3572 = vadd.f32 %v3571, %v3429
        %v3573 = vadd.f32 %v3572, %v3433
        %v3574 = vadd.f32 %v3573, %v3437
        %v3575 = vadd.f32 %v3574, %v3441
        %v3576 = vadd.f32 %v3575, %v3445
        %v3577 = vadd.f32 %v3576, %v3449
        %v3578 = vadd.f32 %v3577, %v3453
        %v3579 = vadd.f32 %v3578, %v3457
        %v3580 = vadd.f32 %v3579, %v3461
        %v3581 = vadd.f32 %v3580, %v3465
        %v3582 = vadd.f32 %v3581, %v3469
        %v3583 = vadd.f32 %v3582, %v3473
        %v3584 = vadd.f32 %v3583, %v3477
        %v3585 = vadd.f32 %v3584, %v3481
        %v3586 = vadd.f32 %v3585, %v3485
        %v3587 = vadd.f32 %v3586, %v3489
        %v3588 = vadd.f32 %v3587, %v3493
        %v3589 = vadd.f32 %v3588, %v3497
        %v3590 = vadd.f32 %v3589, %v3501
        %v3591 = vadd.f32 %v3590, %v3505
        %v3592 = vadd.f32 %v3591, %v3509
        %v3593 = vadd.f32 %v3592, %v3513
        %v3594 = vadd.f32 %v3593, %v3517
        %v3595 = vadd.f32 %v3594, %v3521
        %v3596 = vrot.slane %v3595, 4
        %v3597 = vadd.f32 %v3595, %v3596
        %v3598 = vrot.slane %v3597, 2
        %v3599 = vadd.f32 %v3597, %v3598
        %v3600 = vrot.slane %v3599, 1
        %v3601 = vadd.f32 %v3599, %v3600
        %v3602 = vsel %vm1290, %v3525, 0.0
        %v3603 = vrot.slane %v3602, 4
        %v3604 = vadd.f32 %v3602, %v3603
        %v3605 = vrot.slane %v3604, 2
        %v3606 = vadd.f32 %v3604, %v3605
        %v3607 = vrot.slane %v3606, 1
        %v3608 = vadd.f32 %v3606, %v3607
        %v3609 = vsel %vm1290, %v3527, 0.0
        %v3610 = vrot.slane %v3609, 4
        %v3611 = vadd.f32 %v3609, %v3610
        %v3612 = vrot.slane %v3611, 2
        %v3613 = vadd.f32 %v3611, %v3612
        %v3614 = vrot.slane %v3613, 1
        %v3615 = vadd.f32 %v3613, %v3614
        %v3616 = vadd.f32 %v3564, %v3608
        %v3617 = vadd.f32 %v3601, %v3615
        %v3618 = vpack.c.bf16 %v3399, %v3395
        %v3619 = vpack.c.bf16 %v3401, %v3397
        %v3620 = vpack.c.bf16 %v3407, %v3403
        %v3621 = vpack.c.bf16 %v3409, %v3405
        %v3622 = vpack.c.bf16 %v3415, %v3411
        %v3623 = vpack.c.bf16 %v3417, %v3413
        %v3624 = vpack.c.bf16 %v3423, %v3419
        %v3625 = vpack.c.bf16 %v3425, %v3421
        %v3626 = vpack.c.bf16 %v3431, %v3427
        %v3627 = vpack.c.bf16 %v3433, %v3429
        %v3628 = vpack.c.bf16 %v3439, %v3435
        %v3629 = vpack.c.bf16 %v3441, %v3437
        %v3630 = vpack.c.bf16 %v3447, %v3443
        %v3631 = vpack.c.bf16 %v3449, %v3445
        %v3632 = vpack.c.bf16 %v3455, %v3451
        %v3633 = vpack.c.bf16 %v3457, %v3453
        %v3634 = vpack.c.bf16 %v3463, %v3459
        %v3635 = vpack.c.bf16 %v3465, %v3461
        %v3636 = vpack.c.bf16 %v3471, %v3467
        %v3637 = vpack.c.bf16 %v3473, %v3469
        %v3638 = vpack.c.bf16 %v3479, %v3475
        %v3639 = vpack.c.bf16 %v3481, %v3477
        %v3640 = vpack.c.bf16 %v3487, %v3483
        %v3641 = vpack.c.bf16 %v3489, %v3485
        %v3642 = vpack.c.bf16 %v3495, %v3491
        %v3643 = vpack.c.bf16 %v3497, %v3493
        %v3644 = vpack.c.bf16 %v3503, %v3499
        %v3645 = vpack.c.bf16 %v3505, %v3501
        %v3646 = vpack.c.bf16 %v3511, %v3507
        %v3647 = vpack.c.bf16 %v3513, %v3509
        %v3648 = vpack.c.bf16 %v3519, %v3515
        %v3649 = vpack.c.bf16 %v3521, %v3517
        %v3650 = vpack.c.bf16 %v3525, %v3525
        %v3651 = vpack.c.bf16 %v3527, %v3527
        %v3656 = vunpack.c.l.b16 %v2891
        %v3657 = vunpack.c.l.b16 %v2892
        %v3658 = vunpack.c.l.b16 %v2893
        %v3659 = vunpack.c.l.b16 %v2894
        %v3660 = vpack.c.b16 %v3657, %v3656
        %v3661 = vpack.c.b16 %v3659, %v3658
        %v3663 = vsel %vm1639, %v3660, 0
        %v3666 = vsel %vm1639, %v3661, 0
        %v3669 = vsel %vm1646, %v3650, 0
        %v3672 = vsel %vm1646, %v3651, 0
        %3674 = vmatprep.subr.bf16.mxu0 %v3672
        %3675 = vmatpush1.bf16.msra.mxu0 %v3669
        %3676 = vmatprep.subr.bf16.mxu0 0
        %3677 = vmatpush1.bf16.msra.mxu0 0
        %3678 = vmatprep.subr.bf16.mxu0 0
        %3679 = vmatpush1.bf16.msra.mxu0 0
        %3680 = vmatprep.subr.bf16.mxu0 0
        %3681 = vmatpush1.bf16.msra.mxu0 0
        %3682 = vmatprep.subr.bf16.mxu0 0
        %3683 = vmatpush1.bf16.msra.mxu0 0
        %3684 = vmatprep.subr.bf16.mxu0 0
        %3685 = vmatpush1.bf16.msra.mxu0 0
        %3686 = vmatprep.subr.bf16.mxu0 0
        %3687 = vmatpush1.bf16.msra.mxu0 0
        %3688 = vmatprep.subr.bf16.mxu0 0
        %3689 = vmatpush1.bf16.msra.mxu0 0
        %3690 = vmatprep.subr.bf16.mxu0 0
        %3691 = vmatpush1.bf16.msra.mxu0 0
        %3692 = vmatprep.subr.bf16.mxu0 0
        %3693 = vmatpush1.bf16.msra.mxu0 0
        %3694 = vmatprep.subr.bf16.mxu0 0
        %3695 = vmatpush1.bf16.msra.mxu0 0
        %3696 = vmatprep.subr.bf16.mxu0 0
        %3697 = vmatpush1.bf16.msra.mxu0 0
        %3698 = vmatprep.subr.bf16.mxu0 0
        %3699 = vmatpush1.bf16.msra.mxu0 0
        %3700 = vmatprep.subr.bf16.mxu0 0
        %3701 = vmatpush1.bf16.msra.mxu0 0
        %3702 = vmatprep.subr.bf16.mxu0 0
        %3703 = vmatpush1.bf16.msra.mxu0 0
        %3704 = vmatprep.subr.bf16.mxu0 0
        %3705 = vmatpush1.bf16.msra.mxu0 0
        %3706 = vmatprep.mubr.bf16.mxu0 0
        %3707 = vmatmul.mubr.bf16.gmra.mrb[0].mxu0 %v3663
        %v3708 = vpop.f32.mrb[0].mxu0
        %v3709 = vadd.f32 0.0, %v3708
        %v3710 = vpop.f32.mrb[0].mxu0
        %v3711 = vadd.f32 0.0, %v3710
        %v3712 = vpop.f32.mrb[0].mxu0
        %v3713 = vadd.f32 0.0, %v3712
        %v3714 = vpop.f32.mrb[0].mxu0
        %v3715 = vadd.f32 0.0, %v3714
        %3716 = vmatprep.mubr.bf16.mxu0 0
        %3717 = vmatmul.mubr.bf16.gmra.mrb[0].mxu0 %v3666
        %v3718 = vpop.f32.mrb[0].mxu0
        %v3719 = vadd.f32 0.0, %v3718
        %v3720 = vpop.f32.mrb[0].mxu0
        %v3721 = vadd.f32 0.0, %v3720
        %v3722 = vpop.f32.mrb[0].mxu0
        %v3723 = vadd.f32 0.0, %v3722
        %v3724 = vpop.f32.mrb[0].mxu0
        %v3725 = vadd.f32 0.0, %v3724
        %3726 = vdwg.mxu0
        %3727 = vmatprep.subr.bf16.mxu0 %v3619
        %3728 = vmatpush1.bf16.msra.mxu0 %v3618
        %3729 = vmatprep.subr.bf16.mxu0 %v3621
        %3730 = vmatpush1.bf16.msra.mxu0 %v3620
        %3731 = vmatprep.subr.bf16.mxu0 %v3623
        %3732 = vmatpush1.bf16.msra.mxu0 %v3622
        %3733 = vmatprep.subr.bf16.mxu0 %v3625
        %3734 = vmatpush1.bf16.msra.mxu0 %v3624
        %3735 = vmatprep.subr.bf16.mxu0 %v3627
        %3736 = vmatpush1.bf16.msra.mxu0 %v3626
        %3737 = vmatprep.subr.bf16.mxu0 %v3629
        %3738 = vmatpush1.bf16.msra.mxu0 %v3628
        %3739 = vmatprep.subr.bf16.mxu0 %v3631
        %3740 = vmatpush1.bf16.msra.mxu0 %v3630
        %3741 = vmatprep.subr.bf16.mxu0 %v3633
        %3742 = vmatpush1.bf16.msra.mxu0 %v3632
        %3743 = vmatprep.subr.bf16.mxu0 %v3635
        %3744 = vmatpush1.bf16.msra.mxu0 %v3634
        %3745 = vmatprep.subr.bf16.mxu0 %v3637
        %3746 = vmatpush1.bf16.msra.mxu0 %v3636
        %3747 = vmatprep.subr.bf16.mxu0 %v3639
        %3748 = vmatpush1.bf16.msra.mxu0 %v3638
        %3749 = vmatprep.subr.bf16.mxu0 %v3641
        %3750 = vmatpush1.bf16.msra.mxu0 %v3640
        %3751 = vmatprep.subr.bf16.mxu0 %v3643
        %3752 = vmatpush1.bf16.msra.mxu0 %v3642
        %3753 = vmatprep.subr.bf16.mxu0 %v3645
        %3754 = vmatpush1.bf16.msra.mxu0 %v3644
        %3755 = vmatprep.subr.bf16.mxu0 %v3647
        %3756 = vmatpush1.bf16.msra.mxu0 %v3646
        %3757 = vmatprep.subr.bf16.mxu0 %v3649
        %3758 = vmatpush1.bf16.msra.mxu0 %v3648
        %3759 = vmatprep.mubr.bf16.mxu0 %v856
        %3760 = vmatmul.mubr.bf16.gmra.mrb[0].mxu0 %v855
        %v3761 = vpop.f32.mrb[0].mxu0
        %v3762 = vadd.f32 %v3709, %v3761
        %v3763 = vpop.f32.mrb[0].mxu0
        %v3764 = vadd.f32 %v3711, %v3763
        %v3765 = vpop.f32.mrb[0].mxu0
        %v3766 = vadd.f32 %v3713, %v3765
        %v3767 = vpop.f32.mrb[0].mxu0
        %v3768 = vadd.f32 %v3715, %v3767
        %3769 = vmatprep.mubr.bf16.mxu0 %v858
        %3770 = vmatmul.mubr.bf16.gmra.mrb[0].mxu0 %v857
        %v3771 = vpop.f32.mrb[0].mxu0
        %v3772 = vadd.f32 %v3719, %v3771
        %v3773 = vpop.f32.mrb[0].mxu0
        %v3774 = vadd.f32 %v3721, %v3773
        %v3775 = vpop.f32.mrb[0].mxu0
        %v3776 = vadd.f32 %v3723, %v3775
        %v3777 = vpop.f32.mrb[0].mxu0
        %v3778 = vadd.f32 %v3725, %v3777
        %3779 = vdwg.mxu0
        %v3780 = vrcp.pop %v3616
        %v3781 = vrcp.pop %v3617
        %v3782 = vmul.f32 %v3762, %v3780
        %v3783 = vmul.f32 %v3764, %v3781
        %v3784 = vmul.f32 %v3766, %v3780
        %v3785 = vmul.f32 %v3768, %v3781
        %v3786 = vmul.f32 %v3772, %v3780
        %v3787 = vmul.f32 %v3774, %v3781
        %v3788 = vmul.f32 %v3776, %v3780
        %v3789 = vmul.f32 %v3778, %v3781
        %s3790 = scalar_lea.vmem %s4, 64
        %v3791 = vld [vmem:[%s3790] sm:$0xff]
        %v3792 = vld [vmem:[%s3790 + $0x8] sm:$0xff]
        %v3793 = vld [vmem:[%s3790 + $0x10] sm:$0xff]
        %v3794 = vld [vmem:[%s3790 + $0x18] sm:$0xff]
        %v3796 = vsel %vm469, %v3791, 0
        %v3799 = vsel %vm469, %v3792, 0
        %v3802 = vsel %vm469, %v3793, 0
        %v3805 = vsel %vm469, %v3794, 0
        %3807 = vmatprep.subr.mxu0 %v3783
        %3808 = vmatpush1.msra.mxu0 %v3782
        %3809 = vmatprep.subr.mxu0 %v3785
        %3810 = vmatpush1.msra.mxu0 %v3784
        %3811 = vmatprep.subr.mxu0 %v3787
        %3812 = vmatpush1.msra.mxu0 %v3786
        %3813 = vmatprep.subr.mxu0 %v3789
        %3814 = vmatpush1.msra.mxu0 %v3788
        %3815 = vmatprep.subr.mxu0 0.0
        %3816 = vmatpush1.msra.mxu0 0.0
        %3817 = vmatprep.subr.mxu0 0.0
        %3818 = vmatpush1.msra.mxu0 0.0
        %3819 = vmatprep.subr.mxu0 0.0
        %3820 = vmatpush1.msra.mxu0 0.0
        %3821 = vmatprep.subr.mxu0 0.0
        %3822 = vmatpush1.msra.mxu0 0.0
        %3823 = vmatprep.subr.mxu0 0.0
        %3824 = vmatpush1.msra.mxu0 0.0
        %3825 = vmatprep.subr.mxu0 0.0
        %3826 = vmatpush1.msra.mxu0 0.0
        %3827 = vmatprep.subr.mxu0 0.0
        %3828 = vmatpush1.msra.mxu0 0.0
        %3829 = vmatprep.subr.mxu0 0.0
        %3830 = vmatpush1.msra.mxu0 0.0
        %3831 = vmatprep.subr.mxu0 0.0
        %3832 = vmatpush1.msra.mxu0 0.0
        %3833 = vmatprep.subr.mxu0 0.0
        %3834 = vmatpush1.msra.mxu0 0.0
        %3835 = vmatprep.subr.mxu0 0.0
        %3836 = vmatpush1.msra.mxu0 0.0
        %3837 = vmatprep.subr.mxu0 0.0
        %3838 = vmatpush1.msra.mxu0 0.0
        %3839 = vmatprep.subr.mxu0 0.0
        %3840 = vmatpush1.msra.mxu0 0.0
        %3841 = vmatprep.subr.mxu0 0.0
        %3842 = vmatpush1.msra.mxu0 0.0
        %3843 = vmatprep.subr.mxu0 0.0
        %3844 = vmatpush1.msra.mxu0 0.0
        %3845 = vmatprep.subr.mxu0 0.0
        %3846 = vmatpush1.msra.mxu0 0.0
        %3847 = vmatprep.subr.mxu0 0.0
        %3848 = vmatpush1.msra.mxu0 0.0
        %3849 = vmatprep.subr.mxu0 0.0
        %3850 = vmatpush1.msra.mxu0 0.0
        %3851 = vmatprep.subr.mxu0 0.0
        %3852 = vmatpush1.msra.mxu0 0.0
        %3853 = vmatprep.subr.mxu0 0.0
        %3854 = vmatpush1.msra.mxu0 0.0
        %3855 = vmatprep.subr.mxu0 0.0
        %3856 = vmatpush1.msra.mxu0 0.0
        %3857 = vmatprep.subr.mxu0 0.0
        %3858 = vmatpush1.msra.mxu0 0.0
        %3859 = vmatprep.subr.mxu0 0.0
        %3860 = vmatpush1.msra.mxu0 0.0
        %3861 = vmatprep.subr.mxu0 0.0
        %3862 = vmatpush1.msra.mxu0 0.0
        %3863 = vmatprep.subr.mxu0 0.0
        %3864 = vmatpush1.msra.mxu0 0.0
        %3865 = vmatprep.subr.mxu0 0.0
        %3866 = vmatpush1.msra.mxu0 0.0
        %3867 = vmatprep.subr.mxu0 0.0
        %3868 = vmatpush1.msra.mxu0 0.0
        %3869 = vmatprep.subr.mxu0 0.0
        %3870 = vmatpush1.msra.mxu0 0.0
        %3871 = vmatprep.mubr.f32.mxu0 0.0
        %3872 = vmatmul.mubr.f32.gmra.mrb[0].mxu0 %v3796
        %v3873 = vpop.f32.mrb[0].mxu0
        %v3874 = vadd.f32 0.0, %v3873
        %v3875 = vpop.f32.mrb[0].mxu0
        %v3876 = vadd.f32 0.0, %v3875
        %3877 = vmatprep.mubr.f32.mxu0 0.0
        %3878 = vmatmul.mubr.f32.gmra.mrb[0].mxu0 %v3799
        %v3879 = vpop.f32.mrb[0].mxu0
        %v3880 = vadd.f32 0.0, %v3879
        %v3881 = vpop.f32.mrb[0].mxu0
        %v3882 = vadd.f32 0.0, %v3881
        %3883 = vmatprep.mubr.f32.mxu0 0.0
        %3884 = vmatmul.mubr.f32.gmra.mrb[0].mxu0 %v3802
        %v3885 = vpop.f32.mrb[0].mxu0
        %v3886 = vadd.f32 0.0, %v3885
        %v3887 = vpop.f32.mrb[0].mxu0
        %v3888 = vadd.f32 0.0, %v3887
        %3889 = vmatprep.mubr.f32.mxu0 0.0
        %3890 = vmatmul.mubr.f32.gmra.mrb[0].mxu0 %v3805
        %v3891 = vpop.f32.mrb[0].mxu0
        %v3892 = vadd.f32 0.0, %v3891
        %v3893 = vpop.f32.mrb[0].mxu0
        %v3894 = vadd.f32 0.0, %v3893
        %3895 = vdwg.mxu0
        %v3896 = vadd.f32 %v2863, %v3874
        %v3897 = vadd.f32 %v2865, %v3876
        %v3898 = vadd.f32 %v2869, %v3880
        %v3899 = vadd.f32 %v2871, %v3882
        %v3900 = vadd.f32 %v2875, %v3886
        %v3901 = vadd.f32 %v2877, %v3888
        %v3902 = vadd.f32 %v2881, %v3892
        %v3903 = vadd.f32 %v2883, %v3894
        %s3904 = scalar_lea.vmem %s2, 48
        %v3905 = vld [vmem:[%s3904] sm:$0xf]
        %v3906 = vld [vmem:[%s3904 + $0x4] sm:$0xf]
        %v3907 = vld [vmem:[%s3904 + $0x8] sm:$0xf]
        %v3908 = vld [vmem:[%s3904 + $0xc] sm:$0xf]
        %s3909 = scalar_lea.vmem %s3, 48
        %v3910 = vld [vmem:[%s3909] sm:$0xf]
        %v3911 = vld [vmem:[%s3909 + $0x4] sm:$0xf]
        %v3912 = vld [vmem:[%s3909 + $0x8] sm:$0xf]
        %v3913 = vld [vmem:[%s3909 + $0xc] sm:$0xf]
        %3914 = vxpose.xlu0.c.b16.start [1/8] %v843, 128
        %3915 = vxpose.xlu0.c.b16.cont [2/8] %v845, 128
        %3916 = vxpose.xlu0.c.b16.cont [3/8] 0, 128
        %3917 = vxpose.xlu0.c.b16.cont [4/8] 0, 128
        %3918 = vxpose.xlu0.c.b16.cont [5/8] 0, 128
        %3919 = vxpose.xlu0.c.b16.cont [6/8] 0, 128
        %3920 = vxpose.xlu0.c.b16.cont [7/8] 0, 128
        %3921 = vxpose.xlu0.c.b16.end [8/8] 0, 128
        %v3922 = vpop.trf.xlu0
        %v3923 = vpop.trf.xlu0
        %v3924 = vpop.trf.xlu0
        %v3925 = vpop.trf.xlu0
        %v3926 = vpop.trf.xlu0
        %v3927 = vpop.trf.xlu0
        %v3928 = vpop.trf.xlu0
        %v3929 = vpop.trf.xlu0
        %3930 = vxpose.xlu0.c.b16.start [1/8] %v844, 128
        %3931 = vxpose.xlu0.c.b16.cont [2/8] %v846, 128
        %3932 = vxpose.xlu0.c.b16.cont [3/8] 0, 128
        %3933 = vxpose.xlu0.c.b16.cont [4/8] 0, 128
        %3934 = vxpose.xlu0.c.b16.cont [5/8] 0, 128
        %3935 = vxpose.xlu0.c.b16.cont [6/8] 0, 128
        %3936 = vxpose.xlu0.c.b16.cont [7/8] 0, 128
        %3937 = vxpose.xlu0.c.b16.end [8/8] 0, 128
        %v3938 = vpop.trf.xlu0
        %v3939 = vpop.trf.xlu0
        %v3940 = vpop.trf.xlu0
        %v3941 = vpop.trf.xlu0
        %v3942 = vpop.trf.xlu0
        %v3943 = vpop.trf.xlu0
        %v3944 = vpop.trf.xlu0
        %v3945 = vpop.trf.xlu0
        %v3947 = vsel %vm469, %v3922, 0
        %v3950 = vsel %vm469, %v3923, 0
        %v3953 = vsel %vm469, %v3924, 0
        %v3956 = vsel %vm469, %v3925, 0
        %v3959 = vsel %vm469, %v3926, 0
        %v3962 = vsel %vm469, %v3927, 0
        %v3965 = vsel %vm469, %v3928, 0
        %v3968 = vsel %vm469, %v3929, 0
        %v3971 = vsel %vm469, %v3938, 0
        %v3974 = vsel %vm469, %v3939, 0
        %v3977 = vsel %vm469, %v3940, 0
        %v3980 = vsel %vm469, %v3941, 0
        %v3983 = vsel %vm469, %v3942, 0
        %v3986 = vsel %vm469, %v3943, 0
        %v3989 = vsel %vm469, %v3944, 0
        %v3992 = vsel %vm469, %v3945, 0
        %3994 = vmatprep.subr.bf16.mxu0 %v828
        %3995 = vmatpush1.bf16.msra.mxu0 %v827
        %3996 = vmatprep.subr.bf16.mxu0 %v830
        %3997 = vmatpush1.bf16.msra.mxu0 %v829
        %3998 = vmatprep.subr.bf16.mxu0 0
        %3999 = vmatpush1.bf16.msra.mxu0 0
        %4000 = vmatprep.subr.bf16.mxu0 0
        %4001 = vmatpush1.bf16.msra.mxu0 0
        %4002 = vmatprep.subr.bf16.mxu0 0
        %4003 = vmatpush1.bf16.msra.mxu0 0
        %4004 = vmatprep.subr.bf16.mxu0 0
        %4005 = vmatpush1.bf16.msra.mxu0 0
        %4006 = vmatprep.subr.bf16.mxu0 0
        %4007 = vmatpush1.bf16.msra.mxu0 0
        %4008 = vmatprep.subr.bf16.mxu0 0
        %4009 = vmatpush1.bf16.msra.mxu0 0
        %4010 = vmatprep.subr.bf16.mxu0 0
        %4011 = vmatpush1.bf16.msra.mxu0 0
        %4012 = vmatprep.subr.bf16.mxu0 0
        %4013 = vmatpush1.bf16.msra.mxu0 0
        %4014 = vmatprep.subr.bf16.mxu0 0
        %4015 = vmatpush1.bf16.msra.mxu0 0
        %4016 = vmatprep.subr.bf16.mxu0 0
        %4017 = vmatpush1.bf16.msra.mxu0 0
        %4018 = vmatprep.subr.bf16.mxu0 0
        %4019 = vmatpush1.bf16.msra.mxu0 0
        %4020 = vmatprep.subr.bf16.mxu0 0
        %4021 = vmatpush1.bf16.msra.mxu0 0
        %4022 = vmatprep.subr.bf16.mxu0 0
        %4023 = vmatpush1.bf16.msra.mxu0 0
        %4024 = vmatprep.subr.bf16.mxu0 0
        %4025 = vmatpush1.bf16.msra.mxu0 0
        %4026 = vmatprep.mubr.bf16.mxu0 0
        %4027 = vmatmul.mubr.bf16.gmra.mrb[0].mxu0 %v3947
        %v4028 = vpop.f32.mrb[0].mxu0
        %v4029 = vadd.f32 0.0, %v4028
        %v4030 = vpop.f32.mrb[0].mxu0
        %v4031 = vadd.f32 0.0, %v4030
        %v4032 = vpop.f32.mrb[0].mxu0
        %v4033 = vadd.f32 0.0, %v4032
        %v4034 = vpop.f32.mrb[0].mxu0
        %v4035 = vadd.f32 0.0, %v4034
        %4036 = vmatprep.mubr.bf16.mxu0 0
        %4037 = vmatmul.mubr.bf16.gmra.mrb[0].mxu0 %v3950
        %v4038 = vpop.f32.mrb[0].mxu0
        %v4039 = vadd.f32 0.0, %v4038
        %v4040 = vpop.f32.mrb[0].mxu0
        %v4041 = vadd.f32 0.0, %v4040
        %v4042 = vpop.f32.mrb[0].mxu0
        %v4043 = vadd.f32 0.0, %v4042
        %v4044 = vpop.f32.mrb[0].mxu0
        %v4045 = vadd.f32 0.0, %v4044
        %4046 = vmatprep.mubr.bf16.mxu0 0
        %4047 = vmatmul.mubr.bf16.gmra.mrb[0].mxu0 %v3953
        %v4048 = vpop.f32.mrb[0].mxu0
        %v4049 = vadd.f32 0.0, %v4048
        %v4050 = vpop.f32.mrb[0].mxu0
        %v4051 = vadd.f32 0.0, %v4050
        %v4052 = vpop.f32.mrb[0].mxu0
        %v4053 = vadd.f32 0.0, %v4052
        %v4054 = vpop.f32.mrb[0].mxu0
        %v4055 = vadd.f32 0.0, %v4054
        %4056 = vmatprep.mubr.bf16.mxu0 0
        %4057 = vmatmul.mubr.bf16.gmra.mrb[0].mxu0 %v3956
        %v4058 = vpop.f32.mrb[0].mxu0
        %v4059 = vadd.f32 0.0, %v4058
        %v4060 = vpop.f32.mrb[0].mxu0
        %v4061 = vadd.f32 0.0, %v4060
        %v4062 = vpop.f32.mrb[0].mxu0
        %v4063 = vadd.f32 0.0, %v4062
        %v4064 = vpop.f32.mrb[0].mxu0
        %v4065 = vadd.f32 0.0, %v4064
        %4066 = vmatprep.mubr.bf16.mxu0 0
        %4067 = vmatmul.mubr.bf16.gmra.mrb[0].mxu0 %v3959
        %v4068 = vpop.f32.mrb[0].mxu0
        %v4069 = vadd.f32 0.0, %v4068
        %v4070 = vpop.f32.mrb[0].mxu0
        %v4071 = vadd.f32 0.0, %v4070
        %v4072 = vpop.f32.mrb[0].mxu0
        %v4073 = vadd.f32 0.0, %v4072
        %v4074 = vpop.f32.mrb[0].mxu0
        %v4075 = vadd.f32 0.0, %v4074
        %4076 = vmatprep.mubr.bf16.mxu0 0
        %4077 = vmatmul.mubr.bf16.gmra.mrb[0].mxu0 %v3962
        %v4078 = vpop.f32.mrb[0].mxu0
        %v4079 = vadd.f32 0.0, %v4078
        %v4080 = vpop.f32.mrb[0].mxu0
        %v4081 = vadd.f32 0.0, %v4080
        %v4082 = vpop.f32.mrb[0].mxu0
        %v4083 = vadd.f32 0.0, %v4082
        %v4084 = vpop.f32.mrb[0].mxu0
        %v4085 = vadd.f32 0.0, %v4084
        %4086 = vmatprep.mubr.bf16.mxu0 0
        %4087 = vmatmul.mubr.bf16.gmra.mrb[0].mxu0 %v3965
        %v4088 = vpop.f32.mrb[0].mxu0
        %v4089 = vadd.f32 0.0, %v4088
        %v4090 = vpop.f32.mrb[0].mxu0
        %v4091 = vadd.f32 0.0, %v4090
        %v4092 = vpop.f32.mrb[0].mxu0
        %v4093 = vadd.f32 0.0, %v4092
        %v4094 = vpop.f32.mrb[0].mxu0
        %v4095 = vadd.f32 0.0, %v4094
        %4096 = vmatprep.mubr.bf16.mxu0 0
        %4097 = vmatmul.mubr.bf16.gmra.mrb[0].mxu0 %v3968
        %v4098 = vpop.f32.mrb[0].mxu0
        %v4099 = vadd.f32 0.0, %v4098
        %v4100 = vpop.f32.mrb[0].mxu0
        %v4101 = vadd.f32 0.0, %v4100
        %v4102 = vpop.f32.mrb[0].mxu0
        %v4103 = vadd.f32 0.0, %v4102
        %v4104 = vpop.f32.mrb[0].mxu0
        %v4105 = vadd.f32 0.0, %v4104
        %4106 = vmatprep.mubr.bf16.mxu0 0
        %4107 = vmatmul.mubr.bf16.gmra.mrb[0].mxu0 %v3971
        %v4108 = vpop.f32.mrb[0].mxu0
        %v4109 = vadd.f32 0.0, %v4108
        %v4110 = vpop.f32.mrb[0].mxu0
        %v4111 = vadd.f32 0.0, %v4110
        %v4112 = vpop.f32.mrb[0].mxu0
        %v4113 = vadd.f32 0.0, %v4112
        %v4114 = vpop.f32.mrb[0].mxu0
        %v4115 = vadd.f32 0.0, %v4114
        %4116 = vmatprep.mubr.bf16.mxu0 0
        %4117 = vmatmul.mubr.bf16.gmra.mrb[0].mxu0 %v3974
        %v4118 = vpop.f32.mrb[0].mxu0
        %v4119 = vadd.f32 0.0, %v4118
        %v4120 = vpop.f32.mrb[0].mxu0
        %v4121 = vadd.f32 0.0, %v4120
        %v4122 = vpop.f32.mrb[0].mxu0
        %v4123 = vadd.f32 0.0, %v4122
        %v4124 = vpop.f32.mrb[0].mxu0
        %v4125 = vadd.f32 0.0, %v4124
        %4126 = vmatprep.mubr.bf16.mxu0 0
        %4127 = vmatmul.mubr.bf16.gmra.mrb[0].mxu0 %v3977
        %v4128 = vpop.f32.mrb[0].mxu0
        %v4129 = vadd.f32 0.0, %v4128
        %v4130 = vpop.f32.mrb[0].mxu0
        %v4131 = vadd.f32 0.0, %v4130
        %v4132 = vpop.f32.mrb[0].mxu0
        %v4133 = vadd.f32 0.0, %v4132
        %v4134 = vpop.f32.mrb[0].mxu0
        %v4135 = vadd.f32 0.0, %v4134
        %4136 = vmatprep.mubr.bf16.mxu0 0
        %4137 = vmatmul.mubr.bf16.gmra.mrb[0].mxu0 %v3980
        %v4138 = vpop.f32.mrb[0].mxu0
        %v4139 = vadd.f32 0.0, %v4138
        %v4140 = vpop.f32.mrb[0].mxu0
        %v4141 = vadd.f32 0.0, %v4140
        %v4142 = vpop.f32.mrb[0].mxu0
        %v4143 = vadd.f32 0.0, %v4142
        %v4144 = vpop.f32.mrb[0].mxu0
        %v4145 = vadd.f32 0.0, %v4144
        %4146 = vmatprep.mubr.bf16.mxu0 0
        %4147 = vmatmul.mubr.bf16.gmra.mrb[0].mxu0 %v3983
        %v4148 = vpop.f32.mrb[0].mxu0
        %v4149 = vadd.f32 0.0, %v4148
        %v4150 = vpop.f32.mrb[0].mxu0
        %v4151 = vadd.f32 0.0, %v4150
        %v4152 = vpop.f32.mrb[0].mxu0
        %v4153 = vadd.f32 0.0, %v4152
        %v4154 = vpop.f32.mrb[0].mxu0
        %v4155 = vadd.f32 0.0, %v4154
        %4156 = vmatprep.mubr.bf16.mxu0 0
        %4157 = vmatmul.mubr.bf16.gmra.mrb[0].mxu0 %v3986
        %v4158 = vpop.f32.mrb[0].mxu0
        %v4159 = vadd.f32 0.0, %v4158
        %v4160 = vpop.f32.mrb[0].mxu0
        %v4161 = vadd.f32 0.0, %v4160
        %v4162 = vpop.f32.mrb[0].mxu0
        %v4163 = vadd.f32 0.0, %v4162
        %v4164 = vpop.f32.mrb[0].mxu0
        %v4165 = vadd.f32 0.0, %v4164
        %4166 = vmatprep.mubr.bf16.mxu0 0
        %4167 = vmatmul.mubr.bf16.gmra.mrb[0].mxu0 %v3989
        %v4168 = vpop.f32.mrb[0].mxu0
        %v4169 = vadd.f32 0.0, %v4168
        %v4170 = vpop.f32.mrb[0].mxu0
        %v4171 = vadd.f32 0.0, %v4170
        %v4172 = vpop.f32.mrb[0].mxu0
        %v4173 = vadd.f32 0.0, %v4172
        %v4174 = vpop.f32.mrb[0].mxu0
        %v4175 = vadd.f32 0.0, %v4174
        %4176 = vmatprep.mubr.bf16.mxu0 0
        %4177 = vmatmul.mubr.bf16.gmra.mrb[0].mxu0 %v3992
        %v4178 = vpop.f32.mrb[0].mxu0
        %v4179 = vadd.f32 0.0, %v4178
        %v4180 = vpop.f32.mrb[0].mxu0
        %v4181 = vadd.f32 0.0, %v4180
        %v4182 = vpop.f32.mrb[0].mxu0
        %v4183 = vadd.f32 0.0, %v4182
        %v4184 = vpop.f32.mrb[0].mxu0
        %v4185 = vadd.f32 0.0, %v4184
        %4186 = vdwg.mxu0
        %v4191 = vunpack.c.l.b16 %v3905
        %v4192 = vunpack.c.l.b16 %v3906
        %v4193 = vunpack.c.l.b16 %v3907
        %v4194 = vunpack.c.l.b16 %v3908
        %v4195 = vpack.c.b16 %v4192, %v4191
        %v4196 = vpack.c.b16 %v4194, %v4193
        %4199 = vxpose.xlu0.c.b16.start [1/8] %v4195, 128
        %4200 = vxpose.xlu0.c.b16.cont [2/8] %v4196, 128
        %4201 = vxpose.xlu0.c.b16.cont [3/8] 0, 128
        %4202 = vxpose.xlu0.c.b16.cont [4/8] 0, 128
        %4203 = vxpose.xlu0.c.b16.cont [5/8] 0, 128
        %4204 = vxpose.xlu0.c.b16.cont [6/8] 0, 128
        %4205 = vxpose.xlu0.c.b16.cont [7/8] 0, 128
        %4206 = vxpose.xlu0.c.b16.end [8/8] 0, 128
        %v4207 = vpop.trf.xlu0
        %v4208 = vpop.trf.xlu0
        %v4209 = vpop.trf.xlu0
        %v4210 = vpop.trf.xlu0
        %v4211 = vpop.trf.xlu0
        %v4212 = vpop.trf.xlu0
        %v4213 = vpop.trf.xlu0
        %v4214 = vpop.trf.xlu0
        %v4216 = vsel %vm469, %v4207, 0
        %4218 = vmatprep.subr.bf16.mxu0 %v828
        %4219 = vmatpush1.bf16.msra.mxu0 %v827
        %4220 = vmatprep.subr.bf16.mxu0 %v830
        %4221 = vmatpush1.bf16.msra.mxu0 %v829
        %4222 = vmatprep.subr.bf16.mxu0 0
        %4223 = vmatpush1.bf16.msra.mxu0 0
        %4224 = vmatprep.subr.bf16.mxu0 0
        %4225 = vmatpush1.bf16.msra.mxu0 0
        %4226 = vmatprep.subr.bf16.mxu0 0
        %4227 = vmatpush1.bf16.msra.mxu0 0
        %4228 = vmatprep.subr.bf16.mxu0 0
        %4229 = vmatpush1.bf16.msra.mxu0 0
        %4230 = vmatprep.subr.bf16.mxu0 0
        %4231 = vmatpush1.bf16.msra.mxu0 0
        %4232 = vmatprep.subr.bf16.mxu0 0
        %4233 = vmatpush1.bf16.msra.mxu0 0
        %4234 = vmatprep.subr.bf16.mxu0 0
        %4235 = vmatpush1.bf16.msra.mxu0 0
        %4236 = vmatprep.subr.bf16.mxu0 0
        %4237 = vmatpush1.bf16.msra.mxu0 0
        %4238 = vmatprep.subr.bf16.mxu0 0
        %4239 = vmatpush1.bf16.msra.mxu0 0
        %4240 = vmatprep.subr.bf16.mxu0 0
        %4241 = vmatpush1.bf16.msra.mxu0 0
        %4242 = vmatprep.subr.bf16.mxu0 0
        %4243 = vmatpush1.bf16.msra.mxu0 0
        %4244 = vmatprep.subr.bf16.mxu0 0
        %4245 = vmatpush1.bf16.msra.mxu0 0
        %4246 = vmatprep.subr.bf16.mxu0 0
        %4247 = vmatpush1.bf16.msra.mxu0 0
        %4248 = vmatprep.subr.bf16.mxu0 0
        %4249 = vmatpush1.bf16.msra.mxu0 0
        %4250 = vmatprep.mubr.bf16.mxu0 0
        %4251 = vmatmul.mubr.bf16.gmra.mrb[0].mxu0 %v4216
        %v4252 = vpop.f32.mrb[0].mxu0
        %v4253 = vadd.f32 0.0, %v4252
        %v4254 = vpop.f32.mrb[0].mxu0
        %v4255 = vadd.f32 0.0, %v4254
        %v4256 = vpop.f32.mrb[0].mxu0
        %v4257 = vpop.f32.mrb[0].mxu0
        %4258 = vdwg.mxu0
        %v4259 = vmax.f32 %v4029, %v4039
        %v4260 = vmax.f32 %v4033, %v4043
        %v4261 = vmax.f32 %v4259, %v4049
        %v4262 = vmax.f32 %v4260, %v4053
        %v4263 = vmax.f32 %v4261, %v4059
        %v4264 = vmax.f32 %v4262, %v4063
        %v4265 = vmax.f32 %v4263, %v4069
        %v4266 = vmax.f32 %v4264, %v4073
        %v4267 = vmax.f32 %v4265, %v4079
        %v4268 = vmax.f32 %v4266, %v4083
        %v4269 = vmax.f32 %v4267, %v4089
        %v4270 = vmax.f32 %v4268, %v4093
        %v4271 = vmax.f32 %v4269, %v4099
        %v4272 = vmax.f32 %v4270, %v4103
        %v4273 = vmax.f32 %v4271, %v4109
        %v4274 = vmax.f32 %v4272, %v4113
        %v4275 = vmax.f32 %v4273, %v4119
        %v4276 = vmax.f32 %v4274, %v4123
        %v4277 = vmax.f32 %v4275, %v4129
        %v4278 = vmax.f32 %v4276, %v4133
        %v4279 = vmax.f32 %v4277, %v4139
        %v4280 = vmax.f32 %v4278, %v4143
        %v4281 = vmax.f32 %v4279, %v4149
        %v4282 = vmax.f32 %v4280, %v4153
        %v4283 = vmax.f32 %v4281, %v4159
        %v4284 = vmax.f32 %v4282, %v4163
        %v4285 = vmax.f32 %v4283, %v4169
        %v4286 = vmax.f32 %v4284, %v4173
        %v4287 = vmax.f32 %v4285, %v4179
        %v4288 = vmax.f32 %v4286, %v4183
        %v4289 = vmax.f32 %v4287, %v4288
        %v4290 = vrot.slane %v4289, 4
        %v4291 = vmax.f32 %v4289, %v4290
        %v4292 = vrot.slane %v4291, 2
        %v4293 = vmax.f32 %v4291, %v4292
        %v4294 = vrot.slane %v4293, 1
        %v4295 = vmax.f32 %v4293, %v4294
        %v4296 = vmax.f32 %v4031, %v4041
        %v4297 = vmax.f32 %v4035, %v4045
        %v4298 = vmax.f32 %v4296, %v4051
        %v4299 = vmax.f32 %v4297, %v4055
        %v4300 = vmax.f32 %v4298, %v4061
        %v4301 = vmax.f32 %v4299, %v4065
        %v4302 = vmax.f32 %v4300, %v4071
        %v4303 = vmax.f32 %v4301, %v4075
        %v4304 = vmax.f32 %v4302, %v4081
        %v4305 = vmax.f32 %v4303, %v4085
        %v4306 = vmax.f32 %v4304, %v4091
        %v4307 = vmax.f32 %v4305, %v4095
        %v4308 = vmax.f32 %v4306, %v4101
        %v4309 = vmax.f32 %v4307, %v4105
        %v4310 = vmax.f32 %v4308, %v4111
        %v4311 = vmax.f32 %v4309, %v4115
        %v4312 = vmax.f32 %v4310, %v4121
        %v4313 = vmax.f32 %v4311, %v4125
        %v4314 = vmax.f32 %v4312, %v4131
        %v4315 = vmax.f32 %v4313, %v4135
        %v4316 = vmax.f32 %v4314, %v4141
        %v4317 = vmax.f32 %v4315, %v4145
        %v4318 = vmax.f32 %v4316, %v4151
        %v4319 = vmax.f32 %v4317, %v4155
        %v4320 = vmax.f32 %v4318, %v4161
        %v4321 = vmax.f32 %v4319, %v4165
        %v4322 = vmax.f32 %v4320, %v4171
        %v4323 = vmax.f32 %v4321, %v4175
        %v4324 = vmax.f32 %v4322, %v4181
        %v4325 = vmax.f32 %v4323, %v4185
        %v4326 = vmax.f32 %v4324, %v4325
        %v4327 = vrot.slane %v4326, 4
        %v4328 = vmax.f32 %v4326, %v4327
        %v4329 = vrot.slane %v4328, 2
        %v4330 = vmax.f32 %v4328, %v4329
        %v4331 = vrot.slane %v4330, 1
        %v4332 = vmax.f32 %v4330, %v4331
        %v4333 = vsel %vm1290, %v4253, -inf
        %v4334 = vrot.slane %v4333, 4
        %v4335 = vmax.f32 %v4333, %v4334
        %v4336 = vrot.slane %v4335, 2
        %v4337 = vmax.f32 %v4335, %v4336
        %v4338 = vrot.slane %v4337, 1
        %v4339 = vmax.f32 %v4337, %v4338
        %v4340 = vsel %vm1290, %v4255, -inf
        %v4341 = vrot.slane %v4340, 4
        %v4342 = vmax.f32 %v4340, %v4341
        %v4343 = vrot.slane %v4342, 2
        %v4344 = vmax.f32 %v4342, %v4343
        %v4345 = vrot.slane %v4344, 1
        %v4346 = vmax.f32 %v4344, %v4345
        %v4347 = vmax.f32 %v4295, %v4339
        %v4348 = vmax.f32 %v4332, %v4346
        %v4349 = vsub.f32 %v4029, %v4347
        %v4350 = vsub.f32 %v4031, %v4348
        %v4351 = vsub.f32 %v4033, %v4347
        %v4352 = vsub.f32 %v4035, %v4348
        %v4353 = vsub.f32 %v4039, %v4347
        %v4354 = vsub.f32 %v4041, %v4348
        %v4355 = vsub.f32 %v4043, %v4347
        %v4356 = vsub.f32 %v4045, %v4348
        %v4357 = vsub.f32 %v4049, %v4347
        %v4358 = vsub.f32 %v4051, %v4348
        %v4359 = vsub.f32 %v4053, %v4347
        %v4360 = vsub.f32 %v4055, %v4348
        %v4361 = vsub.f32 %v4059, %v4347
        %v4362 = vsub.f32 %v4061, %v4348
        %v4363 = vsub.f32 %v4063, %v4347
        %v4364 = vsub.f32 %v4065, %v4348
        %v4365 = vsub.f32 %v4069, %v4347
        %v4366 = vsub.f32 %v4071, %v4348
        %v4367 = vsub.f32 %v4073, %v4347
        %v4368 = vsub.f32 %v4075, %v4348
        %v4369 = vsub.f32 %v4079, %v4347
        %v4370 = vsub.f32 %v4081, %v4348
        %v4371 = vsub.f32 %v4083, %v4347
        %v4372 = vsub.f32 %v4085, %v4348
        %v4373 = vsub.f32 %v4089, %v4347
        %v4374 = vsub.f32 %v4091, %v4348
        %v4375 = vsub.f32 %v4093, %v4347
        %v4376 = vsub.f32 %v4095, %v4348
        %v4377 = vsub.f32 %v4099, %v4347
        %v4378 = vsub.f32 %v4101, %v4348
        %v4379 = vsub.f32 %v4103, %v4347
        %v4380 = vsub.f32 %v4105, %v4348
        %v4381 = vsub.f32 %v4109, %v4347
        %v4382 = vsub.f32 %v4111, %v4348
        %v4383 = vsub.f32 %v4113, %v4347
        %v4384 = vsub.f32 %v4115, %v4348
        %v4385 = vsub.f32 %v4119, %v4347
        %v4386 = vsub.f32 %v4121, %v4348
        %v4387 = vsub.f32 %v4123, %v4347
        %v4388 = vsub.f32 %v4125, %v4348
        %v4389 = vsub.f32 %v4129, %v4347
        %v4390 = vsub.f32 %v4131, %v4348
        %v4391 = vsub.f32 %v4133, %v4347
        %v4392 = vsub.f32 %v4135, %v4348
        %v4393 = vsub.f32 %v4139, %v4347
        %v4394 = vsub.f32 %v4141, %v4348
        %v4395 = vsub.f32 %v4143, %v4347
        %v4396 = vsub.f32 %v4145, %v4348
        %v4397 = vsub.f32 %v4149, %v4347
        %v4398 = vsub.f32 %v4151, %v4348
        %v4399 = vsub.f32 %v4153, %v4347
        %v4400 = vsub.f32 %v4155, %v4348
        %v4401 = vsub.f32 %v4159, %v4347
        %v4402 = vsub.f32 %v4161, %v4348
        %v4403 = vsub.f32 %v4163, %v4347
        %v4404 = vsub.f32 %v4165, %v4348
        %v4405 = vsub.f32 %v4169, %v4347
        %v4406 = vsub.f32 %v4171, %v4348
        %v4407 = vsub.f32 %v4173, %v4347
        %v4408 = vsub.f32 %v4175, %v4348
        %v4409 = vsub.f32 %v4179, %v4347
        %v4410 = vsub.f32 %v4181, %v4348
        %v4411 = vsub.f32 %v4183, %v4347
        %v4412 = vsub.f32 %v4185, %v4348
        %v4413 = vmul.f32 %v4349, 1.442695
        %v4414 = vpow.pop %v4413
        %v4415 = vmul.f32 %v4350, 1.442695
        %v4416 = vpow.pop %v4415
        %v4417 = vmul.f32 %v4351, 1.442695
        %v4418 = vpow.pop %v4417
        %v4419 = vmul.f32 %v4352, 1.442695
        %v4420 = vpow.pop %v4419
        %v4421 = vmul.f32 %v4353, 1.442695
        %v4422 = vpow.pop %v4421
        %v4423 = vmul.f32 %v4354, 1.442695
        %v4424 = vpow.pop %v4423
        %v4425 = vmul.f32 %v4355, 1.442695
        %v4426 = vpow.pop %v4425
        %v4427 = vmul.f32 %v4356, 1.442695
        %v4428 = vpow.pop %v4427
        %v4429 = vmul.f32 %v4357, 1.442695
        %v4430 = vpow.pop %v4429
        %v4431 = vmul.f32 %v4358, 1.442695
        %v4432 = vpow.pop %v4431
        %v4433 = vmul.f32 %v4359, 1.442695
        %v4434 = vpow.pop %v4433
        %v4435 = vmul.f32 %v4360, 1.442695
        %v4436 = vpow.pop %v4435
        %v4437 = vmul.f32 %v4361, 1.442695
        %v4438 = vpow.pop %v4437
        %v4439 = vmul.f32 %v4362, 1.442695
        %v4440 = vpow.pop %v4439
        %v4441 = vmul.f32 %v4363, 1.442695
        %v4442 = vpow.pop %v4441
        %v4443 = vmul.f32 %v4364, 1.442695
        %v4444 = vpow.pop %v4443
        %v4445 = vmul.f32 %v4365, 1.442695
        %v4446 = vpow.pop %v4445
        %v4447 = vmul.f32 %v4366, 1.442695
        %v4448 = vpow.pop %v4447
        %v4449 = vmul.f32 %v4367, 1.442695
        %v4450 = vpow.pop %v4449
        %v4451 = vmul.f32 %v4368, 1.442695
        %v4452 = vpow.pop %v4451
        %v4453 = vmul.f32 %v4369, 1.442695
        %v4454 = vpow.pop %v4453
        %v4455 = vmul.f32 %v4370, 1.442695
        %v4456 = vpow.pop %v4455
        %v4457 = vmul.f32 %v4371, 1.442695
        %v4458 = vpow.pop %v4457
        %v4459 = vmul.f32 %v4372, 1.442695
        %v4460 = vpow.pop %v4459
        %v4461 = vmul.f32 %v4373, 1.442695
        %v4462 = vpow.pop %v4461
        %v4463 = vmul.f32 %v4374, 1.442695
        %v4464 = vpow.pop %v4463
        %v4465 = vmul.f32 %v4375, 1.442695
        %v4466 = vpow.pop %v4465
        %v4467 = vmul.f32 %v4376, 1.442695
        %v4468 = vpow.pop %v4467
        %v4469 = vmul.f32 %v4377, 1.442695
        %v4470 = vpow.pop %v4469
        %v4471 = vmul.f32 %v4378, 1.442695
        %v4472 = vpow.pop %v4471
        %v4473 = vmul.f32 %v4379, 1.442695
        %v4474 = vpow.pop %v4473
        %v4475 = vmul.f32 %v4380, 1.442695
        %v4476 = vpow.pop %v4475
        %v4477 = vmul.f32 %v4381, 1.442695
        %v4478 = vpow.pop %v4477
        %v4479 = vmul.f32 %v4382, 1.442695
        %v4480 = vpow.pop %v4479
        %v4481 = vmul.f32 %v4383, 1.442695
        %v4482 = vpow.pop %v4481
        %v4483 = vmul.f32 %v4384, 1.442695
        %v4484 = vpow.pop %v4483
        %v4485 = vmul.f32 %v4385, 1.442695
        %v4486 = vpow.pop %v4485
        %v4487 = vmul.f32 %v4386, 1.442695
        %v4488 = vpow.pop %v4487
        %v4489 = vmul.f32 %v4387, 1.442695
        %v4490 = vpow.pop %v4489
        %v4491 = vmul.f32 %v4388, 1.442695
        %v4492 = vpow.pop %v4491
        %v4493 = vmul.f32 %v4389, 1.442695
        %v4494 = vpow.pop %v4493
        %v4495 = vmul.f32 %v4390, 1.442695
        %v4496 = vpow.pop %v4495
        %v4497 = vmul.f32 %v4391, 1.442695
        %v4498 = vpow.pop %v4497
        %v4499 = vmul.f32 %v4392, 1.442695
        %v4500 = vpow.pop %v4499
        %v4501 = vmul.f32 %v4393, 1.442695
        %v4502 = vpow.pop %v4501
        %v4503 = vmul.f32 %v4394, 1.442695
        %v4504 = vpow.pop %v4503
        %v4505 = vmul.f32 %v4395, 1.442695
        %v4506 = vpow.pop %v4505
        %v4507 = vmul.f32 %v4396, 1.442695
        %v4508 = vpow.pop %v4507
        %v4509 = vmul.f32 %v4397, 1.442695
        %v4510 = vpow.pop %v4509
        %v4511 = vmul.f32 %v4398, 1.442695
        %v4512 = vpow.pop %v4511
        %v4513 = vmul.f32 %v4399, 1.442695
        %v4514 = vpow.pop %v4513
        %v4515 = vmul.f32 %v4400, 1.442695
        %v4516 = vpow.pop %v4515
        %v4517 = vmul.f32 %v4401, 1.442695
        %v4518 = vpow.pop %v4517
        %v4519 = vmul.f32 %v4402, 1.442695
        %v4520 = vpow.pop %v4519
        %v4521 = vmul.f32 %v4403, 1.442695
        %v4522 = vpow.pop %v4521
        %v4523 = vmul.f32 %v4404, 1.442695
        %v4524 = vpow.pop %v4523
        %v4525 = vmul.f32 %v4405, 1.442695
        %v4526 = vpow.pop %v4525
        %v4527 = vmul.f32 %v4406, 1.442695
        %v4528 = vpow.pop %v4527
        %v4529 = vmul.f32 %v4407, 1.442695
        %v4530 = vpow.pop %v4529
        %v4531 = vmul.f32 %v4408, 1.442695
        %v4532 = vpow.pop %v4531
        %v4533 = vmul.f32 %v4409, 1.442695
        %v4534 = vpow.pop %v4533
        %v4535 = vmul.f32 %v4410, 1.442695
        %v4536 = vpow.pop %v4535
        %v4537 = vmul.f32 %v4411, 1.442695
        %v4538 = vpow.pop %v4537
        %v4539 = vmul.f32 %v4412, 1.442695
        %v4540 = vpow.pop %v4539
        %v4541 = vsub.f32 %v4253, %v4347
        %v4542 = vsub.f32 %v4255, %v4348
        %v4543 = vmul.f32 %v4541, 1.442695
        %v4544 = vpow.pop %v4543
        %v4545 = vmul.f32 %v4542, 1.442695
        %v4546 = vpow.pop %v4545
        %v4547 = vadd.f32 %v4414, %v4418
        %v4548 = vadd.f32 %v4547, %v4422
        %v4549 = vadd.f32 %v4548, %v4426
        %v4550 = vadd.f32 %v4549, %v4430
        %v4551 = vadd.f32 %v4550, %v4434
        %v4552 = vadd.f32 %v4551, %v4438
        %v4553 = vadd.f32 %v4552, %v4442
        %v4554 = vadd.f32 %v4553, %v4446
        %v4555 = vadd.f32 %v4554, %v4450
        %v4556 = vadd.f32 %v4555, %v4454
        %v4557 = vadd.f32 %v4556, %v4458
        %v4558 = vadd.f32 %v4557, %v4462
        %v4559 = vadd.f32 %v4558, %v4466
        %v4560 = vadd.f32 %v4559, %v4470
        %v4561 = vadd.f32 %v4560, %v4474
        %v4562 = vadd.f32 %v4561, %v4478
        %v4563 = vadd.f32 %v4562, %v4482
        %v4564 = vadd.f32 %v4563, %v4486
        %v4565 = vadd.f32 %v4564, %v4490
        %v4566 = vadd.f32 %v4565, %v4494
        %v4567 = vadd.f32 %v4566, %v4498
        %v4568 = vadd.f32 %v4567, %v4502
        %v4569 = vadd.f32 %v4568, %v4506
        %v4570 = vadd.f32 %v4569, %v4510
        %v4571 = vadd.f32 %v4570, %v4514
        %v4572 = vadd.f32 %v4571, %v4518
        %v4573 = vadd.f32 %v4572, %v4522
        %v4574 = vadd.f32 %v4573, %v4526
        %v4575 = vadd.f32 %v4574, %v4530
        %v4576 = vadd.f32 %v4575, %v4534
        %v4577 = vadd.f32 %v4576, %v4538
        %v4578 = vrot.slane %v4577, 4
        %v4579 = vadd.f32 %v4577, %v4578
        %v4580 = vrot.slane %v4579, 2
        %v4581 = vadd.f32 %v4579, %v4580
        %v4582 = vrot.slane %v4581, 1
        %v4583 = vadd.f32 %v4581, %v4582
        %v4584 = vadd.f32 %v4416, %v4420
        %v4585 = vadd.f32 %v4584, %v4424
        %v4586 = vadd.f32 %v4585, %v4428
        %v4587 = vadd.f32 %v4586, %v4432
        %v4588 = vadd.f32 %v4587, %v4436
        %v4589 = vadd.f32 %v4588, %v4440
        %v4590 = vadd.f32 %v4589, %v4444
        %v4591 = vadd.f32 %v4590, %v4448
        %v4592 = vadd.f32 %v4591, %v4452
        %v4593 = vadd.f32 %v4592, %v4456
        %v4594 = vadd.f32 %v4593, %v4460
        %v4595 = vadd.f32 %v4594, %v4464
        %v4596 = vadd.f32 %v4595, %v4468
        %v4597 = vadd.f32 %v4596, %v4472
        %v4598 = vadd.f32 %v4597, %v4476
        %v4599 = vadd.f32 %v4598, %v4480
        %v4600 = vadd.f32 %v4599, %v4484
        %v4601 = vadd.f32 %v4600, %v4488
        %v4602 = vadd.f32 %v4601, %v4492
        %v4603 = vadd.f32 %v4602, %v4496
        %v4604 = vadd.f32 %v4603, %v4500
        %v4605 = vadd.f32 %v4604, %v4504
        %v4606 = vadd.f32 %v4605, %v4508
        %v4607 = vadd.f32 %v4606, %v4512
        %v4608 = vadd.f32 %v4607, %v4516
        %v4609 = vadd.f32 %v4608, %v4520
        %v4610 = vadd.f32 %v4609, %v4524
        %v4611 = vadd.f32 %v4610, %v4528
        %v4612 = vadd.f32 %v4611, %v4532
        %v4613 = vadd.f32 %v4612, %v4536
        %v4614 = vadd.f32 %v4613, %v4540
        %v4615 = vrot.slane %v4614, 4
        %v4616 = vadd.f32 %v4614, %v4615
        %v4617 = vrot.slane %v4616, 2
        %v4618 = vadd.f32 %v4616, %v4617
        %v4619 = vrot.slane %v4618, 1
        %v4620 = vadd.f32 %v4618, %v4619
        %v4621 = vsel %vm1290, %v4544, 0.0
        %v4622 = vrot.slane %v4621, 4
        %v4623 = vadd.f32 %v4621, %v4622
        %v4624 = vrot.slane %v4623, 2
        %v4625 = vadd.f32 %v4623, %v4624
        %v4626 = vrot.slane %v4625, 1
        %v4627 = vadd.f32 %v4625, %v4626
        %v4628 = vsel %vm1290, %v4546, 0.0
        %v4629 = vrot.slane %v4628, 4
        %v4630 = vadd.f32 %v4628, %v4629
        %v4631 = vrot.slane %v4630, 2
        %v4632 = vadd.f32 %v4630, %v4631
        %v4633 = vrot.slane %v4632, 1
        %v4634 = vadd.f32 %v4632, %v4633
        %v4635 = vadd.f32 %v4583, %v4627
        %v4636 = vadd.f32 %v4620, %v4634
        %v4637 = vpack.c.bf16 %v4418, %v4414
        %v4638 = vpack.c.bf16 %v4420, %v4416
        %v4639 = vpack.c.bf16 %v4426, %v4422
        %v4640 = vpack.c.bf16 %v4428, %v4424
        %v4641 = vpack.c.bf16 %v4434, %v4430
        %v4642 = vpack.c.bf16 %v4436, %v4432
        %v4643 = vpack.c.bf16 %v4442, %v4438
        %v4644 = vpack.c.bf16 %v4444, %v4440
        %v4645 = vpack.c.bf16 %v4450, %v4446
        %v4646 = vpack.c.bf16 %v4452, %v4448
        %v4647 = vpack.c.bf16 %v4458, %v4454
        %v4648 = vpack.c.bf16 %v4460, %v4456
        %v4649 = vpack.c.bf16 %v4466, %v4462
        %v4650 = vpack.c.bf16 %v4468, %v4464
        %v4651 = vpack.c.bf16 %v4474, %v4470
        %v4652 = vpack.c.bf16 %v4476, %v4472
        %v4653 = vpack.c.bf16 %v4482, %v4478
        %v4654 = vpack.c.bf16 %v4484, %v4480
        %v4655 = vpack.c.bf16 %v4490, %v4486
        %v4656 = vpack.c.bf16 %v4492, %v4488
        %v4657 = vpack.c.bf16 %v4498, %v4494
        %v4658 = vpack.c.bf16 %v4500, %v4496
        %v4659 = vpack.c.bf16 %v4506, %v4502
        %v4660 = vpack.c.bf16 %v4508, %v4504
        %v4661 = vpack.c.bf16 %v4514, %v4510
        %v4662 = vpack.c.bf16 %v4516, %v4512
        %v4663 = vpack.c.bf16 %v4522, %v4518
        %v4664 = vpack.c.bf16 %v4524, %v4520
        %v4665 = vpack.c.bf16 %v4530, %v4526
        %v4666 = vpack.c.bf16 %v4532, %v4528
        %v4667 = vpack.c.bf16 %v4538, %v4534
        %v4668 = vpack.c.bf16 %v4540, %v4536
        %v4669 = vpack.c.bf16 %v4544, %v4544
        %v4670 = vpack.c.bf16 %v4546, %v4546
        %v4675 = vunpack.c.l.b16 %v3910
        %v4676 = vunpack.c.l.b16 %v3911
        %v4677 = vunpack.c.l.b16 %v3912
        %v4678 = vunpack.c.l.b16 %v3913
        %v4679 = vpack.c.b16 %v4676, %v4675
        %v4680 = vpack.c.b16 %v4678, %v4677
        %v4682 = vsel %vm1639, %v4679, 0
        %v4685 = vsel %vm1639, %v4680, 0
        %v4688 = vsel %vm1646, %v4669, 0
        %v4691 = vsel %vm1646, %v4670, 0
        %4693 = vmatprep.subr.bf16.mxu0 %v4691
        %4694 = vmatpush1.bf16.msra.mxu0 %v4688
        %4695 = vmatprep.subr.bf16.mxu0 0
        %4696 = vmatpush1.bf16.msra.mxu0 0
        %4697 = vmatprep.subr.bf16.mxu0 0
        %4698 = vmatpush1.bf16.msra.mxu0 0
        %4699 = vmatprep.subr.bf16.mxu0 0
        %4700 = vmatpush1.bf16.msra.mxu0 0
        %4701 = vmatprep.subr.bf16.mxu0 0
        %4702 = vmatpush1.bf16.msra.mxu0 0
        %4703 = vmatprep.subr.bf16.mxu0 0
        %4704 = vmatpush1.bf16.msra.mxu0 0
        %4705 = vmatprep.subr.bf16.mxu0 0
        %4706 = vmatpush1.bf16.msra.mxu0 0
        %4707 = vmatprep.subr.bf16.mxu0 0
        %4708 = vmatpush1.bf16.msra.mxu0 0
        %4709 = vmatprep.subr.bf16.mxu0 0
        %4710 = vmatpush1.bf16.msra.mxu0 0
        %4711 = vmatprep.subr.bf16.mxu0 0
        %4712 = vmatpush1.bf16.msra.mxu0 0
        %4713 = vmatprep.subr.bf16.mxu0 0
        %4714 = vmatpush1.bf16.msra.mxu0 0
        %4715 = vmatprep.subr.bf16.mxu0 0
        %4716 = vmatpush1.bf16.msra.mxu0 0
        %4717 = vmatprep.subr.bf16.mxu0 0
        %4718 = vmatpush1.bf16.msra.mxu0 0
        %4719 = vmatprep.subr.bf16.mxu0 0
        %4720 = vmatpush1.bf16.msra.mxu0 0
        %4721 = vmatprep.subr.bf16.mxu0 0
        %4722 = vmatpush1.bf16.msra.mxu0 0
        %4723 = vmatprep.subr.bf16.mxu0 0
        %4724 = vmatpush1.bf16.msra.mxu0 0
        %4725 = vmatprep.mubr.bf16.mxu0 0
        %4726 = vmatmul.mubr.bf16.gmra.mrb[0].mxu0 %v4682
        %v4727 = vpop.f32.mrb[0].mxu0
        %v4728 = vadd.f32 0.0, %v4727
        %v4729 = vpop.f32.mrb[0].mxu0
        %v4730 = vadd.f32 0.0, %v4729
        %v4731 = vpop.f32.mrb[0].mxu0
        %v4732 = vadd.f32 0.0, %v4731
        %v4733 = vpop.f32.mrb[0].mxu0
        %v4734 = vadd.f32 0.0, %v4733
        %4735 = vmatprep.mubr.bf16.mxu0 0
        %4736 = vmatmul.mubr.bf16.gmra.mrb[0].mxu0 %v4685
        %v4737 = vpop.f32.mrb[0].mxu0
        %v4738 = vadd.f32 0.0, %v4737
        %v4739 = vpop.f32.mrb[0].mxu0
        %v4740 = vadd.f32 0.0, %v4739
        %v4741 = vpop.f32.mrb[0].mxu0
        %v4742 = vadd.f32 0.0, %v4741
        %v4743 = vpop.f32.mrb[0].mxu0
        %v4744 = vadd.f32 0.0, %v4743
        %4745 = vdwg.mxu0
        %4746 = vmatprep.subr.bf16.mxu0 %v4638
        %4747 = vmatpush1.bf16.msra.mxu0 %v4637
        %4748 = vmatprep.subr.bf16.mxu0 %v4640
        %4749 = vmatpush1.bf16.msra.mxu0 %v4639
        %4750 = vmatprep.subr.bf16.mxu0 %v4642
        %4751 = vmatpush1.bf16.msra.mxu0 %v4641
        %4752 = vmatprep.subr.bf16.mxu0 %v4644
        %4753 = vmatpush1.bf16.msra.mxu0 %v4643
        %4754 = vmatprep.subr.bf16.mxu0 %v4646
        %4755 = vmatpush1.bf16.msra.mxu0 %v4645
        %4756 = vmatprep.subr.bf16.mxu0 %v4648
        %4757 = vmatpush1.bf16.msra.mxu0 %v4647
        %4758 = vmatprep.subr.bf16.mxu0 %v4650
        %4759 = vmatpush1.bf16.msra.mxu0 %v4649
        %4760 = vmatprep.subr.bf16.mxu0 %v4652
        %4761 = vmatpush1.bf16.msra.mxu0 %v4651
        %4762 = vmatprep.subr.bf16.mxu0 %v4654
        %4763 = vmatpush1.bf16.msra.mxu0 %v4653
        %4764 = vmatprep.subr.bf16.mxu0 %v4656
        %4765 = vmatpush1.bf16.msra.mxu0 %v4655
        %4766 = vmatprep.subr.bf16.mxu0 %v4658
        %4767 = vmatpush1.bf16.msra.mxu0 %v4657
        %4768 = vmatprep.subr.bf16.mxu0 %v4660
        %4769 = vmatpush1.bf16.msra.mxu0 %v4659
        %4770 = vmatprep.subr.bf16.mxu0 %v4662
        %4771 = vmatpush1.bf16.msra.mxu0 %v4661
        %4772 = vmatprep.subr.bf16.mxu0 %v4664
        %4773 = vmatpush1.bf16.msra.mxu0 %v4663
        %4774 = vmatprep.subr.bf16.mxu0 %v4666
        %4775 = vmatpush1.bf16.msra.mxu0 %v4665
        %4776 = vmatprep.subr.bf16.mxu0 %v4668
        %4777 = vmatpush1.bf16.msra.mxu0 %v4667
        %4778 = vmatprep.mubr.bf16.mxu0 %v860
        %4779 = vmatmul.mubr.bf16.gmra.mrb[0].mxu0 %v859
        %v4780 = vpop.f32.mrb[0].mxu0
        %v4781 = vadd.f32 %v4728, %v4780
        %v4782 = vpop.f32.mrb[0].mxu0
        %v4783 = vadd.f32 %v4730, %v4782
        %v4784 = vpop.f32.mrb[0].mxu0
        %v4785 = vadd.f32 %v4732, %v4784
        %v4786 = vpop.f32.mrb[0].mxu0
        %v4787 = vadd.f32 %v4734, %v4786
        %4788 = vmatprep.mubr.bf16.mxu0 %v862
        %4789 = vmatmul.mubr.bf16.gmra.mrb[0].mxu0 %v861
        %v4790 = vpop.f32.mrb[0].mxu0
        %v4791 = vadd.f32 %v4738, %v4790
        %v4792 = vpop.f32.mrb[0].mxu0
        %v4793 = vadd.f32 %v4740, %v4792
        %v4794 = vpop.f32.mrb[0].mxu0
        %v4795 = vadd.f32 %v4742, %v4794
        %v4796 = vpop.f32.mrb[0].mxu0
        %v4797 = vadd.f32 %v4744, %v4796
        %4798 = vdwg.mxu0
        %v4799 = vrcp.pop %v4635
        %v4800 = vrcp.pop %v4636
        %v4801 = vmul.f32 %v4781, %v4799
        %v4802 = vmul.f32 %v4783, %v4800
        %v4803 = vmul.f32 %v4785, %v4799
        %v4804 = vmul.f32 %v4787, %v4800
        %v4805 = vmul.f32 %v4791, %v4799
        %v4806 = vmul.f32 %v4793, %v4800
        %v4807 = vmul.f32 %v4795, %v4799
        %v4808 = vmul.f32 %v4797, %v4800
        %s4809 = scalar_lea.vmem %s4, 96
        %v4810 = vld [vmem:[%s4809] sm:$0xff]
        %v4811 = vld [vmem:[%s4809 + $0x8] sm:$0xff]
        %v4812 = vld [vmem:[%s4809 + $0x10] sm:$0xff]
        %v4813 = vld [vmem:[%s4809 + $0x18] sm:$0xff]
        %v4815 = vsel %vm469, %v4810, 0
        %v4818 = vsel %vm469, %v4811, 0
        %v4821 = vsel %vm469, %v4812, 0
        %v4824 = vsel %vm469, %v4813, 0
        %4826 = vmatprep.subr.mxu0 %v4802
        %4827 = vmatpush1.msra.mxu0 %v4801
        %4828 = vmatprep.subr.mxu0 %v4804
        %4829 = vmatpush1.msra.mxu0 %v4803
        %4830 = vmatprep.subr.mxu0 %v4806
        %4831 = vmatpush1.msra.mxu0 %v4805
        %4832 = vmatprep.subr.mxu0 %v4808
        %4833 = vmatpush1.msra.mxu0 %v4807
        %4834 = vmatprep.subr.mxu0 0.0
        %4835 = vmatpush1.msra.mxu0 0.0
        %4836 = vmatprep.subr.mxu0 0.0
        %4837 = vmatpush1.msra.mxu0 0.0
        %4838 = vmatprep.subr.mxu0 0.0
        %4839 = vmatpush1.msra.mxu0 0.0
        %4840 = vmatprep.subr.mxu0 0.0
        %4841 = vmatpush1.msra.mxu0 0.0
        %4842 = vmatprep.subr.mxu0 0.0
        %4843 = vmatpush1.msra.mxu0 0.0
        %4844 = vmatprep.subr.mxu0 0.0
        %4845 = vmatpush1.msra.mxu0 0.0
        %4846 = vmatprep.subr.mxu0 0.0
        %4847 = vmatpush1.msra.mxu0 0.0
        %4848 = vmatprep.subr.mxu0 0.0
        %4849 = vmatpush1.msra.mxu0 0.0
        %4850 = vmatprep.subr.mxu0 0.0
        %4851 = vmatpush1.msra.mxu0 0.0
        %4852 = vmatprep.subr.mxu0 0.0
        %4853 = vmatpush1.msra.mxu0 0.0
        %4854 = vmatprep.subr.mxu0 0.0
        %4855 = vmatpush1.msra.mxu0 0.0
        %4856 = vmatprep.subr.mxu0 0.0
        %4857 = vmatpush1.msra.mxu0 0.0
        %4858 = vmatprep.subr.mxu0 0.0
        %4859 = vmatpush1.msra.mxu0 0.0
        %4860 = vmatprep.subr.mxu0 0.0
        %4861 = vmatpush1.msra.mxu0 0.0
        %4862 = vmatprep.subr.mxu0 0.0
        %4863 = vmatpush1.msra.mxu0 0.0
        %4864 = vmatprep.subr.mxu0 0.0
        %4865 = vmatpush1.msra.mxu0 0.0
        %4866 = vmatprep.subr.mxu0 0.0
        %4867 = vmatpush1.msra.mxu0 0.0
        %4868 = vmatprep.subr.mxu0 0.0
        %4869 = vmatpush1.msra.mxu0 0.0
        %4870 = vmatprep.subr.mxu0 0.0
        %4871 = vmatpush1.msra.mxu0 0.0
        %4872 = vmatprep.subr.mxu0 0.0
        %4873 = vmatpush1.msra.mxu0 0.0
        %4874 = vmatprep.subr.mxu0 0.0
        %4875 = vmatpush1.msra.mxu0 0.0
        %4876 = vmatprep.subr.mxu0 0.0
        %4877 = vmatpush1.msra.mxu0 0.0
        %4878 = vmatprep.subr.mxu0 0.0
        %4879 = vmatpush1.msra.mxu0 0.0
        %4880 = vmatprep.subr.mxu0 0.0
        %4881 = vmatpush1.msra.mxu0 0.0
        %4882 = vmatprep.subr.mxu0 0.0
        %4883 = vmatpush1.msra.mxu0 0.0
        %4884 = vmatprep.subr.mxu0 0.0
        %4885 = vmatpush1.msra.mxu0 0.0
        %4886 = vmatprep.subr.mxu0 0.0
        %4887 = vmatpush1.msra.mxu0 0.0
        %4888 = vmatprep.subr.mxu0 0.0
        %4889 = vmatpush1.msra.mxu0 0.0
        %4890 = vmatprep.mubr.f32.mxu0 0.0
        %4891 = vmatmul.mubr.f32.gmra.mrb[0].mxu0 %v4815
        %v4892 = vpop.f32.mrb[0].mxu0
        %v4893 = vadd.f32 0.0, %v4892
        %v4894 = vpop.f32.mrb[0].mxu0
        %v4895 = vadd.f32 0.0, %v4894
        %4896 = vmatprep.mubr.f32.mxu0 0.0
        %4897 = vmatmul.mubr.f32.gmra.mrb[0].mxu0 %v4818
        %v4898 = vpop.f32.mrb[0].mxu0
        %v4899 = vadd.f32 0.0, %v4898
        %v4900 = vpop.f32.mrb[0].mxu0
        %v4901 = vadd.f32 0.0, %v4900
        %4902 = vmatprep.mubr.f32.mxu0 0.0
        %4903 = vmatmul.mubr.f32.gmra.mrb[0].mxu0 %v4821
        %v4904 = vpop.f32.mrb[0].mxu0
        %v4905 = vadd.f32 0.0, %v4904
        %v4906 = vpop.f32.mrb[0].mxu0
        %v4907 = vadd.f32 0.0, %v4906
        %4908 = vmatprep.mubr.f32.mxu0 0.0
        %4909 = vmatmul.mubr.f32.gmra.mrb[0].mxu0 %v4824
        %v4910 = vpop.f32.mrb[0].mxu0
        %v4911 = vadd.f32 0.0, %v4910
        %v4912 = vpop.f32.mrb[0].mxu0
        %v4913 = vadd.f32 0.0, %v4912
        %4914 = vdwg.mxu0
        %v4915 = vadd.f32 %v3896, %v4893
        %v4916 = vadd.f32 %v3897, %v4895
        %v4917 = vadd.f32 %v3898, %v4899
        %v4918 = vadd.f32 %v3899, %v4901
        %v4919 = vadd.f32 %v3900, %v4905
        %v4920 = vadd.f32 %v3901, %v4907
        %v4921 = vadd.f32 %v3902, %v4911
        %v4922 = vadd.f32 %v3903, %v4913
        %v4923 = vld [vmem:[%s5] sm:$0xff]
        %v4924 = vld [vmem:[%s5 + $0x8] sm:$0xff]
        %v4925 = vld [vmem:[%s5 + $0x10] sm:$0xff]
        %v4926 = vld [vmem:[%s5 + $0x18] sm:$0xff]
        %4928 = vset.pattern.permute.xlu0 0
        %4929 = vperm.xlu0 %4928, %v4923
        %v4930 = vpop.permute.xlu0 %4929
        %4933 = vset.pattern.permute.xlu0 0
        %4934 = vperm.xlu0 %4933, %v4924
        %v4935 = vpop.permute.xlu0 %4934
        %4938 = vset.pattern.permute.xlu0 0
        %4939 = vperm.xlu0 %4938, %v4925
        %v4940 = vpop.permute.xlu0 %4939
        %4943 = vset.pattern.permute.xlu0 0
        %4944 = vperm.xlu0 %4943, %v4926
        %v4945 = vpop.permute.xlu0 %4944
        %v4947 = vadd.f32 %v4915, %v4930
        %v4948 = vadd.f32 %v4916, %v4930
        %v4949 = vadd.f32 %v4917, %v4935
        %v4950 = vadd.f32 %v4918, %v4935
        %v4951 = vadd.f32 %v4919, %v4940
        %v4952 = vadd.f32 %v4920, %v4940
        %v4953 = vadd.f32 %v4921, %v4945
        %v4954 = vadd.f32 %v4922, %v4945
        %4955 = vst [vmem:[%s244] sm:$0xff] %v4947
        %4956 = vst [vmem:[%s244 + $0x8] sm:$0xff] %v4948
        %4957 = vst [vmem:[%s244 + $0x10] sm:$0xff] %v4949
        %4958 = vst [vmem:[%s244 + $0x18] sm:$0xff] %v4950
        %4959 = vst [vmem:[%s244 + $0x20] sm:$0xff] %v4951
        %4960 = vst [vmem:[%s244 + $0x28] sm:$0xff] %v4952
        %4961 = vst [vmem:[%s244 + $0x30] sm:$0xff] %v4953
        %4962 = vst [vmem:[%s244 + $0x38] sm:$0xff] %v4954
        %s4963 = sand.u32 %s159, 1
        %s4964 = scalar_lea.sflag [#allocation3], %s4963
        %s4965 = sand.u32 %s159, 1
        %s4966 = smul.addr %s4965, 64
        %s4967 = scalar_lea.vmem [#allocation2], %s4966
        // Predicated region
        $region45: #{tpu_custom_call.1} parent=43 // pred_check
          %p4968 = pneg %p169
        $region46: #{tpu_custom_call.1} parent=43 // pred_check_branch
          %4970 = sbr.rel (%p4968) target = $region48
        $region47: #{tpu_custom_call.1} parent=43 // pred_region
          %s4972 = ssub.s32 1024, 1024
          %4973 = vsyncadd %s4964, %s4972
          %s4974 = smul.addr %s20, 8
          %s4975 = smul.addr %s4974, 128
          %s4976 = scalar_lea.hbm %s6, %s4975
          %s4977 = sshll.u32 %s4967, 4
          %s4978 = int_to_ptr.vmem [resolvable:$true] %s4977
          %4983 = dma.vmem_to_hbm [thread:$0]  %s4978, 1024, %s4976, %s4964, 256, 256, 16
        $region48: #{tpu_custom_call.1} parent=43 // pred_fallthru
          _
      $region44: #{tpu_custom_call.1} parent=5 // pred_fallthru
        _
      %p4984 = scmp.le.s32.totalorder 2, %s15
      // Predicated region
      $region49: #{tpu_custom_call.1} parent=5 // pred_check
        %p4985 = pneg %p4984
      $region50: #{tpu_custom_call.1} parent=5 // pred_check_branch
        %4987 = sbr.rel (%p4985) target = $region52
      $region51: #{tpu_custom_call.1} parent=5 // pred_region
        %s4988 = ssub.s32 %s15, 2
        // Predicated region
        $region53: #{tpu_custom_call.1} parent=51 // pred_check
          %p4989 = pneg %p175
        $region54: #{tpu_custom_call.1} parent=51 // pred_check_branch
          %4991 = sbr.rel (%p4989) target = $region56
        $region55: #{tpu_custom_call.1} parent=51 // pred_region
          %s4992 = sand.u32 %s160, 1
          %s4993 = scalar_lea.sflag [#allocation3], %s4992
          %s4994 = sand.u32 %s160, 1
          %s4995 = smul.addr %s4994, 64
          %s4996 = scalar_lea.vmem [#allocation2], %s4995
          %4997 = dma.done %s4993, 1024
        $region56: #{tpu_custom_call.1} parent=51 // pred_fallthru
          _
      $region52: #{tpu_custom_call.1} parent=5 // pred_fallthru
        _
    $region6: #{tpu_custom_call.1} parent=1 // loop_footer
      %s19 = sadd.s32 1, %s15
    $region7: #{tpu_custom_call.1} parent=1 // loop_footer_branch
      %14 = sbr.rel target = $region3
    $region8: #{tpu_custom_call.1} parent=1 // loop_exit
      _
    %4998 = vsyncpa [#allocation3], 1
    %s4999 = scalar_lea.sflag [#allocation3], 1
    %5000 = vsyncpa %s4999, 1

</llo_original>
